<compile_context>
chip_gen: v7x
topology: tpu7x:2x2x1
jax: 0.10.0
libtpu: 0.0.40
codegen_flags: <defaults>
</compile_context>

<pallas_src>
import functools

import jax
import jax.numpy as jnp
from jax.experimental import pallas as pl
from jax.experimental.pallas import tpu as pltpu

NEG_SLOPE = 0.01    # torch.leaky_relu default negative_slope
LANE = 128          # TPU lane width; feature axes padded to a multiple of this
MASK_VAL = -1e30    # additive mask for non-edges (finite: avoids inf-inf NaN)


def _round_up(x, m):
    return (x + m - 1) // m * m


def _pad2d(x, rows, cols, dtype=jnp.float32):
    out = jnp.zeros((rows, cols), jnp.float32)
    out = out.at[: x.shape[0], : x.shape[1]].set(x.astype(jnp.float32))
    return out.astype(dtype)


# ---------------------------------------------------------------------------
# Kernel 1: per-node projection + per-node attention-score halves
# ---------------------------------------------------------------------------
def _proj_kernel(h_ref, w_ref, a2_ref, z_ref, sd_ref, ss_ref):
    # z = h @ W   — bf16 MXU operands, f32 accumulation
    z = jnp.dot(h_ref[...].astype(jnp.bfloat16), w_ref[...],
                preferred_element_type=jnp.float32)            # (tm, f_out) f32
    a2 = a2_ref[...]                                           # (2, f_out) f32
    # s_dst = z . a_dst, s_src = z . a_src  (VPU multiply + lane reduction)
    sd_ref[...] = jnp.sum(z * a2[0:1, :], axis=1, keepdims=True)
    ss_ref[...] = jnp.sum(z * a2[1:2, :], axis=1, keepdims=True)
    z_ref[...] = z.astype(jnp.bfloat16)


# ---------------------------------------------------------------------------
# Kernel 2: tiled masked-softmax aggregation (flash-attention style)
# ---------------------------------------------------------------------------
def _attn_kernel(adj_ref, sd_ref, ss_ref, z_ref, out_ref,
                 m_sc, l_sc, acc_sc, *, apply_relu):
    k = pl.program_id(1)

    @pl.when(k == 0)
    def _():
        m_sc[...] = jnp.full_like(m_sc, MASK_VAL)
        l_sc[...] = jnp.zeros_like(l_sc)
        acc_sc[...] = jnp.zeros_like(acc_sc)

    # e[v, u] = s_dst[v] + s_src[u]  — pure VPU broadcast add (no MXU)
    e = sd_ref[...] + ss_ref[...]                               # (tq,1)+(1,tk)
    e = jnp.maximum(e, NEG_SLOPE * e)                           # leaky_relu
    e = jnp.where(adj_ref[...] != 0, e, MASK_VAL)               # int8 adjacency

    # online softmax update
    m_prev = m_sc[...]
    m_new = jnp.maximum(m_prev, jnp.max(e, axis=-1, keepdims=True))
    corr = jnp.exp(m_prev - m_new)
    # No second mask select: exp(MASK_VAL - m_new) underflows to exactly 0 for
    # every non-edge once a real edge has been seen; the transient
    # all-masked-so-far case (m_new == MASK_VAL, p == 1) is zeroed later by
    # corr = exp(MASK_VAL - real) == 0, and self-loops guarantee every row
    # eventually sees a real edge.
    p = jnp.exp(e - m_new)                                      # (tq, tk)
    l_sc[...] = corr * l_sc[...] + jnp.sum(p, axis=-1, keepdims=True)
    acc_sc[...] = corr * acc_sc[...] + jnp.dot(
        p.astype(jnp.bfloat16), z_ref[...],
        preferred_element_type=jnp.float32)                     # bf16 MXU, f32 acc
    m_sc[...] = m_new

    @pl.when(k == pl.num_programs(1) - 1)
    def _():
        # every node (including padding) has a self-loop => l >= 1
        h = acc_sc[...] * pl.reciprocal(l_sc[...], approx=True)
        if apply_relu:
            h = jnp.maximum(h, 0.0)
        out_ref[...] = h.astype(out_ref.dtype)


# ---------------------------------------------------------------------------
# One GAT layer (projection call + aggregation call)
# ---------------------------------------------------------------------------
def _gat_layer(h_pad, adj_i8, w_bf16, a2, *, block, apply_relu):
    n_pad, f_in = h_pad.shape
    f_out = w_bf16.shape[1]
    grid_n = n_pad // block

    # ---- projection + score halves --------------------------------------
    # Projection tile: as large as divides n_pad while fitting ~24 MiB VMEM.
    def proj_vmem(pb):
        return (2 * pb * f_in * 4          # h tiles (f32, double-buffered)
                + f_in * f_out * 2         # W (bf16)
                + 2 * f_out * 4            # a2
                + 2 * pb * f_out * 2       # z out (bf16, double-buffered)
                + 4 * pb * 4)              # sd / ss outs
    proj_block = block
    for cand in (4096, 2048, 1024, 512, 256):
        if (cand > proj_block and cand <= n_pad and n_pad % cand == 0
                and proj_vmem(cand) <= (24 << 20)):
            proj_block = cand
            break

    z, sd, ss_col = pl.pallas_call(
        _proj_kernel,
        grid_spec=pltpu.PrefetchScalarGridSpec(
            num_scalar_prefetch=0,
            grid=(n_pad // proj_block,),
            in_specs=[
                pl.BlockSpec((proj_block, f_in), lambda i: (i, 0)),
                pl.BlockSpec((f_in, f_out), lambda i: (0, 0)),
                pl.BlockSpec((2, f_out), lambda i: (0, 0)),
            ],
            out_specs=[
                pl.BlockSpec((proj_block, f_out), lambda i: (i, 0)),
                pl.BlockSpec((proj_block, 1), lambda i: (i, 0)),
                pl.BlockSpec((proj_block, 1), lambda i: (i, 0)),
            ],
        ),
        out_shape=[
            jax.ShapeDtypeStruct((n_pad, f_out), jnp.bfloat16),
            jax.ShapeDtypeStruct((n_pad, 1), jnp.float32),
            jax.ShapeDtypeStruct((n_pad, 1), jnp.float32),
        ],
        compiler_params=pltpu.CompilerParams(
            dimension_semantics=("parallel",)),
    )(h_pad, w_bf16, a2)

    # Source scores as a lane-dense row vector (tiny layout-only XLA reshape).
    ss = ss_col.reshape(1, n_pad)

    # ---- tiled online-softmax aggregation --------------------------------
    agg_need = (2 * block * block            # adjacency tiles (int8, dbl-buf)
                + 2 * block * f_out * 2      # z tiles (bf16, dbl-buf)
                + 4 * block * 4              # sd + ss tiles
                + 2 * block * f_out * 4      # output tiles (f32, dbl-buf)
                + block * f_out * 4          # acc scratch
                + 2 * block * 4)             # m / l scratch
    vmem_limit = int(min(max(int(agg_need * 1.5) + (4 << 20), 32 << 20),
                         60 << 20))

    cost = pl.CostEstimate(
        flops=int(2 * n_pad * n_pad * f_out + 10 * n_pad * n_pad),
        transcendentals=int(n_pad * n_pad + n_pad * grid_n),
        bytes_accessed=int(
            n_pad * n_pad                          # int8 adjacency, streamed once
            + grid_n * n_pad * f_out * 2           # z (bf16) re-streamed per dst tile
            + grid_n * n_pad * 4 + n_pad * 4       # ss re-streamed + sd
            + n_pad * f_out * 4),                  # output
    )

    out = pl.pallas_call(
        functools.partial(_attn_kernel, apply_relu=apply_relu),
        grid_spec=pltpu.PrefetchScalarGridSpec(
            num_scalar_prefetch=0,
            grid=(grid_n, grid_n),                  # (dst tiles, src tiles)
            in_specs=[
                pl.BlockSpec((block, block), lambda q, k: (q, k)),   # adj int8
                pl.BlockSpec((block, 1), lambda q, k: (q, 0)),       # s_dst column
                pl.BlockSpec((1, block), lambda q, k: (0, k)),       # s_src row
                pl.BlockSpec((block, f_out), lambda q, k: (k, 0)),   # z (bf16, src)
            ],
            out_specs=pl.BlockSpec((block, f_out), lambda q, k: (q, 0)),
            scratch_shapes=[
                pltpu.VMEM((block, 1), jnp.float32),      # running max   m
                pltpu.VMEM((block, 1), jnp.float32),      # running denom l
                pltpu.VMEM((block, f_out), jnp.float32),  # running numerator
            ],
        ),
        out_shape=jax.ShapeDtypeStruct((n_pad, f_out), jnp.float32),
        compiler_params=pltpu.CompilerParams(
            dimension_semantics=("parallel", "arbitrary"),
            vmem_limit_bytes=vmem_limit),
        cost_estimate=cost,
    )(adj_i8, sd, ss, z)
    return out


# ---------------------------------------------------------------------------
# Full 2-layer GAT forward
# ---------------------------------------------------------------------------
def gat_forward(h, adj_t, params, *, block=1024):
    """2-layer GAT forward pass.

    h      : (N, in_dim) f32 node features.
    adj_t  : (N, N), adj_t[v, u] != 0 iff edge u -> v. Every node must have a
             self-loop (standard DGL GAT setup) so every softmax row is nonempty.
    params : w1_t (in, hid) = fc1.weight.T, a1 (1, 2*hid) = attn_fc1.weight,
             w2_t (hid, out) = fc2.weight.T, a2 (1, 2*out) = attn_fc2.weight.
    block  : aggregation tile (nodes per dst/src tile); clamped to [128, 2048].
    """
    n, in_dim = h.shape
    hid = params["w1_t"].shape[1]
    out_dim = params["w2_t"].shape[1]

    f_in = _round_up(in_dim, LANE)
    f_hid = _round_up(hid, LANE)
    f_out = _round_up(out_dim, LANE)

    # Aggregation tile: multiple of 128, <= 2048 (v7x 64 MiB VMEM headroom),
    # <= padded node count, and (when possible) <= n_pad/2 so the "parallel"
    # dst axis has >= 2 tiles to shard across TensorCores.
    n_min = _round_up(n, LANE)
    block = max(LANE, (min(block, 2048, n_min) // LANE) * LANE)
    if n_min // block < 2 and n_min >= 2 * LANE:
        block = max(LANE, ((n_min // 2) // LANE) * LANE)
    n_pad = _round_up(n, block)

    # Shared int8 adjacency, one HBM copy used by both layers; padded nodes
    # get a self-loop so their (discarded) softmax rows never hit 0/0.
    adj_i8 = jnp.zeros((n_pad, n_pad), jnp.int8)
    adj_i8 = adj_i8.at[:n, :n].set((adj_t != 0).astype(jnp.int8))
    if n_pad > n:
        pad_ids = jnp.arange(n, n_pad)
        adj_i8 = adj_i8.at[pad_ids, pad_ids].set(1)

    h_pad = jnp.zeros((n_pad, f_in), jnp.float32).at[:n, :in_dim].set(
        h.astype(jnp.float32))

    def attn_rows(a, d, f):
        # row 0 = a_dst (applied to destination z_v), row 1 = a_src (source z_u)
        av = jnp.zeros((2, f), jnp.float32)
        av = av.at[0, :d].set(a[0, d:].astype(jnp.float32))   # a_dst
        av = av.at[1, :d].set(a[0, :d].astype(jnp.float32))   # a_src
        return av

    w1 = _pad2d(params["w1_t"], f_in, f_hid, jnp.bfloat16)
    w2 = _pad2d(params["w2_t"], f_hid, f_out, jnp.bfloat16)
    a21 = attn_rows(params["a1"], hid, f_hid)
    a22 = attn_rows(params["a2"], out_dim, f_out)

    h1 = _gat_layer(h_pad, adj_i8, w1, a21, block=block, apply_relu=True)
    h2 = _gat_layer(h1, adj_i8, w2, a22, block=block, apply_relu=False)
    return h2[:n, :out_dim]


# ---------------- pure-JAX reference (for correctness check) ----------------
def gat_layer_ref(h, w_t, attn_w, adj_t, apply_relu):
    d = w_t.shape[1]
    z = h @ w_t
    s_src = z @ attn_w[0, :d]
    s_dst = z @ attn_w[0, d:]
    e = s_dst[:, None] + s_src[None, :]
    e = jnp.where(e >= 0, e, NEG_SLOPE * e)
    e = jnp.where(adj_t > 0, e, -jnp.inf)
    alpha = jax.nn.softmax(e, axis=-1)
    out = alpha @ z
    return jnp.maximum(out, 0.0) if apply_relu else out


def gat_ref(h, adj_t, params):
    h = gat_layer_ref(h, params["w1_t"], params["a1"], adj_t, True)
    return gat_layer_ref(h, params["w2_t"], params["a2"], adj_t, False)


if __name__ == "__main__":
    N, IN_DIM, HIDDEN_DIM, OUT_DIM = 200, 16, 32, 8

    key = jax.random.PRNGKey(0)
    k_h, k_adj, k_w1, k_a1, k_w2, k_a2 = jax.random.split(key, 6)

    # node features
    h = jax.random.normal(k_h, (N, IN_DIM), dtype=jnp.float32)

    # random directed graph + self-loops; adj_t[v, u] = 1 iff edge u -> v
    adj = (jax.random.uniform(k_adj, (N, N)) < 0.1).astype(jnp.float32)
    adj = jnp.maximum(adj, jnp.eye(N, dtype=jnp.float32))   # self-loops
    adj_t = adj.T

    # deterministic parameters (shapes follow nn.Linear in the module)
    params = {
        "w1_t": 0.1 * jax.random.normal(k_w1, (IN_DIM, HIDDEN_DIM), jnp.float32),
        "a1":   0.1 * jax.random.normal(k_a1, (1, 2 * HIDDEN_DIM), jnp.float32),
        "w2_t": 0.1 * jax.random.normal(k_w2, (HIDDEN_DIM, OUT_DIM), jnp.float32),
        "a2":   0.1 * jax.random.normal(k_a2, (1, 2 * OUT_DIM), jnp.float32),
    }

    # block=128 so the padded 256-node graph exercises a (2, 2) grid with the
    # online-softmax accumulation across src tiles.
    fwd = jax.jit(functools.partial(gat_forward, block=128))
    out = jax.block_until_ready(fwd(h, adj_t, params))
    ref = gat_ref(h, adj_t, params)
    assert out.shape == (N, OUT_DIM)
    # bf16 MXU operands (f32 accumulation), online-softmax reassociation and
    # pl.reciprocal(approx=True) => loosened tolerance vs the f32 reference.
    assert jnp.allclose(out, ref, atol=2e-2, rtol=2e-2), "mismatch vs reference"

    print("KERNEL_OK")
</pallas_src>

<mosaic_0001>
module attributes {stable_mosaic.version = 11 : i64} {
  func.func @_proj_kernel(%arg0: i32, %arg1: memref<256x128xf32, #tpu.memory_space<vmem>>, %arg2: memref<128x128xbf16, #tpu.memory_space<vmem>>, %arg3: memref<2x128xf32, #tpu.memory_space<vmem>>, %arg4: memref<256x128xbf16, #tpu.memory_space<vmem>>, %arg5: memref<256x1xf32, #tpu.memory_space<vmem>>, %arg6: memref<256x1xf32, #tpu.memory_space<vmem>>) attributes {dimension_semantics = [#tpu.dimension_semantics<parallel>], iteration_bounds = array<i64: 1>, scalar_prefetch = 0 : i64, scratch_operands = 0 : i64, tpu.core_type = #tpu.core_type<tc>, window_params = [{transform_indices = @transform_0, window_bounds = array<i64: 256, 128>}, {pipeline_mode = #tpu.pipeline_mode<synchronous>, transform_indices = @transform_1, window_bounds = array<i64: 128, 128>}, {pipeline_mode = #tpu.pipeline_mode<synchronous>, transform_indices = @transform_2, window_bounds = array<i64: 2, 128>}, {transform_indices = @transform_3, window_bounds = array<i64: 256, 128>}, {transform_indices = @transform_4, window_bounds = array<i64: 256, 1>}, {transform_indices = @transform_5, window_bounds = array<i64: 256, 1>}]} {
    %c0 = arith.constant 0 : index
    %c0_0 = arith.constant 0 : index
    %0 = vector.load %arg1[%c0, %c0_0] : memref<256x128xf32, #tpu.memory_space<vmem>>, vector<256x128xf32>
    %1 = arith.truncf %0 : vector<256x128xf32> to vector<256x128xbf16>
    %c0_1 = arith.constant 0 : index
    %c0_2 = arith.constant 0 : index
    %2 = vector.load %arg2[%c0_1, %c0_2] : memref<128x128xbf16, #tpu.memory_space<vmem>>, vector<128x128xbf16>
    %cst = arith.constant dense<0.000000e+00> : vector<256x128xf32>
    %3 = tpu.matmul %1, %2, %cst {dimension_numbers = #tpu.dot_dimension_numbers<[1], [0], [0], [1], [0, 0, 1, 1], [], []>} : vector<256x128xbf16>, vector<128x128xbf16>, vector<256x128xf32> -> vector<256x128xf32>
    %c0_3 = arith.constant 0 : index
    %c0_4 = arith.constant 0 : index
    %4 = vector.load %arg3[%c0_3, %c0_4] : memref<2x128xf32, #tpu.memory_space<vmem>>, vector<2x128xf32>
    %5 = vector.extract_strided_slice %4 {offsets = [0, 0], sizes = [1, 128], strides = [1, 1]} : vector<2x128xf32> to vector<1x128xf32>
    %6 = vector.broadcast %5 : vector<1x128xf32> to vector<256x128xf32>
    %7 = arith.mulf %3, %6 : vector<256x128xf32>
    %cst_5 = arith.constant dense<0.000000e+00> : vector<256xf32>
    %8 = vector.multi_reduction <add>, %7, %cst_5 [1] : vector<256x128xf32> to vector<256xf32>
    %9 = vector.shape_cast %8 : vector<256xf32> to vector<256x1xf32>
    %c0_6 = arith.constant 0 : index
    %c0_7 = arith.constant 0 : index
    %10 = vector.load %arg5[%c0_6, %c0_7] : memref<256x1xf32, #tpu.memory_space<vmem>>, vector<256x1xf32>
    tpu.vector_store %arg5[%c0_6, %c0_7], %9 {strides = array<i32>} : memref<256x1xf32, #tpu.memory_space<vmem>>, vector<256x1xf32>,
    %11 = vector.extract_strided_slice %4 {offsets = [1, 0], sizes = [1, 128], strides = [1, 1]} : vector<2x128xf32> to vector<1x128xf32>
    %12 = vector.broadcast %11 : vector<1x128xf32> to vector<256x128xf32>
    %13 = arith.mulf %3, %12 : vector<256x128xf32>
    %cst_8 = arith.constant dense<0.000000e+00> : vector<256xf32>
    %14 = vector.multi_reduction <add>, %13, %cst_8 [1] : vector<256x128xf32> to vector<256xf32>
    %15 = vector.shape_cast %14 : vector<256xf32> to vector<256x1xf32>
    %c0_9 = arith.constant 0 : index
    %c0_10 = arith.constant 0 : index
    %16 = vector.load %arg6[%c0_9, %c0_10] : memref<256x1xf32, #tpu.memory_space<vmem>>, vector<256x1xf32>
    tpu.vector_store %arg6[%c0_9, %c0_10], %15 {strides = array<i32>} : memref<256x1xf32, #tpu.memory_space<vmem>>, vector<256x1xf32>,
    %17 = arith.truncf %3 : vector<256x128xf32> to vector<256x128xbf16>
    %c0_11 = arith.constant 0 : index
    %c0_12 = arith.constant 0 : index
    %18 = vector.load %arg4[%c0_11, %c0_12] : memref<256x128xbf16, #tpu.memory_space<vmem>>, vector<256x128xbf16>
    tpu.vector_store %arg4[%c0_11, %c0_12], %17 {strides = array<i32>} : memref<256x128xbf16, #tpu.memory_space<vmem>>, vector<256x128xbf16>,
    return
  }
  func.func @transform_0(%arg0: i32) -> (i32, i32) {
    %c0_i32 = arith.constant 0 : i32
    %c0_i32_0 = arith.constant 0 : i32
    return %arg0, %c0_i32 : i32, i32
  }
  func.func @transform_1(%arg0: i32) -> (i32, i32) {
    %c0_i32 = arith.constant 0 : i32
    %c0_i32_0 = arith.constant 0 : i32
    %c0_i32_1 = arith.constant 0 : i32
    return %c0_i32, %c0_i32_0 : i32, i32
  }
  func.func @transform_2(%arg0: i32) -> (i32, i32) {
    %c0_i32 = arith.constant 0 : i32
    %c0_i32_0 = arith.constant 0 : i32
    %c0_i32_1 = arith.constant 0 : i32
    return %c0_i32, %c0_i32_0 : i32, i32
  }
  func.func @transform_3(%arg0: i32) -> (i32, i32) {
    %c0_i32 = arith.constant 0 : i32
    %c0_i32_0 = arith.constant 0 : i32
    return %arg0, %c0_i32 : i32, i32
  }
  func.func @transform_4(%arg0: i32) -> (i32, i32) {
    %c0_i32 = arith.constant 0 : i32
    %c0_i32_0 = arith.constant 0 : i32
    return %arg0, %c0_i32 : i32, i32
  }
  func.func @transform_5(%arg0: i32) -> (i32, i32) {
    %c0_i32 = arith.constant 0 : i32
    %c0_i32_0 = arith.constant 0 : i32
    return %arg0, %c0_i32 : i32, i32
  }
}

module attributes {stable_mosaic.version = 11 : i64} {
  func.func @_attn_kernel(%arg0: i32, %arg1: i32, %arg2: memref<128x128xi8, #tpu.memory_space<vmem>>, %arg3: memref<128x1xf32, #tpu.memory_space<vmem>>, %arg4: memref<1x128xf32, #tpu.memory_space<vmem>>, %arg5: memref<128x128xbf16, #tpu.memory_space<vmem>>, %arg6: memref<128x128xf32, #tpu.memory_space<vmem>>, %arg7: memref<128x1xf32, #tpu.memory_space<vmem>>, %arg8: memref<128x1xf32, #tpu.memory_space<vmem>>, %arg9: memref<128x128xf32, #tpu.memory_space<vmem>>) attributes {dimension_semantics = [#tpu.dimension_semantics<parallel>, #tpu.dimension_semantics<arbitrary>], iteration_bounds = array<i64: 2, 2>, scalar_prefetch = 0 : i64, scratch_operands = 3 : i64, tpu.core_type = #tpu.core_type<tc>, window_params = [{transform_indices = @transform_0, window_bounds = array<i64: 128, 128>}, {transform_indices = @transform_1, window_bounds = array<i64: 128, 1>}, {transform_indices = @transform_2, window_bounds = array<i64: 1, 128>}, {transform_indices = @transform_3, window_bounds = array<i64: 128, 128>}, {transform_indices = @transform_4, window_bounds = array<i64: 128, 128>}]} {
    %c0_i32 = arith.constant 0 : i32
    %0 = arith.cmpi eq, %arg1, %c0_i32 : i32
    %1 = arith.extui %0 : i1 to i32
    %c0_i32_0 = arith.constant 0 : i32
    %2 = arith.cmpi ne, %1, %c0_i32_0 : i32
    scf.if %2 {
      %cst_25 = arith.constant -1.000000e+30 : f32
      %43 = vector.broadcast %cst_25 : f32 to vector<128x1xf32>
      %c0_26 = arith.constant 0 : index
      %c0_27 = arith.constant 0 : index
      %44 = vector.load %arg7[%c0_26, %c0_27] : memref<128x1xf32, #tpu.memory_space<vmem>>, vector<128x1xf32>
      tpu.vector_store %arg7[%c0_26, %c0_27], %43 {strides = array<i32>} : memref<128x1xf32, #tpu.memory_space<vmem>>, vector<128x1xf32>,
      %cst_28 = arith.constant 0.000000e+00 : f32
      %45 = vector.broadcast %cst_28 : f32 to vector<128x1xf32>
      %c0_29 = arith.constant 0 : index
      %c0_30 = arith.constant 0 : index
      %46 = vector.load %arg8[%c0_29, %c0_30] : memref<128x1xf32, #tpu.memory_space<vmem>>, vector<128x1xf32>
      tpu.vector_store %arg8[%c0_29, %c0_30], %45 {strides = array<i32>} : memref<128x1xf32, #tpu.memory_space<vmem>>, vector<128x1xf32>,
      %cst_31 = arith.constant 0.000000e+00 : f32
      %47 = vector.broadcast %cst_31 : f32 to vector<128x128xf32>
      %c0_32 = arith.constant 0 : index
      %c0_33 = arith.constant 0 : index
      %48 = vector.load %arg9[%c0_32, %c0_33] : memref<128x128xf32, #tpu.memory_space<vmem>>, vector<128x128xf32>
      tpu.vector_store %arg9[%c0_32, %c0_33], %47 {strides = array<i32>} : memref<128x128xf32, #tpu.memory_space<vmem>>, vector<128x128xf32>,
    } else {
    }
    %c0 = arith.constant 0 : index
    %c0_1 = arith.constant 0 : index
    %3 = vector.load %arg3[%c0, %c0_1] : memref<128x1xf32, #tpu.memory_space<vmem>>, vector<128x1xf32>
    %c0_2 = arith.constant 0 : index
    %c0_3 = arith.constant 0 : index
    %4 = vector.load %arg4[%c0_2, %c0_3] : memref<1x128xf32, #tpu.memory_space<vmem>>, vector<1x128xf32>
    %5 = vector.broadcast %3 : vector<128x1xf32> to vector<128x128xf32>
    %6 = vector.broadcast %4 : vector<1x128xf32> to vector<128x128xf32>
    %7 = arith.addf %5, %6 : vector<128x128xf32>
    %cst = arith.constant 0.00999999977 : f32
    %8 = vector.broadcast %cst : f32 to vector<128x128xf32>
    %9 = arith.mulf %8, %7 : vector<128x128xf32>
    %10 = arith.maximumf %7, %9 : vector<128x128xf32>
    %c0_4 = arith.constant 0 : index
    %c0_5 = arith.constant 0 : index
    %11 = vector.load %arg2[%c0_4, %c0_5] : memref<128x128xi8, #tpu.memory_space<vmem>>, vector<128x128xi8>
    %c0_i8 = arith.constant 0 : i8
    %12 = vector.broadcast %c0_i8 : i8 to vector<128x128xi8>
    %13 = arith.cmpi ne, %11, %12 : vector<128x128xi8>
    %cst_6 = arith.constant -1.000000e+30 : f32
    %14 = vector.broadcast %cst_6 : f32 to vector<128x128xf32>
    %15 = arith.select %13, %10, %14 : vector<128x128xi1>, vector<128x128xf32>
    %c0_7 = arith.constant 0 : index
    %c0_8 = arith.constant 0 : index
    %16 = vector.load %arg7[%c0_7, %c0_8] : memref<128x1xf32, #tpu.memory_space<vmem>>, vector<128x1xf32>
    %cst_9 = arith.constant dense<0xFF800000> : vector<128xf32>
    %17 = vector.multi_reduction <maximumf>, %15, %cst_9 [1] : vector<128x128xf32> to vector<128xf32>
    %18 = vector.shape_cast %17 : vector<128xf32> to vector<128x1xf32>
    %19 = arith.maximumf %16, %18 : vector<128x1xf32>
    %20 = arith.subf %16, %19 : vector<128x1xf32>
    %21 = math.exp %20 : vector<128x1xf32>
    %22 = vector.broadcast %19 : vector<128x1xf32> to vector<128x128xf32>
    %23 = arith.subf %15, %22 : vector<128x128xf32>
    %24 = math.exp %23 : vector<128x128xf32>
    %c0_10 = arith.constant 0 : index
    %c0_11 = arith.constant 0 : index
    %25 = vector.load %arg8[%c0_10, %c0_11] : memref<128x1xf32, #tpu.memory_space<vmem>>, vector<128x1xf32>
    %26 = arith.mulf %21, %25 : vector<128x1xf32>
    %cst_12 = arith.constant dense<0.000000e+00> : vector<128xf32>
    %27 = vector.multi_reduction <add>, %24, %cst_12 [1] : vector<128x128xf32> to vector<128xf32>
    %28 = vector.shape_cast %27 : vector<128xf32> to vector<128x1xf32>
    %29 = arith.addf %26, %28 : vector<128x1xf32>
    %c0_13 = arith.constant 0 : index
    %c0_14 = arith.constant 0 : index
    %30 = vector.load %arg8[%c0_13, %c0_14] : memref<128x1xf32, #tpu.memory_space<vmem>>, vector<128x1xf32>
    tpu.vector_store %arg8[%c0_13, %c0_14], %29 {strides = array<i32>} : memref<128x1xf32, #tpu.memory_space<vmem>>, vector<128x1xf32>,
    %c0_15 = arith.constant 0 : index
    %c0_16 = arith.constant 0 : index
    %31 = vector.load %arg9[%c0_15, %c0_16] : memref<128x128xf32, #tpu.memory_space<vmem>>, vector<128x128xf32>
    %32 = vector.broadcast %21 : vector<128x1xf32> to vector<128x128xf32>
    %33 = arith.mulf %32, %31 : vector<128x128xf32>
    %34 = arith.truncf %24 : vector<128x128xf32> to vector<128x128xbf16>
    %c0_17 = arith.constant 0 : index
    %c0_18 = arith.constant 0 : index
    %35 = vector.load %arg5[%c0_17, %c0_18] : memref<128x128xbf16, #tpu.memory_space<vmem>>, vector<128x128xbf16>
    %cst_19 = arith.constant dense<0.000000e+00> : vector<128x128xf32>
    %36 = tpu.matmul %34, %35, %cst_19 {dimension_numbers = #tpu.dot_dimension_numbers<[1], [0], [0], [1], [0, 0, 1, 1], [], []>} : vector<128x128xbf16>, vector<128x128xbf16>, vector<128x128xf32> -> vector<128x128xf32>
    %37 = arith.addf %33, %36 : vector<128x128xf32>
    %c0_20 = arith.constant 0 : index
    %c0_21 = arith.constant 0 : index
    %38 = vector.load %arg9[%c0_20, %c0_21] : memref<128x128xf32, #tpu.memory_space<vmem>>, vector<128x128xf32>
    tpu.vector_store %arg9[%c0_20, %c0_21], %37 {strides = array<i32>} : memref<128x128xf32, #tpu.memory_space<vmem>>, vector<128x128xf32>,
    %c0_22 = arith.constant 0 : index
    %c0_23 = arith.constant 0 : index
    %39 = vector.load %arg7[%c0_22, %c0_23] : memref<128x1xf32, #tpu.memory_space<vmem>>, vector<128x1xf32>
    tpu.vector_store %arg7[%c0_22, %c0_23], %19 {strides = array<i32>} : memref<128x1xf32, #tpu.memory_space<vmem>>, vector<128x1xf32>,
    %c1_i32 = arith.constant 1 : i32
    %40 = arith.cmpi eq, %arg1, %c1_i32 : i32
    %41 = arith.extui %40 : i1 to i32
    %c0_i32_24 = arith.constant 0 : i32
    %42 = arith.cmpi ne, %41, %c0_i32_24 : i32
    scf.if %42 {
      %c0_25 = arith.constant 0 : index
      %c0_26 = arith.constant 0 : index
      %43 = vector.load %arg9[%c0_25, %c0_26] : memref<128x128xf32, #tpu.memory_space<vmem>>, vector<128x128xf32>
      %c0_27 = arith.constant 0 : index
      %c0_28 = arith.constant 0 : index
      %44 = vector.load %arg8[%c0_27, %c0_28] : memref<128x1xf32, #tpu.memory_space<vmem>>, vector<128x1xf32>
      %45 = tpu.reciprocal %44 {approx = true} : vector<128x1xf32> -> vector<128x1xf32>
      %46 = vector.broadcast %45 : vector<128x1xf32> to vector<128x128xf32>
      %47 = arith.mulf %43, %46 : vector<128x128xf32>
      %cst_29 = arith.constant 0.000000e+00 : f32
      %48 = vector.broadcast %cst_29 : f32 to vector<128x128xf32>
      %49 = arith.maximumf %47, %48 : vector<128x128xf32>
      %c0_30 = arith.constant 0 : index
      %c0_31 = arith.constant 0 : index
      %50 = vector.load %arg6[%c0_30, %c0_31] : memref<128x128xf32, #tpu.memory_space<vmem>>, vector<128x128xf32>
      tpu.vector_store %arg6[%c0_30, %c0_31], %49 {strides = array<i32>} : memref<128x128xf32, #tpu.memory_space<vmem>>, vector<128x128xf32>,
    } else {
    }
    return
  }
  func.func @transform_0(%arg0: i32, %arg1: i32) -> (i32, i32) {
    %c0_i32 = arith.constant 0 : i32
    return %arg0, %arg1 : i32, i32
  }
  func.func @transform_1(%arg0: i32, %arg1: i32) -> (i32, i32) {
    %c0_i32 = arith.constant 0 : i32
    %c0_i32_0 = arith.constant 0 : i32
    return %arg0, %c0_i32 : i32, i32
  }
  func.func @transform_2(%arg0: i32, %arg1: i32) -> (i32, i32) {
    %c0_i32 = arith.constant 0 : i32
    %c0_i32_0 = arith.constant 0 : i32
    return %c0_i32, %arg1 : i32, i32
  }
  func.func @transform_3(%arg0: i32, %arg1: i32) -> (i32, i32) {
    %c0_i32 = arith.constant 0 : i32
    %c0_i32_0 = arith.constant 0 : i32
    return %arg1, %c0_i32 : i32, i32
  }
  func.func @transform_4(%arg0: i32, %arg1: i32) -> (i32, i32) {
    %c0_i32 = arith.constant 0 : i32
    %c0_i32_0 = arith.constant 0 : i32
    return %arg0, %c0_i32 : i32, i32
  }
}

module attributes {stable_mosaic.version = 11 : i64} {
  func.func @_attn_kernel(%arg0: i32, %arg1: i32, %arg2: memref<128x128xi8, #tpu.memory_space<vmem>>, %arg3: memref<128x1xf32, #tpu.memory_space<vmem>>, %arg4: memref<1x128xf32, #tpu.memory_space<vmem>>, %arg5: memref<128x128xbf16, #tpu.memory_space<vmem>>, %arg6: memref<128x128xf32, #tpu.memory_space<vmem>>, %arg7: memref<128x1xf32, #tpu.memory_space<vmem>>, %arg8: memref<128x1xf32, #tpu.memory_space<vmem>>, %arg9: memref<128x128xf32, #tpu.memory_space<vmem>>) attributes {dimension_semantics = [#tpu.dimension_semantics<parallel>, #tpu.dimension_semantics<arbitrary>], iteration_bounds = array<i64: 2, 2>, scalar_prefetch = 0 : i64, scratch_operands = 3 : i64, tpu.core_type = #tpu.core_type<tc>, window_params = [{transform_indices = @transform_0, window_bounds = array<i64: 128, 128>}, {transform_indices = @transform_1, window_bounds = array<i64: 128, 1>}, {transform_indices = @transform_2, window_bounds = array<i64: 1, 128>}, {transform_indices = @transform_3, window_bounds = array<i64: 128, 128>}, {transform_indices = @transform_4, window_bounds = array<i64: 128, 128>}]} {
    %c0_i32 = arith.constant 0 : i32
    %0 = arith.cmpi eq, %arg1, %c0_i32 : i32
    %1 = arith.extui %0 : i1 to i32
    %c0_i32_0 = arith.constant 0 : i32
    %2 = arith.cmpi ne, %1, %c0_i32_0 : i32
    scf.if %2 {
      %cst_25 = arith.constant -1.000000e+30 : f32
      %43 = vector.broadcast %cst_25 : f32 to vector<128x1xf32>
      %c0_26 = arith.constant 0 : index
      %c0_27 = arith.constant 0 : index
      %44 = vector.load %arg7[%c0_26, %c0_27] : memref<128x1xf32, #tpu.memory_space<vmem>>, vector<128x1xf32>
      tpu.vector_store %arg7[%c0_26, %c0_27], %43 {strides = array<i32>} : memref<128x1xf32, #tpu.memory_space<vmem>>, vector<128x1xf32>,
      %cst_28 = arith.constant 0.000000e+00 : f32
      %45 = vector.broadcast %cst_28 : f32 to vector<128x1xf32>
      %c0_29 = arith.constant 0 : index
      %c0_30 = arith.constant 0 : index
      %46 = vector.load %arg8[%c0_29, %c0_30] : memref<128x1xf32, #tpu.memory_space<vmem>>, vector<128x1xf32>
      tpu.vector_store %arg8[%c0_29, %c0_30], %45 {strides = array<i32>} : memref<128x1xf32, #tpu.memory_space<vmem>>, vector<128x1xf32>,
      %cst_31 = arith.constant 0.000000e+00 : f32
      %47 = vector.broadcast %cst_31 : f32 to vector<128x128xf32>
      %c0_32 = arith.constant 0 : index
      %c0_33 = arith.constant 0 : index
      %48 = vector.load %arg9[%c0_32, %c0_33] : memref<128x128xf32, #tpu.memory_space<vmem>>, vector<128x128xf32>
      tpu.vector_store %arg9[%c0_32, %c0_33], %47 {strides = array<i32>} : memref<128x128xf32, #tpu.memory_space<vmem>>, vector<128x128xf32>,
    } else {
    }
    %c0 = arith.constant 0 : index
    %c0_1 = arith.constant 0 : index
    %3 = vector.load %arg3[%c0, %c0_1] : memref<128x1xf32, #tpu.memory_space<vmem>>, vector<128x1xf32>
    %c0_2 = arith.constant 0 : index
    %c0_3 = arith.constant 0 : index
    %4 = vector.load %arg4[%c0_2, %c0_3] : memref<1x128xf32, #tpu.memory_space<vmem>>, vector<1x128xf32>
    %5 = vector.broadcast %3 : vector<128x1xf32> to vector<128x128xf32>
    %6 = vector.broadcast %4 : vector<1x128xf32> to vector<128x128xf32>
    %7 = arith.addf %5, %6 : vector<128x128xf32>
    %cst = arith.constant 0.00999999977 : f32
    %8 = vector.broadcast %cst : f32 to vector<128x128xf32>
    %9 = arith.mulf %8, %7 : vector<128x128xf32>
    %10 = arith.maximumf %7, %9 : vector<128x128xf32>
    %c0_4 = arith.constant 0 : index
    %c0_5 = arith.constant 0 : index
    %11 = vector.load %arg2[%c0_4, %c0_5] : memref<128x128xi8, #tpu.memory_space<vmem>>, vector<128x128xi8>
    %c0_i8 = arith.constant 0 : i8
    %12 = vector.broadcast %c0_i8 : i8 to vector<128x128xi8>
    %13 = arith.cmpi ne, %11, %12 : vector<128x128xi8>
    %cst_6 = arith.constant -1.000000e+30 : f32
    %14 = vector.broadcast %cst_6 : f32 to vector<128x128xf32>
    %15 = arith.select %13, %10, %14 : vector<128x128xi1>, vector<128x128xf32>
    %c0_7 = arith.constant 0 : index
    %c0_8 = arith.constant 0 : index
    %16 = vector.load %arg7[%c0_7, %c0_8] : memref<128x1xf32, #tpu.memory_space<vmem>>, vector<128x1xf32>
    %cst_9 = arith.constant dense<0xFF800000> : vector<128xf32>
    %17 = vector.multi_reduction <maximumf>, %15, %cst_9 [1] : vector<128x128xf32> to vector<128xf32>
    %18 = vector.shape_cast %17 : vector<128xf32> to vector<128x1xf32>
    %19 = arith.maximumf %16, %18 : vector<128x1xf32>
    %20 = arith.subf %16, %19 : vector<128x1xf32>
    %21 = math.exp %20 : vector<128x1xf32>
    %22 = vector.broadcast %19 : vector<128x1xf32> to vector<128x128xf32>
    %23 = arith.subf %15, %22 : vector<128x128xf32>
    %24 = math.exp %23 : vector<128x128xf32>
    %c0_10 = arith.constant 0 : index
    %c0_11 = arith.constant 0 : index
    %25 = vector.load %arg8[%c0_10, %c0_11] : memref<128x1xf32, #tpu.memory_space<vmem>>, vector<128x1xf32>
    %26 = arith.mulf %21, %25 : vector<128x1xf32>
    %cst_12 = arith.constant dense<0.000000e+00> : vector<128xf32>
    %27 = vector.multi_reduction <add>, %24, %cst_12 [1] : vector<128x128xf32> to vector<128xf32>
    %28 = vector.shape_cast %27 : vector<128xf32> to vector<128x1xf32>
    %29 = arith.addf %26, %28 : vector<128x1xf32>
    %c0_13 = arith.constant 0 : index
    %c0_14 = arith.constant 0 : index
    %30 = vector.load %arg8[%c0_13, %c0_14] : memref<128x1xf32, #tpu.memory_space<vmem>>, vector<128x1xf32>
    tpu.vector_store %arg8[%c0_13, %c0_14], %29 {strides = array<i32>} : memref<128x1xf32, #tpu.memory_space<vmem>>, vector<128x1xf32>,
    %c0_15 = arith.constant 0 : index
    %c0_16 = arith.constant 0 : index
    %31 = vector.load %arg9[%c0_15, %c0_16] : memref<128x128xf32, #tpu.memory_space<vmem>>, vector<128x128xf32>
    %32 = vector.broadcast %21 : vector<128x1xf32> to vector<128x128xf32>
    %33 = arith.mulf %32, %31 : vector<128x128xf32>
    %34 = arith.truncf %24 : vector<128x128xf32> to vector<128x128xbf16>
    %c0_17 = arith.constant 0 : index
    %c0_18 = arith.constant 0 : index
    %35 = vector.load %arg5[%c0_17, %c0_18] : memref<128x128xbf16, #tpu.memory_space<vmem>>, vector<128x128xbf16>
    %cst_19 = arith.constant dense<0.000000e+00> : vector<128x128xf32>
    %36 = tpu.matmul %34, %35, %cst_19 {dimension_numbers = #tpu.dot_dimension_numbers<[1], [0], [0], [1], [0, 0, 1, 1], [], []>} : vector<128x128xbf16>, vector<128x128xbf16>, vector<128x128xf32> -> vector<128x128xf32>
    %37 = arith.addf %33, %36 : vector<128x128xf32>
    %c0_20 = arith.constant 0 : index
    %c0_21 = arith.constant 0 : index
    %38 = vector.load %arg9[%c0_20, %c0_21] : memref<128x128xf32, #tpu.memory_space<vmem>>, vector<128x128xf32>
    tpu.vector_store %arg9[%c0_20, %c0_21], %37 {strides = array<i32>} : memref<128x128xf32, #tpu.memory_space<vmem>>, vector<128x128xf32>,
    %c0_22 = arith.constant 0 : index
    %c0_23 = arith.constant 0 : index
    %39 = vector.load %arg7[%c0_22, %c0_23] : memref<128x1xf32, #tpu.memory_space<vmem>>, vector<128x1xf32>
    tpu.vector_store %arg7[%c0_22, %c0_23], %19 {strides = array<i32>} : memref<128x1xf32, #tpu.memory_space<vmem>>, vector<128x1xf32>,
    %c1_i32 = arith.constant 1 : i32
    %40 = arith.cmpi eq, %arg1, %c1_i32 : i32
    %41 = arith.extui %40 : i1 to i32
    %c0_i32_24 = arith.constant 0 : i32
    %42 = arith.cmpi ne, %41, %c0_i32_24 : i32
    scf.if %42 {
      %c0_25 = arith.constant 0 : index
      %c0_26 = arith.constant 0 : index
      %43 = vector.load %arg9[%c0_25, %c0_26] : memref<128x128xf32, #tpu.memory_space<vmem>>, vector<128x128xf32>
      %c0_27 = arith.constant 0 : index
      %c0_28 = arith.constant 0 : index
      %44 = vector.load %arg8[%c0_27, %c0_28] : memref<128x1xf32, #tpu.memory_space<vmem>>, vector<128x1xf32>
      %45 = tpu.reciprocal %44 {approx = true} : vector<128x1xf32> -> vector<128x1xf32>
      %46 = vector.broadcast %45 : vector<128x1xf32> to vector<128x128xf32>
      %47 = arith.mulf %43, %46 : vector<128x128xf32>
      %c0_29 = arith.constant 0 : index
      %c0_30 = arith.constant 0 : index
      %48 = vector.load %arg6[%c0_29, %c0_30] : memref<128x128xf32, #tpu.memory_space<vmem>>, vector<128x128xf32>
      tpu.vector_store %arg6[%c0_29, %c0_30], %47 {strides = array<i32>} : memref<128x128xf32, #tpu.memory_space<vmem>>, vector<128x128xf32>,
    } else {
    }
    return
  }
  func.func @transform_0(%arg0: i32, %arg1: i32) -> (i32, i32) {
    %c0_i32 = arith.constant 0 : i32
    return %arg0, %arg1 : i32, i32
  }
  func.func @transform_1(%arg0: i32, %arg1: i32) -> (i32, i32) {
    %c0_i32 = arith.constant 0 : i32
    %c0_i32_0 = arith.constant 0 : i32
    return %arg0, %c0_i32 : i32, i32
  }
  func.func @transform_2(%arg0: i32, %arg1: i32) -> (i32, i32) {
    %c0_i32 = arith.constant 0 : i32
    %c0_i32_0 = arith.constant 0 : i32
    return %c0_i32, %arg1 : i32, i32
  }
  func.func @transform_3(%arg0: i32, %arg1: i32) -> (i32, i32) {
    %c0_i32 = arith.constant 0 : i32
    %c0_i32_0 = arith.constant 0 : i32
    return %arg1, %c0_i32 : i32, i32
  }
  func.func @transform_4(%arg0: i32, %arg1: i32) -> (i32, i32) {
    %c0_i32 = arith.constant 0 : i32
    %c0_i32_0 = arith.constant 0 : i32
    return %arg0, %c0_i32 : i32, i32
  }
}

</mosaic_0001>

<llo_original>
// kernel: gat_forward.4
$region0: #{gat_forward.4}
  #allocation0 [shape = 'u32[]', space=smem, size = 0x4, offset = 0x4, fixed_abs, tag = 'smem constant byte address 0x4 - core index']
  #allocation1 [shape = 'u32[144,128]{1,0:T(1,128)}', space=vmem, size = 0x12000, scoped, tag = 'internal scratch']
  %s0 = inlined_call_operand.vmem [shape: f32[256,128], index: 0, kind: input, shape index: {}]
  %s1 = inlined_call_operand.vmem [shape: bf16[128,128], index: 1, kind: input, shape index: {}]
  %s2 = inlined_call_operand.vmem [shape: f32[2,128], index: 2, kind: input, shape index: {}]
  %s3 = inlined_call_operand.vmem [shape: bf16[256,128], index: 3, kind: output, shape index: {0}]
  %s4 = inlined_call_operand.vmem [shape: f32[256,1], index: 4, kind: output, shape index: {1}]
  %s5 = inlined_call_operand.vmem [shape: f32[256,1], index: 5, kind: output, shape index: {2}]
  %6 = xla_tuple %s3, %s4, %s5
  %s7 = sld [smem:[#allocation0]]
  $region38: #{gat_forward.4} parent=0
    _
  %s9 = ssub.s32 1, %s7
  %s10 = scalar_select 0, %s9, %s7
  // Predicated region
  $region2: #{gat_forward.4} parent=0 // pred_check
    _
  $region3: #{gat_forward.4} parent=0 // pred_check_branch
    %12 = sbr.rel (0) target = $region5
  $region4: #{gat_forward.4} parent=0 // pred_region
    _
  $region5: #{gat_forward.4} parent=0 // pred_fallthru
    _
  // Predicated region
  $region6: #{gat_forward.4} parent=0 // pred_check
    _
  $region7: #{gat_forward.4} parent=0 // pred_check_branch
    %14 = sbr.rel (0) target = $region9
  $region8: #{gat_forward.4} parent=0 // pred_region
    _
  $region9: #{gat_forward.4} parent=0 // pred_fallthru
    _
  // Predicated region
  $region10: #{gat_forward.4} parent=0 // pred_check
    _
  $region11: #{gat_forward.4} parent=0 // pred_check_branch
    %16 = sbr.rel (0) target = $region13
  $region12: #{gat_forward.4} parent=0 // pred_region
    _
  $region13: #{gat_forward.4} parent=0 // pred_fallthru
    _
  %v18 = vld [vmem:[%s0] sm:$0xff]
  %v19 = vld [vmem:[%s0 + $0x8] sm:$0xff]
  %v20 = vld [vmem:[%s0 + $0x10] sm:$0xff]
  %v21 = vld [vmem:[%s0 + $0x18] sm:$0xff]
  %v22 = vld [vmem:[%s0 + $0x20] sm:$0xff]
  %v23 = vld [vmem:[%s0 + $0x28] sm:$0xff]
  %v24 = vld [vmem:[%s0 + $0x30] sm:$0xff]
  %v25 = vld [vmem:[%s0 + $0x38] sm:$0xff]
  %v26 = vld [vmem:[%s0 + $0x40] sm:$0xff]
  %v27 = vld [vmem:[%s0 + $0x48] sm:$0xff]
  %v28 = vld [vmem:[%s0 + $0x50] sm:$0xff]
  %v29 = vld [vmem:[%s0 + $0x58] sm:$0xff]
  %v30 = vld [vmem:[%s0 + $0x60] sm:$0xff]
  %v31 = vld [vmem:[%s0 + $0x68] sm:$0xff]
  %v32 = vld [vmem:[%s0 + $0x70] sm:$0xff]
  %v33 = vld [vmem:[%s0 + $0x78] sm:$0xff]
  %v34 = vld [vmem:[%s0 + $0x80] sm:$0xff]
  %v35 = vld [vmem:[%s0 + $0x88] sm:$0xff]
  %v36 = vld [vmem:[%s0 + $0x90] sm:$0xff]
  %v37 = vld [vmem:[%s0 + $0x98] sm:$0xff]
  %v38 = vld [vmem:[%s0 + $0xa0] sm:$0xff]
  %v39 = vld [vmem:[%s0 + $0xa8] sm:$0xff]
  %v40 = vld [vmem:[%s0 + $0xb0] sm:$0xff]
  %v41 = vld [vmem:[%s0 + $0xb8] sm:$0xff]
  %v42 = vld [vmem:[%s0 + $0xc0] sm:$0xff]
  %v43 = vld [vmem:[%s0 + $0xc8] sm:$0xff]
  %v44 = vld [vmem:[%s0 + $0xd0] sm:$0xff]
  %v45 = vld [vmem:[%s0 + $0xd8] sm:$0xff]
  %v46 = vld [vmem:[%s0 + $0xe0] sm:$0xff]
  %v47 = vld [vmem:[%s0 + $0xe8] sm:$0xff]
  %v48 = vld [vmem:[%s0 + $0xf0] sm:$0xff]
  %v49 = vld [vmem:[%s0 + $0xf8] sm:$0xff]
  %v50 = vpack.c.bf16 %v19, %v18
  %v51 = vpack.c.bf16 %v21, %v20
  %v52 = vpack.c.bf16 %v23, %v22
  %v53 = vpack.c.bf16 %v25, %v24
  %v54 = vpack.c.bf16 %v27, %v26
  %v55 = vpack.c.bf16 %v29, %v28
  %v56 = vpack.c.bf16 %v31, %v30
  %v57 = vpack.c.bf16 %v33, %v32
  %v58 = vpack.c.bf16 %v35, %v34
  %v59 = vpack.c.bf16 %v37, %v36
  %v60 = vpack.c.bf16 %v39, %v38
  %v61 = vpack.c.bf16 %v41, %v40
  %v62 = vpack.c.bf16 %v43, %v42
  %v63 = vpack.c.bf16 %v45, %v44
  %v64 = vpack.c.bf16 %v47, %v46
  %v65 = vpack.c.bf16 %v49, %v48
  %v66 = vld [vmem:[%s1] sm:$0xf]
  %v67 = vld [vmem:[%s1 + $0x4] sm:$0xf]
  %v68 = vld [vmem:[%s1 + $0x8] sm:$0xf]
  %v69 = vld [vmem:[%s1 + $0xc] sm:$0xf]
  %v70 = vld [vmem:[%s1 + $0x10] sm:$0xf]
  %v71 = vld [vmem:[%s1 + $0x14] sm:$0xf]
  %v72 = vld [vmem:[%s1 + $0x18] sm:$0xf]
  %v73 = vld [vmem:[%s1 + $0x1c] sm:$0xf]
  %v74 = vld [vmem:[%s1 + $0x20] sm:$0xf]
  %v75 = vld [vmem:[%s1 + $0x24] sm:$0xf]
  %v76 = vld [vmem:[%s1 + $0x28] sm:$0xf]
  %v77 = vld [vmem:[%s1 + $0x2c] sm:$0xf]
  %v78 = vld [vmem:[%s1 + $0x30] sm:$0xf]
  %v79 = vld [vmem:[%s1 + $0x34] sm:$0xf]
  %v80 = vld [vmem:[%s1 + $0x38] sm:$0xf]
  %v81 = vld [vmem:[%s1 + $0x3c] sm:$0xf]
  %v98 = vunpack.c.l.b16 %v66
  %v99 = vunpack.c.l.b16 %v67
  %v100 = vunpack.c.l.b16 %v68
  %v101 = vunpack.c.l.b16 %v69
  %v102 = vunpack.c.l.b16 %v70
  %v103 = vunpack.c.l.b16 %v71
  %v104 = vunpack.c.l.b16 %v72
  %v105 = vunpack.c.l.b16 %v73
  %v106 = vunpack.c.l.b16 %v74
  %v107 = vunpack.c.l.b16 %v75
  %v108 = vunpack.c.l.b16 %v76
  %v109 = vunpack.c.l.b16 %v77
  %v110 = vunpack.c.l.b16 %v78
  %v111 = vunpack.c.l.b16 %v79
  %v112 = vunpack.c.l.b16 %v80
  %v113 = vunpack.c.l.b16 %v81
  %v114 = vpack.c.b16 %v99, %v98
  %v115 = vpack.c.b16 %v101, %v100
  %v116 = vpack.c.b16 %v103, %v102
  %v117 = vpack.c.b16 %v105, %v104
  %v118 = vpack.c.b16 %v107, %v106
  %v119 = vpack.c.b16 %v109, %v108
  %v120 = vpack.c.b16 %v111, %v110
  %v121 = vpack.c.b16 %v113, %v112
  %130 = vmatprep.subr.bf16.mxu0 0
  %131 = vmatpush1.bf16.msra.mxu0 %v114
  %132 = vmatprep.subr.bf16.mxu0 0
  %133 = vmatpush1.bf16.msra.mxu0 %v115
  %134 = vmatprep.subr.bf16.mxu0 0
  %135 = vmatpush1.bf16.msra.mxu0 %v116
  %136 = vmatprep.subr.bf16.mxu0 0
  %137 = vmatpush1.bf16.msra.mxu0 %v117
  %138 = vmatprep.subr.bf16.mxu0 0
  %139 = vmatpush1.bf16.msra.mxu0 %v118
  %140 = vmatprep.subr.bf16.mxu0 0
  %141 = vmatpush1.bf16.msra.mxu0 %v119
  %142 = vmatprep.subr.bf16.mxu0 0
  %143 = vmatpush1.bf16.msra.mxu0 %v120
  %144 = vmatprep.subr.bf16.mxu0 0
  %145 = vmatpush1.bf16.msra.mxu0 %v121
  %146 = vmatprep.subr.bf16.mxu0 0
  %147 = vmatpush1.bf16.msra.mxu0 0
  %148 = vmatprep.subr.bf16.mxu0 0
  %149 = vmatpush1.bf16.msra.mxu0 0
  %150 = vmatprep.subr.bf16.mxu0 0
  %151 = vmatpush1.bf16.msra.mxu0 0
  %152 = vmatprep.subr.bf16.mxu0 0
  %153 = vmatpush1.bf16.msra.mxu0 0
  %154 = vmatprep.subr.bf16.mxu0 0
  %155 = vmatpush1.bf16.msra.mxu0 0
  %156 = vmatprep.subr.bf16.mxu0 0
  %157 = vmatpush1.bf16.msra.mxu0 0
  %158 = vmatprep.subr.bf16.mxu0 0
  %159 = vmatpush1.bf16.msra.mxu0 0
  %160 = vmatprep.subr.bf16.mxu0 0
  %161 = vmatpush1.bf16.msra.mxu0 0
  %162 = vmatprep.mubr.bf16.mxu0 0
  %163 = vmatmul.mubr.bf16.gmra.mrb[0].mxu0 %v50
  %v164 = vpop.f32.mrb[0].mxu0
  %v165 = vadd.f32 0.0, %v164
  %v166 = vpop.f32.mrb[0].mxu0
  %v167 = vpop.f32.mrb[0].mxu0
  %v168 = vadd.f32 0.0, %v167
  %v169 = vpop.f32.mrb[0].mxu0
  %170 = vmatprep.mubr.bf16.mxu0 0
  %171 = vmatmul.mubr.bf16.gmra.mrb[0].mxu0 %v51
  %v172 = vpop.f32.mrb[0].mxu0
  %v173 = vadd.f32 0.0, %v172
  %v174 = vpop.f32.mrb[0].mxu0
  %v175 = vpop.f32.mrb[0].mxu0
  %v176 = vadd.f32 0.0, %v175
  %v177 = vpop.f32.mrb[0].mxu0
  %178 = vmatprep.mubr.bf16.mxu0 0
  %179 = vmatmul.mubr.bf16.gmra.mrb[0].mxu0 %v52
  %v180 = vpop.f32.mrb[0].mxu0
  %v181 = vadd.f32 0.0, %v180
  %v182 = vpop.f32.mrb[0].mxu0
  %v183 = vpop.f32.mrb[0].mxu0
  %v184 = vadd.f32 0.0, %v183
  %v185 = vpop.f32.mrb[0].mxu0
  %186 = vmatprep.mubr.bf16.mxu0 0
  %187 = vmatmul.mubr.bf16.gmra.mrb[0].mxu0 %v53
  %v188 = vpop.f32.mrb[0].mxu0
  %v189 = vadd.f32 0.0, %v188
  %v190 = vpop.f32.mrb[0].mxu0
  %v191 = vpop.f32.mrb[0].mxu0
  %v192 = vadd.f32 0.0, %v191
  %v193 = vpop.f32.mrb[0].mxu0
  %194 = vmatprep.mubr.bf16.mxu0 0
  %195 = vmatmul.mubr.bf16.gmra.mrb[0].mxu0 %v54
  %v196 = vpop.f32.mrb[0].mxu0
  %v197 = vadd.f32 0.0, %v196
  %v198 = vpop.f32.mrb[0].mxu0
  %v199 = vpop.f32.mrb[0].mxu0
  %v200 = vadd.f32 0.0, %v199
  %v201 = vpop.f32.mrb[0].mxu0
  %202 = vmatprep.mubr.bf16.mxu0 0
  %203 = vmatmul.mubr.bf16.gmra.mrb[0].mxu0 %v55
  %v204 = vpop.f32.mrb[0].mxu0
  %v205 = vadd.f32 0.0, %v204
  %v206 = vpop.f32.mrb[0].mxu0
  %v207 = vpop.f32.mrb[0].mxu0
  %v208 = vadd.f32 0.0, %v207
  %v209 = vpop.f32.mrb[0].mxu0
  %210 = vmatprep.mubr.bf16.mxu0 0
  %211 = vmatmul.mubr.bf16.gmra.mrb[0].mxu0 %v56
  %v212 = vpop.f32.mrb[0].mxu0
  %v213 = vadd.f32 0.0, %v212
  %v214 = vpop.f32.mrb[0].mxu0
  %v215 = vpop.f32.mrb[0].mxu0
  %v216 = vadd.f32 0.0, %v215
  %v217 = vpop.f32.mrb[0].mxu0
  %218 = vmatprep.mubr.bf16.mxu0 0
  %219 = vmatmul.mubr.bf16.gmra.mrb[0].mxu0 %v57
  %v220 = vpop.f32.mrb[0].mxu0
  %v221 = vadd.f32 0.0, %v220
  %v222 = vpop.f32.mrb[0].mxu0
  %v223 = vpop.f32.mrb[0].mxu0
  %v224 = vadd.f32 0.0, %v223
  %v225 = vpop.f32.mrb[0].mxu0
  %226 = vmatprep.mubr.bf16.mxu0 0
  %227 = vmatmul.mubr.bf16.gmra.mrb[0].mxu0 %v58
  %v228 = vpop.f32.mrb[0].mxu0
  %v229 = vadd.f32 0.0, %v228
  %v230 = vpop.f32.mrb[0].mxu0
  %v231 = vpop.f32.mrb[0].mxu0
  %v232 = vadd.f32 0.0, %v231
  %v233 = vpop.f32.mrb[0].mxu0
  %234 = vmatprep.mubr.bf16.mxu0 0
  %235 = vmatmul.mubr.bf16.gmra.mrb[0].mxu0 %v59
  %v236 = vpop.f32.mrb[0].mxu0
  %v237 = vadd.f32 0.0, %v236
  %v238 = vpop.f32.mrb[0].mxu0
  %v239 = vpop.f32.mrb[0].mxu0
  %v240 = vadd.f32 0.0, %v239
  %v241 = vpop.f32.mrb[0].mxu0
  %242 = vmatprep.mubr.bf16.mxu0 0
  %243 = vmatmul.mubr.bf16.gmra.mrb[0].mxu0 %v60
  %v244 = vpop.f32.mrb[0].mxu0
  %v245 = vadd.f32 0.0, %v244
  %v246 = vpop.f32.mrb[0].mxu0
  %v247 = vpop.f32.mrb[0].mxu0
  %v248 = vadd.f32 0.0, %v247
  %v249 = vpop.f32.mrb[0].mxu0
  %250 = vmatprep.mubr.bf16.mxu0 0
  %251 = vmatmul.mubr.bf16.gmra.mrb[0].mxu0 %v61
  %v252 = vpop.f32.mrb[0].mxu0
  %v253 = vadd.f32 0.0, %v252
  %v254 = vpop.f32.mrb[0].mxu0
  %v255 = vpop.f32.mrb[0].mxu0
  %v256 = vadd.f32 0.0, %v255
  %v257 = vpop.f32.mrb[0].mxu0
  %258 = vmatprep.mubr.bf16.mxu0 0
  %259 = vmatmul.mubr.bf16.gmra.mrb[0].mxu0 %v62
  %v260 = vpop.f32.mrb[0].mxu0
  %v261 = vadd.f32 0.0, %v260
  %v262 = vpop.f32.mrb[0].mxu0
  %v263 = vpop.f32.mrb[0].mxu0
  %v264 = vadd.f32 0.0, %v263
  %v265 = vpop.f32.mrb[0].mxu0
  %266 = vmatprep.mubr.bf16.mxu0 0
  %267 = vmatmul.mubr.bf16.gmra.mrb[0].mxu0 %v63
  %v268 = vpop.f32.mrb[0].mxu0
  %v269 = vadd.f32 0.0, %v268
  %v270 = vpop.f32.mrb[0].mxu0
  %v271 = vpop.f32.mrb[0].mxu0
  %v272 = vadd.f32 0.0, %v271
  %v273 = vpop.f32.mrb[0].mxu0
  %274 = vmatprep.mubr.bf16.mxu0 0
  %275 = vmatmul.mubr.bf16.gmra.mrb[0].mxu0 %v64
  %v276 = vpop.f32.mrb[0].mxu0
  %v277 = vadd.f32 0.0, %v276
  %v278 = vpop.f32.mrb[0].mxu0
  %v279 = vpop.f32.mrb[0].mxu0
  %v280 = vadd.f32 0.0, %v279
  %v281 = vpop.f32.mrb[0].mxu0
  %282 = vmatprep.mubr.bf16.mxu0 0
  %283 = vmatmul.mubr.bf16.gmra.mrb[0].mxu0 %v65
  %v284 = vpop.f32.mrb[0].mxu0
  %v285 = vadd.f32 0.0, %v284
  %v286 = vpop.f32.mrb[0].mxu0
  %v287 = vpop.f32.mrb[0].mxu0
  %v288 = vadd.f32 0.0, %v287
  %v289 = vpop.f32.mrb[0].mxu0
  %290 = vdwg.mxu0
  %v291 = vld [vmem:[%s2] sm:$0x3]
  %v292 = vlaneseq
  %v293 = vshrl.u32 %v292, 7
  %v294 = vsub.s32 0, %v293
  %v295 = vrot.slane %v291, %v294
  %v296 = vmul.f32 %v165, %v295
  %v297 = vmul.f32 %v168, %v295
  %v298 = vmul.f32 %v173, %v295
  %v299 = vmul.f32 %v176, %v295
  %v300 = vmul.f32 %v181, %v295
  %v301 = vmul.f32 %v184, %v295
  %v302 = vmul.f32 %v189, %v295
  %v303 = vmul.f32 %v192, %v295
  %v304 = vmul.f32 %v197, %v295
  %v305 = vmul.f32 %v200, %v295
  %v306 = vmul.f32 %v205, %v295
  %v307 = vmul.f32 %v208, %v295
  %v308 = vmul.f32 %v213, %v295
  %v309 = vmul.f32 %v216, %v295
  %v310 = vmul.f32 %v221, %v295
  %v311 = vmul.f32 %v224, %v295
  %v312 = vmul.f32 %v229, %v295
  %v313 = vmul.f32 %v232, %v295
  %v314 = vmul.f32 %v237, %v295
  %v315 = vmul.f32 %v240, %v295
  %v316 = vmul.f32 %v245, %v295
  %v317 = vmul.f32 %v248, %v295
  %v318 = vmul.f32 %v253, %v295
  %v319 = vmul.f32 %v256, %v295
  %v320 = vmul.f32 %v261, %v295
  %v321 = vmul.f32 %v264, %v295
  %v322 = vmul.f32 %v269, %v295
  %v323 = vmul.f32 %v272, %v295
  %v324 = vmul.f32 %v277, %v295
  %v325 = vmul.f32 %v280, %v295
  %v326 = vmul.f32 %v285, %v295
  %v327 = vmul.f32 %v288, %v295
  %328 = vadd.xlane.f32.xlu0 %v296
  %v329 = vpop.xlane.xlu0 %328
  %330 = vadd.xlane.f32.xlu0 %v297
  %v331 = vpop.xlane.xlu0 %330
  %332 = vadd.xlane.f32.xlu0 %v298
  %v333 = vpop.xlane.xlu0 %332
  %334 = vadd.xlane.f32.xlu0 %v299
  %v335 = vpop.xlane.xlu0 %334
  %336 = vadd.xlane.f32.xlu0 %v300
  %v337 = vpop.xlane.xlu0 %336
  %338 = vadd.xlane.f32.xlu0 %v301
  %v339 = vpop.xlane.xlu0 %338
  %340 = vadd.xlane.f32.xlu0 %v302
  %v341 = vpop.xlane.xlu0 %340
  %342 = vadd.xlane.f32.xlu0 %v303
  %v343 = vpop.xlane.xlu0 %342
  %344 = vadd.xlane.f32.xlu0 %v304
  %v345 = vpop.xlane.xlu0 %344
  %346 = vadd.xlane.f32.xlu0 %v305
  %v347 = vpop.xlane.xlu0 %346
  %348 = vadd.xlane.f32.xlu0 %v306
  %v349 = vpop.xlane.xlu0 %348
  %350 = vadd.xlane.f32.xlu0 %v307
  %v351 = vpop.xlane.xlu0 %350
  %352 = vadd.xlane.f32.xlu0 %v308
  %v353 = vpop.xlane.xlu0 %352
  %354 = vadd.xlane.f32.xlu0 %v309
  %v355 = vpop.xlane.xlu0 %354
  %356 = vadd.xlane.f32.xlu0 %v310
  %v357 = vpop.xlane.xlu0 %356
  %358 = vadd.xlane.f32.xlu0 %v311
  %v359 = vpop.xlane.xlu0 %358
  %360 = vadd.xlane.f32.xlu0 %v312
  %v361 = vpop.xlane.xlu0 %360
  %362 = vadd.xlane.f32.xlu0 %v313
  %v363 = vpop.xlane.xlu0 %362
  %364 = vadd.xlane.f32.xlu0 %v314
  %v365 = vpop.xlane.xlu0 %364
  %366 = vadd.xlane.f32.xlu0 %v315
  %v367 = vpop.xlane.xlu0 %366
  %368 = vadd.xlane.f32.xlu0 %v316
  %v369 = vpop.xlane.xlu0 %368
  %370 = vadd.xlane.f32.xlu0 %v317
  %v371 = vpop.xlane.xlu0 %370
  %372 = vadd.xlane.f32.xlu0 %v318
  %v373 = vpop.xlane.xlu0 %372
  %374 = vadd.xlane.f32.xlu0 %v319
  %v375 = vpop.xlane.xlu0 %374
  %376 = vadd.xlane.f32.xlu0 %v320
  %v377 = vpop.xlane.xlu0 %376
  %378 = vadd.xlane.f32.xlu0 %v321
  %v379 = vpop.xlane.xlu0 %378
  %380 = vadd.xlane.f32.xlu0 %v322
  %v381 = vpop.xlane.xlu0 %380
  %382 = vadd.xlane.f32.xlu0 %v323
  %v383 = vpop.xlane.xlu0 %382
  %384 = vadd.xlane.f32.xlu0 %v324
  %v385 = vpop.xlane.xlu0 %384
  %386 = vadd.xlane.f32.xlu0 %v325
  %v387 = vpop.xlane.xlu0 %386
  %388 = vadd.xlane.f32.xlu0 %v326
  %v389 = vpop.xlane.xlu0 %388
  %390 = vadd.xlane.f32.xlu0 %v327
  %v391 = vpop.xlane.xlu0 %390
  %vm392 = vcmask 7168
  %393 = vst.msk [vmem:[%s4] sm:$0xff] %vm392, %v329
  %394 = vst.msk [vmem:[%s4 + $0x8] sm:$0xff] %vm392, %v331
  %395 = vst.msk [vmem:[%s4 + $0x10] sm:$0xff] %vm392, %v333
  %396 = vst.msk [vmem:[%s4 + $0x18] sm:$0xff] %vm392, %v335
  %397 = vst.msk [vmem:[%s4 + $0x20] sm:$0xff] %vm392, %v337
  %398 = vst.msk [vmem:[%s4 + $0x28] sm:$0xff] %vm392, %v339
  %399 = vst.msk [vmem:[%s4 + $0x30] sm:$0xff] %vm392, %v341
  %400 = vst.msk [vmem:[%s4 + $0x38] sm:$0xff] %vm392, %v343
  %401 = vst.msk [vmem:[%s4 + $0x40] sm:$0xff] %vm392, %v345
  %402 = vst.msk [vmem:[%s4 + $0x48] sm:$0xff] %vm392, %v347
  %403 = vst.msk [vmem:[%s4 + $0x50] sm:$0xff] %vm392, %v349
  %404 = vst.msk [vmem:[%s4 + $0x58] sm:$0xff] %vm392, %v351
  %405 = vst.msk [vmem:[%s4 + $0x60] sm:$0xff] %vm392, %v353
  %406 = vst.msk [vmem:[%s4 + $0x68] sm:$0xff] %vm392, %v355
  %407 = vst.msk [vmem:[%s4 + $0x70] sm:$0xff] %vm392, %v357
  %408 = vst.msk [vmem:[%s4 + $0x78] sm:$0xff] %vm392, %v359
  %409 = vst.msk [vmem:[%s4 + $0x80] sm:$0xff] %vm392, %v361
  %410 = vst.msk [vmem:[%s4 + $0x88] sm:$0xff] %vm392, %v363
  %411 = vst.msk [vmem:[%s4 + $0x90] sm:$0xff] %vm392, %v365
  %412 = vst.msk [vmem:[%s4 + $0x98] sm:$0xff] %vm392, %v367
  %413 = vst.msk [vmem:[%s4 + $0xa0] sm:$0xff] %vm392, %v369
  %414 = vst.msk [vmem:[%s4 + $0xa8] sm:$0xff] %vm392, %v371
  %415 = vst.msk [vmem:[%s4 + $0xb0] sm:$0xff] %vm392, %v373
  %416 = vst.msk [vmem:[%s4 + $0xb8] sm:$0xff] %vm392, %v375
  %417 = vst.msk [vmem:[%s4 + $0xc0] sm:$0xff] %vm392, %v377
  %418 = vst.msk [vmem:[%s4 + $0xc8] sm:$0xff] %vm392, %v379
  %419 = vst.msk [vmem:[%s4 + $0xd0] sm:$0xff] %vm392, %v381
  %420 = vst.msk [vmem:[%s4 + $0xd8] sm:$0xff] %vm392, %v383
  %421 = vst.msk [vmem:[%s4 + $0xe0] sm:$0xff] %vm392, %v385
  %422 = vst.msk [vmem:[%s4 + $0xe8] sm:$0xff] %vm392, %v387
  %423 = vst.msk [vmem:[%s4 + $0xf0] sm:$0xff] %vm392, %v389
  %424 = vst.msk [vmem:[%s4 + $0xf8] sm:$0xff] %vm392, %v391
  %v425 = vlaneseq
  %v426 = vshrl.u32 %v425, 7
  %v427 = vsub.s32 1, %v426
  %v428 = vrot.slane %v291, %v427
  %v429 = vmul.f32 %v165, %v428
  %v430 = vmul.f32 %v168, %v428
  %v431 = vmul.f32 %v173, %v428
  %v432 = vmul.f32 %v176, %v428
  %v433 = vmul.f32 %v181, %v428
  %v434 = vmul.f32 %v184, %v428
  %v435 = vmul.f32 %v189, %v428
  %v436 = vmul.f32 %v192, %v428
  %v437 = vmul.f32 %v197, %v428
  %v438 = vmul.f32 %v200, %v428
  %v439 = vmul.f32 %v205, %v428
  %v440 = vmul.f32 %v208, %v428
  %v441 = vmul.f32 %v213, %v428
  %v442 = vmul.f32 %v216, %v428
  %v443 = vmul.f32 %v221, %v428
  %v444 = vmul.f32 %v224, %v428
  %v445 = vmul.f32 %v229, %v428
  %v446 = vmul.f32 %v232, %v428
  %v447 = vmul.f32 %v237, %v428
  %v448 = vmul.f32 %v240, %v428
  %v449 = vmul.f32 %v245, %v428
  %v450 = vmul.f32 %v248, %v428
  %v451 = vmul.f32 %v253, %v428
  %v452 = vmul.f32 %v256, %v428
  %v453 = vmul.f32 %v261, %v428
  %v454 = vmul.f32 %v264, %v428
  %v455 = vmul.f32 %v269, %v428
  %v456 = vmul.f32 %v272, %v428
  %v457 = vmul.f32 %v277, %v428
  %v458 = vmul.f32 %v280, %v428
  %v459 = vmul.f32 %v285, %v428
  %v460 = vmul.f32 %v288, %v428
  %461 = vadd.xlane.f32.xlu0 %v429
  %v462 = vpop.xlane.xlu0 %461
  %463 = vadd.xlane.f32.xlu0 %v430
  %v464 = vpop.xlane.xlu0 %463
  %465 = vadd.xlane.f32.xlu0 %v431
  %v466 = vpop.xlane.xlu0 %465
  %467 = vadd.xlane.f32.xlu0 %v432
  %v468 = vpop.xlane.xlu0 %467
  %469 = vadd.xlane.f32.xlu0 %v433
  %v470 = vpop.xlane.xlu0 %469
  %471 = vadd.xlane.f32.xlu0 %v434
  %v472 = vpop.xlane.xlu0 %471
  %473 = vadd.xlane.f32.xlu0 %v435
  %v474 = vpop.xlane.xlu0 %473
  %475 = vadd.xlane.f32.xlu0 %v436
  %v476 = vpop.xlane.xlu0 %475
  %477 = vadd.xlane.f32.xlu0 %v437
  %v478 = vpop.xlane.xlu0 %477
  %479 = vadd.xlane.f32.xlu0 %v438
  %v480 = vpop.xlane.xlu0 %479
  %481 = vadd.xlane.f32.xlu0 %v439
  %v482 = vpop.xlane.xlu0 %481
  %483 = vadd.xlane.f32.xlu0 %v440
  %v484 = vpop.xlane.xlu0 %483
  %485 = vadd.xlane.f32.xlu0 %v441
  %v486 = vpop.xlane.xlu0 %485
  %487 = vadd.xlane.f32.xlu0 %v442
  %v488 = vpop.xlane.xlu0 %487
  %489 = vadd.xlane.f32.xlu0 %v443
  %v490 = vpop.xlane.xlu0 %489
  %491 = vadd.xlane.f32.xlu0 %v444
  %v492 = vpop.xlane.xlu0 %491
  %493 = vadd.xlane.f32.xlu0 %v445
  %v494 = vpop.xlane.xlu0 %493
  %495 = vadd.xlane.f32.xlu0 %v446
  %v496 = vpop.xlane.xlu0 %495
  %497 = vadd.xlane.f32.xlu0 %v447
  %v498 = vpop.xlane.xlu0 %497
  %499 = vadd.xlane.f32.xlu0 %v448
  %v500 = vpop.xlane.xlu0 %499
  %501 = vadd.xlane.f32.xlu0 %v449
  %v502 = vpop.xlane.xlu0 %501
  %503 = vadd.xlane.f32.xlu0 %v450
  %v504 = vpop.xlane.xlu0 %503
  %505 = vadd.xlane.f32.xlu0 %v451
  %v506 = vpop.xlane.xlu0 %505
  %507 = vadd.xlane.f32.xlu0 %v452
  %v508 = vpop.xlane.xlu0 %507
  %509 = vadd.xlane.f32.xlu0 %v453
  %v510 = vpop.xlane.xlu0 %509
  %511 = vadd.xlane.f32.xlu0 %v454
  %v512 = vpop.xlane.xlu0 %511
  %513 = vadd.xlane.f32.xlu0 %v455
  %v514 = vpop.xlane.xlu0 %513
  %515 = vadd.xlane.f32.xlu0 %v456
  %v516 = vpop.xlane.xlu0 %515
  %517 = vadd.xlane.f32.xlu0 %v457
  %v518 = vpop.xlane.xlu0 %517
  %519 = vadd.xlane.f32.xlu0 %v458
  %v520 = vpop.xlane.xlu0 %519
  %521 = vadd.xlane.f32.xlu0 %v459
  %v522 = vpop.xlane.xlu0 %521
  %523 = vadd.xlane.f32.xlu0 %v460
  %v524 = vpop.xlane.xlu0 %523
  %525 = vst.msk [vmem:[%s5] sm:$0xff] %vm392, %v462
  %526 = vst.msk [vmem:[%s5 + $0x8] sm:$0xff] %vm392, %v464
  %527 = vst.msk [vmem:[%s5 + $0x10] sm:$0xff] %vm392, %v466
  %528 = vst.msk [vmem:[%s5 + $0x18] sm:$0xff] %vm392, %v468
  %529 = vst.msk [vmem:[%s5 + $0x20] sm:$0xff] %vm392, %v470
  %530 = vst.msk [vmem:[%s5 + $0x28] sm:$0xff] %vm392, %v472
  %531 = vst.msk [vmem:[%s5 + $0x30] sm:$0xff] %vm392, %v474
  %532 = vst.msk [vmem:[%s5 + $0x38] sm:$0xff] %vm392, %v476
  %533 = vst.msk [vmem:[%s5 + $0x40] sm:$0xff] %vm392, %v478
  %534 = vst.msk [vmem:[%s5 + $0x48] sm:$0xff] %vm392, %v480
  %535 = vst.msk [vmem:[%s5 + $0x50] sm:$0xff] %vm392, %v482
  %536 = vst.msk [vmem:[%s5 + $0x58] sm:$0xff] %vm392, %v484
  %537 = vst.msk [vmem:[%s5 + $0x60] sm:$0xff] %vm392, %v486
  %538 = vst.msk [vmem:[%s5 + $0x68] sm:$0xff] %vm392, %v488
  %539 = vst.msk [vmem:[%s5 + $0x70] sm:$0xff] %vm392, %v490
  %540 = vst.msk [vmem:[%s5 + $0x78] sm:$0xff] %vm392, %v492
  %541 = vst.msk [vmem:[%s5 + $0x80] sm:$0xff] %vm392, %v494
  %542 = vst.msk [vmem:[%s5 + $0x88] sm:$0xff] %vm392, %v496
  %543 = vst.msk [vmem:[%s5 + $0x90] sm:$0xff] %vm392, %v498
  %544 = vst.msk [vmem:[%s5 + $0x98] sm:$0xff] %vm392, %v500
  %545 = vst.msk [vmem:[%s5 + $0xa0] sm:$0xff] %vm392, %v502
  %546 = vst.msk [vmem:[%s5 + $0xa8] sm:$0xff] %vm392, %v504
  %547 = vst.msk [vmem:[%s5 + $0xb0] sm:$0xff] %vm392, %v506
  %548 = vst.msk [vmem:[%s5 + $0xb8] sm:$0xff] %vm392, %v508
  %549 = vst.msk [vmem:[%s5 + $0xc0] sm:$0xff] %vm392, %v510
  %550 = vst.msk [vmem:[%s5 + $0xc8] sm:$0xff] %vm392, %v512
  %551 = vst.msk [vmem:[%s5 + $0xd0] sm:$0xff] %vm392, %v514
  %552 = vst.msk [vmem:[%s5 + $0xd8] sm:$0xff] %vm392, %v516
  %553 = vst.msk [vmem:[%s5 + $0xe0] sm:$0xff] %vm392, %v518
  %554 = vst.msk [vmem:[%s5 + $0xe8] sm:$0xff] %vm392, %v520
  %555 = vst.msk [vmem:[%s5 + $0xf0] sm:$0xff] %vm392, %v522
  %556 = vst.msk [vmem:[%s5 + $0xf8] sm:$0xff] %vm392, %v524
  %v557 = vpack.c.bf16 %v168, %v165
  %v558 = vpack.c.bf16 %v176, %v173
  %v559 = vpack.c.bf16 %v184, %v181
  %v560 = vpack.c.bf16 %v192, %v189
  %v561 = vpack.c.bf16 %v200, %v197
  %v562 = vpack.c.bf16 %v208, %v205
  %v563 = vpack.c.bf16 %v216, %v213
  %v564 = vpack.c.bf16 %v224, %v221
  %v565 = vpack.c.bf16 %v232, %v229
  %v566 = vpack.c.bf16 %v240, %v237
  %v567 = vpack.c.bf16 %v248, %v245
  %v568 = vpack.c.bf16 %v256, %v253
  %v569 = vpack.c.bf16 %v264, %v261
  %v570 = vpack.c.bf16 %v272, %v269
  %v571 = vpack.c.bf16 %v280, %v277
  %v572 = vpack.c.bf16 %v288, %v285
  %v589 = vunpack.c.l.b16 %v557
  %v590 = vunpack.c.h.b16 %v557
  %v591 = vunpack.c.l.b16 %v558
  %v592 = vunpack.c.h.b16 %v558
  %v593 = vunpack.c.l.b16 %v559
  %v594 = vunpack.c.h.b16 %v559
  %v595 = vunpack.c.l.b16 %v560
  %v596 = vunpack.c.h.b16 %v560
  %v597 = vunpack.c.l.b16 %v561
  %v598 = vunpack.c.h.b16 %v561
  %v599 = vunpack.c.l.b16 %v562
  %v600 = vunpack.c.h.b16 %v562
  %v601 = vunpack.c.l.b16 %v563
  %v602 = vunpack.c.h.b16 %v563
  %v603 = vunpack.c.l.b16 %v564
  %v604 = vunpack.c.h.b16 %v564
  %v605 = vunpack.c.l.b16 %v565
  %v606 = vunpack.c.h.b16 %v565
  %v607 = vunpack.c.l.b16 %v566
  %v608 = vunpack.c.h.b16 %v566
  %v609 = vunpack.c.l.b16 %v567
  %v610 = vunpack.c.h.b16 %v567
  %v611 = vunpack.c.l.b16 %v568
  %v612 = vunpack.c.h.b16 %v568
  %v613 = vunpack.c.l.b16 %v569
  %v614 = vunpack.c.h.b16 %v569
  %v615 = vunpack.c.l.b16 %v570
  %v616 = vunpack.c.h.b16 %v570
  %v617 = vunpack.c.l.b16 %v571
  %v618 = vunpack.c.h.b16 %v571
  %v619 = vunpack.c.l.b16 %v572
  %v620 = vunpack.c.h.b16 %v572
  %v621 = vpack.c.b16 %v589, %v589
  %v622 = vpack.c.b16 %v590, %v590
  %v623 = vpack.c.b16 %v591, %v591
  %v624 = vpack.c.b16 %v592, %v592
  %v625 = vpack.c.b16 %v593, %v593
  %v626 = vpack.c.b16 %v594, %v594
  %v627 = vpack.c.b16 %v595, %v595
  %v628 = vpack.c.b16 %v596, %v596
  %v629 = vpack.c.b16 %v597, %v597
  %v630 = vpack.c.b16 %v598, %v598
  %v631 = vpack.c.b16 %v599, %v599
  %v632 = vpack.c.b16 %v600, %v600
  %v633 = vpack.c.b16 %v601, %v601
  %v634 = vpack.c.b16 %v602, %v602
  %v635 = vpack.c.b16 %v603, %v603
  %v636 = vpack.c.b16 %v604, %v604
  %v637 = vpack.c.b16 %v605, %v605
  %v638 = vpack.c.b16 %v606, %v606
  %v639 = vpack.c.b16 %v607, %v607
  %v640 = vpack.c.b16 %v608, %v608
  %v641 = vpack.c.b16 %v609, %v609
  %v642 = vpack.c.b16 %v610, %v610
  %v643 = vpack.c.b16 %v611, %v611
  %v644 = vpack.c.b16 %v612, %v612
  %v645 = vpack.c.b16 %v613, %v613
  %v646 = vpack.c.b16 %v614, %v614
  %v647 = vpack.c.b16 %v615, %v615
  %v648 = vpack.c.b16 %v616, %v616
  %v649 = vpack.c.b16 %v617, %v617
  %v650 = vpack.c.b16 %v618, %v618
  %v651 = vpack.c.b16 %v619, %v619
  %v652 = vpack.c.b16 %v620, %v620
  %685 = vst [vmem:[%s3] sm:$0xf] %v621
  %686 = vst [vmem:[%s3 + $0x4] sm:$0xf] %v622
  %687 = vst [vmem:[%s3 + $0x8] sm:$0xf] %v623
  %688 = vst [vmem:[%s3 + $0xc] sm:$0xf] %v624
  %689 = vst [vmem:[%s3 + $0x10] sm:$0xf] %v625
  %690 = vst [vmem:[%s3 + $0x14] sm:$0xf] %v626
  %691 = vst [vmem:[%s3 + $0x18] sm:$0xf] %v627
  %692 = vst [vmem:[%s3 + $0x1c] sm:$0xf] %v628
  %693 = vst [vmem:[%s3 + $0x20] sm:$0xf] %v629
  %694 = vst [vmem:[%s3 + $0x24] sm:$0xf] %v630
  %695 = vst [vmem:[%s3 + $0x28] sm:$0xf] %v631
  %696 = vst [vmem:[%s3 + $0x2c] sm:$0xf] %v632
  %697 = vst [vmem:[%s3 + $0x30] sm:$0xf] %v633
  %698 = vst [vmem:[%s3 + $0x34] sm:$0xf] %v634
  %699 = vst [vmem:[%s3 + $0x38] sm:$0xf] %v635
  %700 = vst [vmem:[%s3 + $0x3c] sm:$0xf] %v636
  %701 = vst [vmem:[%s3 + $0x40] sm:$0xf] %v637
  %702 = vst [vmem:[%s3 + $0x44] sm:$0xf] %v638
  %703 = vst [vmem:[%s3 + $0x48] sm:$0xf] %v639
  %704 = vst [vmem:[%s3 + $0x4c] sm:$0xf] %v640
  %705 = vst [vmem:[%s3 + $0x50] sm:$0xf] %v641
  %706 = vst [vmem:[%s3 + $0x54] sm:$0xf] %v642
  %707 = vst [vmem:[%s3 + $0x58] sm:$0xf] %v643
  %708 = vst [vmem:[%s3 + $0x5c] sm:$0xf] %v644
  %709 = vst [vmem:[%s3 + $0x60] sm:$0xf] %v645
  %710 = vst [vmem:[%s3 + $0x64] sm:$0xf] %v646
  %711 = vst [vmem:[%s3 + $0x68] sm:$0xf] %v647
  %712 = vst [vmem:[%s3 + $0x6c] sm:$0xf] %v648
  %713 = vst [vmem:[%s3 + $0x70] sm:$0xf] %v649
  %714 = vst [vmem:[%s3 + $0x74] sm:$0xf] %v650
  %715 = vst [vmem:[%s3 + $0x78] sm:$0xf] %v651
  %716 = vst [vmem:[%s3 + $0x7c] sm:$0xf] %v652
  // Predicated region
  $region14: #{gat_forward.4} parent=0 // pred_check
    _
  $region15: #{gat_forward.4} parent=0 // pred_check_branch
    %718 = sbr.rel (0) target = $region17
  $region16: #{gat_forward.4} parent=0 // pred_region
    _
  $region17: #{gat_forward.4} parent=0 // pred_fallthru
    _
  // Predicated region
  $region18: #{gat_forward.4} parent=0 // pred_check
    _
  $region19: #{gat_forward.4} parent=0 // pred_check_branch
    %720 = sbr.rel (0) target = $region21
  $region20: #{gat_forward.4} parent=0 // pred_region
    _
  $region21: #{gat_forward.4} parent=0 // pred_fallthru
    _
  // Predicated region
  $region22: #{gat_forward.4} parent=0 // pred_check
    _
  $region23: #{gat_forward.4} parent=0 // pred_check_branch
    %722 = sbr.rel (0) target = $region25
  $region24: #{gat_forward.4} parent=0 // pred_region
    _
  $region25: #{gat_forward.4} parent=0 // pred_fallthru
    _
  // Predicated region
  $region26: #{gat_forward.4} parent=0 // pred_check
    _
  $region27: #{gat_forward.4} parent=0 // pred_check_branch
    %724 = sbr.rel (0) target = $region29
  $region28: #{gat_forward.4} parent=0 // pred_region
    _
  $region29: #{gat_forward.4} parent=0 // pred_fallthru
    _
  // Predicated region
  $region30: #{gat_forward.4} parent=0 // pred_check
    _
  $region31: #{gat_forward.4} parent=0 // pred_check_branch
    %726 = sbr.rel (0) target = $region33
  $region32: #{gat_forward.4} parent=0 // pred_region
    _
  $region33: #{gat_forward.4} parent=0 // pred_fallthru
    _
  // Predicated region
  $region34: #{gat_forward.4} parent=0 // pred_check
    _
  $region35: #{gat_forward.4} parent=0 // pred_check_branch
    %728 = sbr.rel (0) target = $region37
  $region36: #{gat_forward.4} parent=0 // pred_region
    _
  $region37: #{gat_forward.4} parent=0 // pred_fallthru
    _

// kernel: gat_forward.5
$region0: #{gat_forward.5}
  #allocation0 [shape = 'u32[]', space=smem, size = 0x4, offset = 0x4, fixed_abs, tag = 'smem constant byte address 0x4 - core index']
  #allocation1 [shape = 'u32[144,128]{1,0:T(1,128)}', space=vmem, size = 0x12000, scoped, tag = 'internal scratch']
  #allocation2 [shape = 'f32[128,1]{1,0:T(8,128)}', space=vmem, size = 0x10000, scoped, tag = 'scratch operand']
  #allocation3 [shape = 'f32[128,1]{1,0:T(8,128)}', space=vmem, size = 0x10000, scoped, tag = 'scratch operand']
  #allocation4 [shape = 'f32[128,128]{1,0:T(8,128)}', space=vmem, size = 0x10000, scoped, tag = 'scratch operand']
  %s0 = inlined_call_operand.vmem [shape: s8[256,256], index: 0, kind: input, shape index: {}]
  %s1 = inlined_call_operand.vmem [shape: f32[256,1], index: 1, kind: input, shape index: {}]
  %s2 = inlined_call_operand.vmem [shape: f32[1,256], index: 2, kind: input, shape index: {}]
  %s3 = inlined_call_operand.vmem [shape: bf16[256,128], index: 3, kind: input, shape index: {}]
  %s4 = inlined_call_operand.vmem [shape: f32[256,128], index: 4, kind: output, shape index: {}]
  %s5 = sld [smem:[#allocation0]]
  $region98: #{gat_forward.5} parent=0
    _
  %s7 = ssub.s32 1, %s5
  %s8 = scalar_select 0, %s7, %s5
  $region1: #{gat_forward.5} parent=0
    #allocation5 [shape = 'u8[32768]{0}', space=vmem, size = 0x8000, scoped, tag = 'input window, operand 0']
    loop: start=0, step=1, limit=6
    $region2: #{gat_forward.5} parent=1 // loop_pre_header
      _
    $region3: #{gat_forward.5} parent=1 // loop_header
      %s10 = sphi 0, %s14
      %p11 = scmp.ge.s32.totalorder %s10, 6
      %s17 = sphi 0, %s29
      %s18 = sphi 0, %s25
      %s19 = sphi 0, %s17
      %s20 = sphi 0, %s18
      %s21 = sphi 0, %s19
      %s22 = sphi 0, %s20
      %s34 = sphi 0, %s36
      %s37 = sphi 0, %s34
      %s38 = sphi 0, %s37
      %s54 = sphi 0, %s38
      %s60 = sphi 0, %s62
      %s63 = sphi 0, %s60
      %s64 = sphi 0, %s63
      %s80 = sphi 0, %s64
      %s86 = sphi 0, %s88
      %s89 = sphi 0, %s86
      %s90 = sphi 0, %s89
      %s106 = sphi 0, %s90
      %s112 = sphi 0, %s114
      %s115 = sphi 0, %s112
      %s116 = sphi 0, %s115
      %s132 = sphi 0, %s116
      %s138 = sphi 0, %s140
      %s141 = sphi 0, %s138
      %s142 = sphi 0, %s141
      %s158 = sphi 0, %s142
    $region4: #{gat_forward.5} parent=1 // loop_header_branch
      %13 = sbr.rel (%p11) target = $region8
    $region5: #{gat_forward.5} parent=1 // loop_body
      %s15 = ssub.s32 %s10, 1
      %s16 = ssub.s32 %s10, 2
      %s23 = sadd.s32 1, %s18
      %p24 = scmp.ge.s32.totalorder %s23, 2
      %s25 = scalar_select %p24, 0, %s23
      %s26 = sadd.s32 1, %s17
      %s27 = scalar_select %p24, %s26, %s17
      %p28 = scmp.ge.s32.totalorder %s27, 2
      %s29 = scalar_select %p28, 0, %s27
      %s30 = ssub.s32 %s17, %s29
      %s31 = ssub.s32 %s18, %s25
      %s32 = sor.u32 %s30, %s31
      %p33 = scmp.eq.s32.totalorder %s32, 0
      %s35 = sadd.s32 %s34, 1
      %s36 = scalar_select %p33, %s34, %s35
      %p39 = pneg %p33
      %p40 = scmp.eq.s32.totalorder %s10, 3
      %p41 = por %p39, %p40
      %p42 = scmp.ne.s32.totalorder %s34, %s37
      %p43 = scmp.eq.s32.totalorder %s10, 0
      %p44 = por %p42, %p43
      %p45 = scmp.ne.s32.totalorder %s34, %s37
      %p46 = scmp.eq.s32.totalorder %s15, 3
      %p47 = por %p45, %p46
      %p48 = scmp.ne.s32.totalorder %s37, %s38
      %p49 = scmp.eq.s32.totalorder %s15, 0
      %p50 = por %p48, %p49
      %p51 = scmp.ne.s32.totalorder %s37, %s38
      %p52 = scmp.eq.s32.totalorder %s16, 3
      %p53 = por %p51, %p52
      %p55 = scmp.ne.s32.totalorder %s38, %s54
      %p56 = scmp.eq.s32.totalorder %s16, 0
      %p57 = por %p55, %p56
      %s58 = ssub.s32 %s17, %s29
      %p59 = scmp.eq.s32.totalorder %s58, 0
      %s61 = sadd.s32 %s60, 1
      %s62 = scalar_select %p59, %s60, %s61
      %p65 = pneg %p59
      %p66 = scmp.eq.s32.totalorder %s10, 3
      %p67 = por %p65, %p66
      %p68 = scmp.ne.s32.totalorder %s60, %s63
      %p69 = scmp.eq.s32.totalorder %s10, 0
      %p70 = por %p68, %p69
      %p71 = scmp.ne.s32.totalorder %s60, %s63
      %p72 = scmp.eq.s32.totalorder %s15, 3
      %p73 = por %p71, %p72
      %p74 = scmp.ne.s32.totalorder %s63, %s64
      %p75 = scmp.eq.s32.totalorder %s15, 0
      %p76 = por %p74, %p75
      %p77 = scmp.ne.s32.totalorder %s63, %s64
      %p78 = scmp.eq.s32.totalorder %s16, 3
      %p79 = por %p77, %p78
      %p81 = scmp.ne.s32.totalorder %s64, %s80
      %p82 = scmp.eq.s32.totalorder %s16, 0
      %p83 = por %p81, %p82
      %s84 = ssub.s32 %s18, %s25
      %p85 = scmp.eq.s32.totalorder %s84, 0
      %s87 = sadd.s32 %s86, 1
      %s88 = scalar_select %p85, %s86, %s87
      %p91 = pneg %p85
      %p92 = scmp.eq.s32.totalorder %s10, 3
      %p93 = por %p91, %p92
      %p94 = scmp.ne.s32.totalorder %s86, %s89
      %p95 = scmp.eq.s32.totalorder %s10, 0
      %p96 = por %p94, %p95
      %p97 = scmp.ne.s32.totalorder %s86, %s89
      %p98 = scmp.eq.s32.totalorder %s15, 3
      %p99 = por %p97, %p98
      %p100 = scmp.ne.s32.totalorder %s89, %s90
      %p101 = scmp.eq.s32.totalorder %s15, 0
      %p102 = por %p100, %p101
      %p103 = scmp.ne.s32.totalorder %s89, %s90
      %p104 = scmp.eq.s32.totalorder %s16, 3
      %p105 = por %p103, %p104
      %p107 = scmp.ne.s32.totalorder %s90, %s106
      %p108 = scmp.eq.s32.totalorder %s16, 0
      %p109 = por %p107, %p108
      %s110 = ssub.s32 %s18, %s25
      %p111 = scmp.eq.s32.totalorder %s110, 0
      %s113 = sadd.s32 %s112, 1
      %s114 = scalar_select %p111, %s112, %s113
      %p117 = pneg %p111
      %p118 = scmp.eq.s32.totalorder %s10, 3
      %p119 = por %p117, %p118
      %p120 = scmp.ne.s32.totalorder %s112, %s115
      %p121 = scmp.eq.s32.totalorder %s10, 0
      %p122 = por %p120, %p121
      %p123 = scmp.ne.s32.totalorder %s112, %s115
      %p124 = scmp.eq.s32.totalorder %s15, 3
      %p125 = por %p123, %p124
      %p126 = scmp.ne.s32.totalorder %s115, %s116
      %p127 = scmp.eq.s32.totalorder %s15, 0
      %p128 = por %p126, %p127
      %p129 = scmp.ne.s32.totalorder %s115, %s116
      %p130 = scmp.eq.s32.totalorder %s16, 3
      %p131 = por %p129, %p130
      %p133 = scmp.ne.s32.totalorder %s116, %s132
      %p134 = scmp.eq.s32.totalorder %s16, 0
      %p135 = por %p133, %p134
      %s136 = ssub.s32 %s17, %s29
      %p137 = scmp.eq.s32.totalorder %s136, 0
      %s139 = sadd.s32 %s138, 1
      %s140 = scalar_select %p137, %s138, %s139
      %p143 = pneg %p137
      %p144 = scmp.eq.s32.totalorder %s10, 3
      %p145 = por %p143, %p144
      %p146 = scmp.ne.s32.totalorder %s138, %s141
      %p147 = scmp.eq.s32.totalorder %s10, 0
      %p148 = por %p146, %p147
      %p149 = scmp.ne.s32.totalorder %s138, %s141
      %p150 = scmp.eq.s32.totalorder %s15, 3
      %p151 = por %p149, %p150
      %p152 = scmp.ne.s32.totalorder %s141, %s142
      %p153 = scmp.eq.s32.totalorder %s15, 0
      %p154 = por %p152, %p153
      %p155 = scmp.ne.s32.totalorder %s141, %s142
      %p156 = scmp.eq.s32.totalorder %s16, 3
      %p157 = por %p155, %p156
      %p159 = scmp.ne.s32.totalorder %s142, %s158
      %p160 = scmp.eq.s32.totalorder %s16, 0
      %p161 = por %p159, %p160
      %p162 = scmp.le.s32.totalorder 1, %s10
      %p163 = scmp.lt.s32.totalorder %s10, 5
      %p164 = pnand %p162, %p163
      %p165 = pneg %p164
      // Predicated region
      $region9: #{gat_forward.5} parent=5 // pred_check
        _
      $region10: #{gat_forward.5} parent=5 // pred_check_branch
        %167 = sbr.rel (%p164) target = $region12
      $region11: #{gat_forward.5} parent=5 // pred_region
        %s168 = ssub.s32 %s10, 1
      $region12: #{gat_forward.5} parent=5 // pred_fallthru
        _
      %p169 = scmp.lt.s32.totalorder %s10, 4
      // Predicated region
      $region13: #{gat_forward.5} parent=5 // pred_check
        %p170 = pneg %p169
      $region14: #{gat_forward.5} parent=5 // pred_check_branch
        %172 = sbr.rel (%p170) target = $region16
      $region15: #{gat_forward.5} parent=5 // pred_region
        // Predicated region
        $region17: #{gat_forward.5} parent=15 // pred_check
          %p173 = pneg %p44
        $region18: #{gat_forward.5} parent=15 // pred_check_branch
          %175 = sbr.rel (%p173) target = $region20
        $region19: #{gat_forward.5} parent=15 // pred_region
          %s176 = sand.u32 %s34, 1
          %s177 = sand.u32 %s34, 1
          %s178 = smul.addr %s177, 32
          %s179 = scalar_lea.vmem [#allocation5], %s178
          %s180 = smul.u32 16, %s17
          %s181 = smul.addr %s180, 2
          %s182 = sadd.s32 %s18, %s181
          %s183 = smul.addr %s182, 2
          %s184 = scalar_lea.vmem %s0, %s183
          // Predicated region
          $region21: #{gat_forward.5} parent=19 // pred_check
            _
          $region22: #{gat_forward.5} parent=19 // pred_check_branch
            %186 = sbr.rel (0) target = $region24
          $region23: #{gat_forward.5} parent=19 // pred_region
            // Predicated region
            $region25: #{gat_forward.5} parent=23 // pred_check
              _
            $region26: #{gat_forward.5} parent=23 // pred_check_branch
              %188 = sbr.rel target = $region28
            $region27: #{gat_forward.5} parent=23 // pred_region
              // Predicated region
              $region40: #{gat_forward.5} parent=27 // pred_check
                _
              $region41: #{gat_forward.5} parent=27 // pred_check_branch
                %233 = sbr.rel (0) target = $region43
              $region42: #{gat_forward.5} parent=27 // pred_region
                loop: start=0, step=1, limit=1
                $region44: #{gat_forward.5} parent=42 // loop_pre_header
                  _
                $region45: #{gat_forward.5} parent=42 // loop_header
                  %s235 = sphi 0, %s239
                  %p236 = scmp.ge.s32.totalorder %s235, 1
                  %s240 = sphi %s184, %s184
                  %s241 = sphi %s179, %s179
                $region46: #{gat_forward.5} parent=42 // loop_header_branch
                  %238 = sbr.rel (%p236) target = $region50
                $region47: #{gat_forward.5} parent=42 // loop_body
                  _
                $region48: #{gat_forward.5} parent=42 // loop_footer
                  %s239 = sadd.s32 1, %s235
                $region49: #{gat_forward.5} parent=42 // loop_footer_branch
                  %234 = sbr.rel target = $region45
                $region50: #{gat_forward.5} parent=42 // loop_exit
                  _
                loop: start=0, step=1, limit=1
                $region51: #{gat_forward.5} parent=42 // loop_pre_header
                  _
                $region52: #{gat_forward.5} parent=42 // loop_header
                  %s244 = sphi 0, %s248
                  %p245 = scmp.ge.s32.totalorder %s244, 1
                  %s249 = sphi %s184, %s184
                  %s250 = sphi %s179, %s179
                $region53: #{gat_forward.5} parent=42 // loop_header_branch
                  %247 = sbr.rel (%p245) target = $region57
                $region54: #{gat_forward.5} parent=42 // loop_body
                  %v251 = vld [vmem:[%s249] sm:$0x3]
                  %252 = vst [vmem:[%s250] sm:$0x3] %v251
                  %v253 = vld [vmem:[%s249 + $0x4] sm:$0x3]
                  %254 = vst [vmem:[%s250 + $0x2] sm:$0x3] %v253
                  %v255 = vld [vmem:[%s249 + $0x8] sm:$0x3]
                  %256 = vst [vmem:[%s250 + $0x4] sm:$0x3] %v255
                  %v257 = vld [vmem:[%s249 + $0xc] sm:$0x3]
                  %258 = vst [vmem:[%s250 + $0x6] sm:$0x3] %v257
                  %v259 = vld [vmem:[%s249 + $0x10] sm:$0x3]
                  %260 = vst [vmem:[%s250 + $0x8] sm:$0x3] %v259
                  %v261 = vld [vmem:[%s249 + $0x14] sm:$0x3]
                  %262 = vst [vmem:[%s250 + $0xa] sm:$0x3] %v261
                  %v263 = vld [vmem:[%s249 + $0x18] sm:$0x3]
                  %264 = vst [vmem:[%s250 + $0xc] sm:$0x3] %v263
                  %v265 = vld [vmem:[%s249 + $0x1c] sm:$0x3]
                  %266 = vst [vmem:[%s250 + $0xe] sm:$0x3] %v265
                  %v267 = vld [vmem:[%s249 + $0x20] sm:$0x3]
                  %268 = vst [vmem:[%s250 + $0x10] sm:$0x3] %v267
                  %v269 = vld [vmem:[%s249 + $0x24] sm:$0x3]
                  %270 = vst [vmem:[%s250 + $0x12] sm:$0x3] %v269
                  %v271 = vld [vmem:[%s249 + $0x28] sm:$0x3]
                  %272 = vst [vmem:[%s250 + $0x14] sm:$0x3] %v271
                  %v273 = vld [vmem:[%s249 + $0x2c] sm:$0x3]
                  %274 = vst [vmem:[%s250 + $0x16] sm:$0x3] %v273
                  %v275 = vld [vmem:[%s249 + $0x30] sm:$0x3]
                  %276 = vst [vmem:[%s250 + $0x18] sm:$0x3] %v275
                  %v277 = vld [vmem:[%s249 + $0x34] sm:$0x3]
                  %278 = vst [vmem:[%s250 + $0x1a] sm:$0x3] %v277
                  %v279 = vld [vmem:[%s249 + $0x38] sm:$0x3]
                  %280 = vst [vmem:[%s250 + $0x1c] sm:$0x3] %v279
                  %v281 = vld [vmem:[%s249 + $0x3c] sm:$0x3]
                  %282 = vst [vmem:[%s250 + $0x1e] sm:$0x3] %v281
                $region55: #{gat_forward.5} parent=42 // loop_footer
                  %s248 = sadd.s32 1, %s244
                $region56: #{gat_forward.5} parent=42 // loop_footer_branch
                  %243 = sbr.rel target = $region52
                $region57: #{gat_forward.5} parent=42 // loop_exit
                  _
              $region43: #{gat_forward.5} parent=27 // pred_fallthru
                _
            $region28: #{gat_forward.5} parent=23 // pred_fallthru
              _
            // Predicated region
            $region29: #{gat_forward.5} parent=23 // pred_check
              _
            $region30: #{gat_forward.5} parent=23 // pred_check_branch
              %190 = sbr.rel (0) target = $region32
            $region31: #{gat_forward.5} parent=23 // pred_region
              loop: start=0, step=1, limit=1
              $region33: #{gat_forward.5} parent=31 // loop_pre_header
                _
              $region34: #{gat_forward.5} parent=31 // loop_header
                %s193 = sphi 0, %s197
                %p194 = scmp.ge.s32.totalorder %s193, 1
                %s198 = sphi %s184, %s184
                %s199 = sphi %s179, %s179
              $region35: #{gat_forward.5} parent=31 // loop_header_branch
                %196 = sbr.rel (%p194) target = $region39
              $region36: #{gat_forward.5} parent=31 // loop_body
                %v200 = vld [vmem:[%s198] sm:$0x3]
                %201 = vst [vmem:[%s199] sm:$0x3] %v200
                %v202 = vld [vmem:[%s198 + $0x4] sm:$0x3]
                %203 = vst [vmem:[%s199 + $0x2] sm:$0x3] %v202
                %v204 = vld [vmem:[%s198 + $0x8] sm:$0x3]
                %205 = vst [vmem:[%s199 + $0x4] sm:$0x3] %v204
                %v206 = vld [vmem:[%s198 + $0xc] sm:$0x3]
                %207 = vst [vmem:[%s199 + $0x6] sm:$0x3] %v206
                %v208 = vld [vmem:[%s198 + $0x10] sm:$0x3]
                %209 = vst [vmem:[%s199 + $0x8] sm:$0x3] %v208
                %v210 = vld [vmem:[%s198 + $0x14] sm:$0x3]
                %211 = vst [vmem:[%s199 + $0xa] sm:$0x3] %v210
                %v212 = vld [vmem:[%s198 + $0x18] sm:$0x3]
                %213 = vst [vmem:[%s199 + $0xc] sm:$0x3] %v212
                %v214 = vld [vmem:[%s198 + $0x1c] sm:$0x3]
                %215 = vst [vmem:[%s199 + $0xe] sm:$0x3] %v214
                %v216 = vld [vmem:[%s198 + $0x20] sm:$0x3]
                %217 = vst [vmem:[%s199 + $0x10] sm:$0x3] %v216
                %v218 = vld [vmem:[%s198 + $0x24] sm:$0x3]
                %219 = vst [vmem:[%s199 + $0x12] sm:$0x3] %v218
                %v220 = vld [vmem:[%s198 + $0x28] sm:$0x3]
                %221 = vst [vmem:[%s199 + $0x14] sm:$0x3] %v220
                %v222 = vld [vmem:[%s198 + $0x2c] sm:$0x3]
                %223 = vst [vmem:[%s199 + $0x16] sm:$0x3] %v222
                %v224 = vld [vmem:[%s198 + $0x30] sm:$0x3]
                %225 = vst [vmem:[%s199 + $0x18] sm:$0x3] %v224
                %v226 = vld [vmem:[%s198 + $0x34] sm:$0x3]
                %227 = vst [vmem:[%s199 + $0x1a] sm:$0x3] %v226
                %v228 = vld [vmem:[%s198 + $0x38] sm:$0x3]
                %229 = vst [vmem:[%s199 + $0x1c] sm:$0x3] %v228
                %v230 = vld [vmem:[%s198 + $0x3c] sm:$0x3]
                %231 = vst [vmem:[%s199 + $0x1e] sm:$0x3] %v230
              $region37: #{gat_forward.5} parent=31 // loop_footer
                %s197 = sadd.s32 1, %s193
              $region38: #{gat_forward.5} parent=31 // loop_footer_branch
                %192 = sbr.rel target = $region34
              $region39: #{gat_forward.5} parent=31 // loop_exit
                _
            $region32: #{gat_forward.5} parent=23 // pred_fallthru
              _
          $region24: #{gat_forward.5} parent=19 // pred_fallthru
            _
          %283 = vnop
        $region20: #{gat_forward.5} parent=15 // pred_fallthru
          _
        // Predicated region
        $region58: #{gat_forward.5} parent=15 // pred_check
          %p284 = pneg %p70
        $region59: #{gat_forward.5} parent=15 // pred_check_branch
          %286 = sbr.rel (%p284) target = $region61
        $region60: #{gat_forward.5} parent=15 // pred_region
          %s287 = smul.u32 16, %s17
          %p288 = scmp.lt.s32.totalorder %s287, 31
          %s289 = scalar_select %p288, %s287, 31
          %s290 = smul.addr %s289, 8
          %s291 = scalar_lea.vmem %s1, %s290
          %s292 = smul.u32 16, %s17
        $region61: #{gat_forward.5} parent=15 // pred_fallthru
          _
        // Predicated region
        $region62: #{gat_forward.5} parent=15 // pred_check
          %p293 = pneg %p96
        $region63: #{gat_forward.5} parent=15 // pred_check_branch
          %295 = sbr.rel (%p293) target = $region65
        $region64: #{gat_forward.5} parent=15 // pred_region
          %p296 = scmp.lt.s32.totalorder %s18, 1
          %s297 = scalar_select %p296, %s18, 1
          %s298 = scalar_lea.vmem %s2, %s297
        $region65: #{gat_forward.5} parent=15 // pred_fallthru
          _
        // Predicated region
        $region66: #{gat_forward.5} parent=15 // pred_check
          %p299 = pneg %p122
        $region67: #{gat_forward.5} parent=15 // pred_check_branch
          %301 = sbr.rel (%p299) target = $region69
        $region68: #{gat_forward.5} parent=15 // pred_region
          %s302 = smul.u32 16, %s18
          %p303 = scmp.lt.s32.totalorder %s302, 31
          %s304 = scalar_select %p303, %s302, 31
          %s305 = smul.addr %s304, 4
          %s306 = scalar_lea.vmem %s3, %s305
          %s307 = smul.u32 16, %s18
        $region69: #{gat_forward.5} parent=15 // pred_fallthru
          _
      $region16: #{gat_forward.5} parent=5 // pred_fallthru
        _
      %p308 = scmp.le.s32.totalorder 1, %s10
      %p309 = scmp.lt.s32.totalorder %s10, 5
      %p310 = pnand %p308, %p309
      %p311 = pneg %p310
      // Predicated region
      $region70: #{gat_forward.5} parent=5 // pred_check
        _
      $region71: #{gat_forward.5} parent=5 // pred_check_branch
        %313 = sbr.rel (%p310) target = $region73
      $region72: #{gat_forward.5} parent=5 // pred_region
        %s314 = ssub.s32 %s10, 1
        %s315 = sand.u32 %s37, 1
        %s316 = sand.u32 %s37, 1
        %s317 = smul.addr %s316, 32
        %s318 = scalar_lea.vmem [#allocation5], %s317
        // Predicated region
        $region74: #{gat_forward.5} parent=72 // pred_check
          %p319 = pneg %p50
        $region75: #{gat_forward.5} parent=72 // pred_check_branch
          %321 = sbr.rel (%p319) target = $region77
        $region76: #{gat_forward.5} parent=72 // pred_region
          _
        $region77: #{gat_forward.5} parent=72 // pred_fallthru
          _
        %s322 = sand.u32 %s37, 1
        %s323 = sand.u32 %s37, 1
        %s324 = smul.addr %s323, 32
        %s325 = scalar_lea.vmem [#allocation5], %s324
        %p326 = pneg %p50
        %p327 = pneg %p47
        %s328 = smul.u32 16, %s19
        %p329 = scmp.lt.s32.totalorder %s328, 31
        %s330 = scalar_select %p329, %s328, 31
        %s331 = smul.addr %s330, 8
        %s332 = scalar_lea.vmem %s1, %s331
        %p333 = pneg %p76
        %p334 = pneg %p73
        %p335 = scmp.lt.s32.totalorder %s20, 1
        %s336 = scalar_select %p335, %s20, 1
        %s337 = scalar_lea.vmem %s2, %s336
        %p338 = pneg %p102
        %p339 = pneg %p99
        %s340 = smul.u32 16, %s20
        %p341 = scmp.lt.s32.totalorder %s340, 31
        %s342 = scalar_select %p341, %s340, 31
        %s343 = smul.addr %s342, 4
        %s344 = scalar_lea.vmem %s3, %s343
        %p345 = pneg %p128
        %p346 = pneg %p125
        %p347 = pneg %p154
        %p348 = pneg %p151
        %s349 = smul.u32 16, %s19
        %p350 = scmp.lt.s32.totalorder %s349, 31
        %s351 = scalar_select %p350, %s349, 31
        %s352 = smul.addr %s351, 8
        %s353 = scalar_lea.vmem %s4, %s352
        %s354 = smul.u32 16, %s19
        %s355 = smul.u32 16, %s19
        %p356 = scmp.lt.s32.totalorder %s355, 31
        %s357 = scalar_select %p356, %s355, 31
        %s358 = smul.addr %s357, 8
        %s359 = scalar_lea.vmem %s1, %s358
        %s360 = smul.u32 16, %s19
        %p361 = scmp.lt.s32.totalorder %s20, 1
        %s362 = scalar_select %p361, %s20, 1
        %s363 = scalar_lea.vmem %s2, %s362
        %s364 = smul.u32 16, %s20
        %p365 = scmp.lt.s32.totalorder %s364, 31
        %s366 = scalar_select %p365, %s364, 31
        %s367 = smul.addr %s366, 4
        %s368 = scalar_lea.vmem %s3, %s367
        %s369 = smul.u32 16, %s20
        %s370 = smul.u32 16, %s19
        %p371 = scmp.lt.s32.totalorder %s370, 31
        %s372 = scalar_select %p371, %s370, 31
        %s373 = smul.addr %s372, 8
        %s374 = scalar_lea.vmem %s4, %s373
        %s375 = smul.u32 16, %s19
        %p379 = scmp.eq.s32.totalorder %s20, 0
        // Predicated region
        $region78: #{gat_forward.5} parent=72 // pred_check
          %p380 = pneg %p379
        $region79: #{gat_forward.5} parent=72 // pred_check_branch
          %382 = sbr.rel (%p380) target = $region81
        $region80: #{gat_forward.5} parent=72 // pred_region
          %vm383 = vcmask 7168
          %384 = vst.msk [vmem:[#allocation2] sm:$0xff] %vm383, -1e+30
          %385 = vst.msk [vmem:[#allocation2 + $0x8] sm:$0xff] %vm383, -1e+30
          %386 = vst.msk [vmem:[#allocation2 + $0x10] sm:$0xff] %vm383, -1e+30
          %387 = vst.msk [vmem:[#allocation2 + $0x18] sm:$0xff] %vm383, -1e+30
          %388 = vst.msk [vmem:[#allocation2 + $0x20] sm:$0xff] %vm383, -1e+30
          %389 = vst.msk [vmem:[#allocation2 + $0x28] sm:$0xff] %vm383, -1e+30
          %390 = vst.msk [vmem:[#allocation2 + $0x30] sm:$0xff] %vm383, -1e+30
          %391 = vst.msk [vmem:[#allocation2 + $0x38] sm:$0xff] %vm383, -1e+30
          %392 = vst.msk [vmem:[#allocation2 + $0x40] sm:$0xff] %vm383, -1e+30
          %393 = vst.msk [vmem:[#allocation2 + $0x48] sm:$0xff] %vm383, -1e+30
          %394 = vst.msk [vmem:[#allocation2 + $0x50] sm:$0xff] %vm383, -1e+30
          %395 = vst.msk [vmem:[#allocation2 + $0x58] sm:$0xff] %vm383, -1e+30
          %396 = vst.msk [vmem:[#allocation2 + $0x60] sm:$0xff] %vm383, -1e+30
          %397 = vst.msk [vmem:[#allocation2 + $0x68] sm:$0xff] %vm383, -1e+30
          %398 = vst.msk [vmem:[#allocation2 + $0x70] sm:$0xff] %vm383, -1e+30
          %399 = vst.msk [vmem:[#allocation2 + $0x78] sm:$0xff] %vm383, -1e+30
          %400 = vst.msk [vmem:[#allocation3] sm:$0xff] %vm383, 0.0
          %401 = vst.msk [vmem:[#allocation3 + $0x8] sm:$0xff] %vm383, 0.0
          %402 = vst.msk [vmem:[#allocation3 + $0x10] sm:$0xff] %vm383, 0.0
          %403 = vst.msk [vmem:[#allocation3 + $0x18] sm:$0xff] %vm383, 0.0
          %404 = vst.msk [vmem:[#allocation3 + $0x20] sm:$0xff] %vm383, 0.0
          %405 = vst.msk [vmem:[#allocation3 + $0x28] sm:$0xff] %vm383, 0.0
          %406 = vst.msk [vmem:[#allocation3 + $0x30] sm:$0xff] %vm383, 0.0
          %407 = vst.msk [vmem:[#allocation3 + $0x38] sm:$0xff] %vm383, 0.0
          %408 = vst.msk [vmem:[#allocation3 + $0x40] sm:$0xff] %vm383, 0.0
          %409 = vst.msk [vmem:[#allocation3 + $0x48] sm:$0xff] %vm383, 0.0
          %410 = vst.msk [vmem:[#allocation3 + $0x50] sm:$0xff] %vm383, 0.0
          %411 = vst.msk [vmem:[#allocation3 + $0x58] sm:$0xff] %vm383, 0.0
          %412 = vst.msk [vmem:[#allocation3 + $0x60] sm:$0xff] %vm383, 0.0
          %413 = vst.msk [vmem:[#allocation3 + $0x68] sm:$0xff] %vm383, 0.0
          %414 = vst.msk [vmem:[#allocation3 + $0x70] sm:$0xff] %vm383, 0.0
          %415 = vst.msk [vmem:[#allocation3 + $0x78] sm:$0xff] %vm383, 0.0
          %416 = vst [vmem:[#allocation4] sm:$0xff] 0.0
          %417 = vst [vmem:[#allocation4 + $0x8] sm:$0xff] 0.0
          %418 = vst [vmem:[#allocation4 + $0x10] sm:$0xff] 0.0
          %419 = vst [vmem:[#allocation4 + $0x18] sm:$0xff] 0.0
          %420 = vst [vmem:[#allocation4 + $0x20] sm:$0xff] 0.0
          %421 = vst [vmem:[#allocation4 + $0x28] sm:$0xff] 0.0
          %422 = vst [vmem:[#allocation4 + $0x30] sm:$0xff] 0.0
          %423 = vst [vmem:[#allocation4 + $0x38] sm:$0xff] 0.0
          %424 = vst [vmem:[#allocation4 + $0x40] sm:$0xff] 0.0
          %425 = vst [vmem:[#allocation4 + $0x48] sm:$0xff] 0.0
          %426 = vst [vmem:[#allocation4 + $0x50] sm:$0xff] 0.0
          %427 = vst [vmem:[#allocation4 + $0x58] sm:$0xff] 0.0
          %428 = vst [vmem:[#allocation4 + $0x60] sm:$0xff] 0.0
          %429 = vst [vmem:[#allocation4 + $0x68] sm:$0xff] 0.0
          %430 = vst [vmem:[#allocation4 + $0x70] sm:$0xff] 0.0
          %431 = vst [vmem:[#allocation4 + $0x78] sm:$0xff] 0.0
        $region81: #{gat_forward.5} parent=72 // pred_fallthru
          _
        %v432 = vld [vmem:[%s359] sm:$0xff]
        %v433 = vld [vmem:[%s359 + $0x8] sm:$0xff]
        %v434 = vld [vmem:[%s359 + $0x10] sm:$0xff]
        %v435 = vld [vmem:[%s359 + $0x18] sm:$0xff]
        %v436 = vld [vmem:[%s359 + $0x20] sm:$0xff]
        %v437 = vld [vmem:[%s359 + $0x28] sm:$0xff]
        %v438 = vld [vmem:[%s359 + $0x30] sm:$0xff]
        %v439 = vld [vmem:[%s359 + $0x38] sm:$0xff]
        %v440 = vld [vmem:[%s359 + $0x40] sm:$0xff]
        %v441 = vld [vmem:[%s359 + $0x48] sm:$0xff]
        %v442 = vld [vmem:[%s359 + $0x50] sm:$0xff]
        %v443 = vld [vmem:[%s359 + $0x58] sm:$0xff]
        %v444 = vld [vmem:[%s359 + $0x60] sm:$0xff]
        %v445 = vld [vmem:[%s359 + $0x68] sm:$0xff]
        %v446 = vld [vmem:[%s359 + $0x70] sm:$0xff]
        %v447 = vld [vmem:[%s359 + $0x78] sm:$0xff]
        %v448 = vld [vmem:[%s363] sm:$0x1]
        %450 = vset.pattern.permute.xlu0 0
        %451 = vperm.xlu0 %450, %v432
        %v452 = vpop.permute.xlu0 %451
        %455 = vset.pattern.permute.xlu0 0
        %456 = vperm.xlu0 %455, %v433
        %v457 = vpop.permute.xlu0 %456
        %460 = vset.pattern.permute.xlu0 0
        %461 = vperm.xlu0 %460, %v434
        %v462 = vpop.permute.xlu0 %461
        %465 = vset.pattern.permute.xlu0 0
        %466 = vperm.xlu0 %465, %v435
        %v467 = vpop.permute.xlu0 %466
        %470 = vset.pattern.permute.xlu0 0
        %471 = vperm.xlu0 %470, %v436
        %v472 = vpop.permute.xlu0 %471
        %475 = vset.pattern.permute.xlu0 0
        %476 = vperm.xlu0 %475, %v437
        %v477 = vpop.permute.xlu0 %476
        %480 = vset.pattern.permute.xlu0 0
        %481 = vperm.xlu0 %480, %v438
        %v482 = vpop.permute.xlu0 %481
        %485 = vset.pattern.permute.xlu0 0
        %486 = vperm.xlu0 %485, %v439
        %v487 = vpop.permute.xlu0 %486
        %490 = vset.pattern.permute.xlu0 0
        %491 = vperm.xlu0 %490, %v440
        %v492 = vpop.permute.xlu0 %491
        %495 = vset.pattern.permute.xlu0 0
        %496 = vperm.xlu0 %495, %v441
        %v497 = vpop.permute.xlu0 %496
        %500 = vset.pattern.permute.xlu0 0
        %501 = vperm.xlu0 %500, %v442
        %v502 = vpop.permute.xlu0 %501
        %505 = vset.pattern.permute.xlu0 0
        %506 = vperm.xlu0 %505, %v443
        %v507 = vpop.permute.xlu0 %506
        %510 = vset.pattern.permute.xlu0 0
        %511 = vperm.xlu0 %510, %v444
        %v512 = vpop.permute.xlu0 %511
        %515 = vset.pattern.permute.xlu0 0
        %516 = vperm.xlu0 %515, %v445
        %v517 = vpop.permute.xlu0 %516
        %520 = vset.pattern.permute.xlu0 0
        %521 = vperm.xlu0 %520, %v446
        %v522 = vpop.permute.xlu0 %521
        %525 = vset.pattern.permute.xlu0 0
        %526 = vperm.xlu0 %525, %v447
        %v527 = vpop.permute.xlu0 %526
        %v530 = vlaneseq
        %v531 = vshrl.u32 %v530, 7
        %v532 = vsub.s32 0, %v531
        %v533 = vrot.slane %v448, %v532
        %v535 = vadd.f32 %v452, %v533
        %v536 = vadd.f32 %v457, %v533
        %v537 = vadd.f32 %v462, %v533
        %v538 = vadd.f32 %v467, %v533
        %v539 = vadd.f32 %v472, %v533
        %v540 = vadd.f32 %v477, %v533
        %v541 = vadd.f32 %v482, %v533
        %v542 = vadd.f32 %v487, %v533
        %v543 = vadd.f32 %v492, %v533
        %v544 = vadd.f32 %v497, %v533
        %v545 = vadd.f32 %v502, %v533
        %v546 = vadd.f32 %v507, %v533
        %v547 = vadd.f32 %v512, %v533
        %v548 = vadd.f32 %v517, %v533
        %v549 = vadd.f32 %v522, %v533
        %v550 = vadd.f32 %v527, %v533
        %v551 = vmul.f32 %v535, 0.01
        %v552 = vmul.f32 %v536, 0.01
        %v553 = vmul.f32 %v537, 0.01
        %v554 = vmul.f32 %v538, 0.01
        %v555 = vmul.f32 %v539, 0.01
        %v556 = vmul.f32 %v540, 0.01
        %v557 = vmul.f32 %v541, 0.01
        %v558 = vmul.f32 %v542, 0.01
        %v559 = vmul.f32 %v543, 0.01
        %v560 = vmul.f32 %v544, 0.01
        %v561 = vmul.f32 %v545, 0.01
        %v562 = vmul.f32 %v546, 0.01
        %v563 = vmul.f32 %v547, 0.01
        %v564 = vmul.f32 %v548, 0.01
        %v565 = vmul.f32 %v549, 0.01
        %v566 = vmul.f32 %v550, 0.01
        %v567 = vmax.f32 %v535, %v551
        %v568 = vmax.f32 %v536, %v552
        %v569 = vmax.f32 %v537, %v553
        %v570 = vmax.f32 %v538, %v554
        %v571 = vmax.f32 %v539, %v555
        %v572 = vmax.f32 %v540, %v556
        %v573 = vmax.f32 %v541, %v557
        %v574 = vmax.f32 %v542, %v558
        %v575 = vmax.f32 %v543, %v559
        %v576 = vmax.f32 %v544, %v560
        %v577 = vmax.f32 %v545, %v561
        %v578 = vmax.f32 %v546, %v562
        %v579 = vmax.f32 %v547, %v563
        %v580 = vmax.f32 %v548, %v564
        %v581 = vmax.f32 %v549, %v565
        %v582 = vmax.f32 %v550, %v566
        %v583 = vld [vmem:[%s318] sm:$0x3]
        %v584 = vld [vmem:[%s318 + $0x2] sm:$0x3]
        %v585 = vld [vmem:[%s318 + $0x4] sm:$0x3]
        %v586 = vld [vmem:[%s318 + $0x6] sm:$0x3]
        %v587 = vld [vmem:[%s318 + $0x8] sm:$0x3]
        %v588 = vld [vmem:[%s318 + $0xa] sm:$0x3]
        %v589 = vld [vmem:[%s318 + $0xc] sm:$0x3]
        %v590 = vld [vmem:[%s318 + $0xe] sm:$0x3]
        %v591 = vld [vmem:[%s318 + $0x10] sm:$0x3]
        %v592 = vld [vmem:[%s318 + $0x12] sm:$0x3]
        %v593 = vld [vmem:[%s318 + $0x14] sm:$0x3]
        %v594 = vld [vmem:[%s318 + $0x16] sm:$0x3]
        %v595 = vld [vmem:[%s318 + $0x18] sm:$0x3]
        %v596 = vld [vmem:[%s318 + $0x1a] sm:$0x3]
        %v597 = vld [vmem:[%s318 + $0x1c] sm:$0x3]
        %v598 = vld [vmem:[%s318 + $0x1e] sm:$0x3]
        %vm599 = vnez %v583
        %vm600 = vnez %v584
        %vm601 = vnez %v585
        %vm602 = vnez %v586
        %vm603 = vnez %v587
        %vm604 = vnez %v588
        %vm605 = vnez %v589
        %vm606 = vnez %v590
        %vm607 = vnez %v591
        %vm608 = vnez %v592
        %vm609 = vnez %v593
        %vm610 = vnez %v594
        %vm611 = vnez %v595
        %vm612 = vnez %v596
        %vm613 = vnez %v597
        %vm614 = vnez %v598
        %v615 = vsel %vm599, 16843009, 0
        %v616 = vsel %vm600, 16843009, 0
        %v617 = vsel %vm601, 16843009, 0
        %v618 = vsel %vm602, 16843009, 0
        %v619 = vsel %vm603, 16843009, 0
        %v620 = vsel %vm604, 16843009, 0
        %v621 = vsel %vm605, 16843009, 0
        %v622 = vsel %vm606, 16843009, 0
        %v623 = vsel %vm607, 16843009, 0
        %v624 = vsel %vm608, 16843009, 0
        %v625 = vsel %vm609, 16843009, 0
        %v626 = vsel %vm610, 16843009, 0
        %v627 = vsel %vm611, 16843009, 0
        %v628 = vsel %vm612, 16843009, 0
        %v629 = vsel %vm613, 16843009, 0
        %v630 = vsel %vm614, 16843009, 0
        %v631 = vunpack.c.0.s8 %v615
        %v632 = vunpack.c.0.s8 %v616
        %v633 = vunpack.c.0.s8 %v617
        %v634 = vunpack.c.0.s8 %v618
        %v635 = vunpack.c.0.s8 %v619
        %v636 = vunpack.c.0.s8 %v620
        %v637 = vunpack.c.0.s8 %v621
        %v638 = vunpack.c.0.s8 %v622
        %v639 = vunpack.c.0.s8 %v623
        %v640 = vunpack.c.0.s8 %v624
        %v641 = vunpack.c.0.s8 %v625
        %v642 = vunpack.c.0.s8 %v626
        %v643 = vunpack.c.0.s8 %v627
        %v644 = vunpack.c.0.s8 %v628
        %v645 = vunpack.c.0.s8 %v629
        %v646 = vunpack.c.0.s8 %v630
        %vm647 = vcmp.ne.s32.totalorder %v631, 0
        %vm648 = vcmp.ne.s32.totalorder %v632, 0
        %vm649 = vcmp.ne.s32.totalorder %v633, 0
        %vm650 = vcmp.ne.s32.totalorder %v634, 0
        %vm651 = vcmp.ne.s32.totalorder %v635, 0
        %vm652 = vcmp.ne.s32.totalorder %v636, 0
        %vm653 = vcmp.ne.s32.totalorder %v637, 0
        %vm654 = vcmp.ne.s32.totalorder %v638, 0
        %vm655 = vcmp.ne.s32.totalorder %v639, 0
        %vm656 = vcmp.ne.s32.totalorder %v640, 0
        %vm657 = vcmp.ne.s32.totalorder %v641, 0
        %vm658 = vcmp.ne.s32.totalorder %v642, 0
        %vm659 = vcmp.ne.s32.totalorder %v643, 0
        %vm660 = vcmp.ne.s32.totalorder %v644, 0
        %vm661 = vcmp.ne.s32.totalorder %v645, 0
        %vm662 = vcmp.ne.s32.totalorder %v646, 0
        %v663 = vsel %vm647, %v567, -1e+30
        %v664 = vsel %vm648, %v568, -1e+30
        %v665 = vsel %vm649, %v569, -1e+30
        %v666 = vsel %vm650, %v570, -1e+30
        %v667 = vsel %vm651, %v571, -1e+30
        %v668 = vsel %vm652, %v572, -1e+30
        %v669 = vsel %vm653, %v573, -1e+30
        %v670 = vsel %vm654, %v574, -1e+30
        %v671 = vsel %vm655, %v575, -1e+30
        %v672 = vsel %vm656, %v576, -1e+30
        %v673 = vsel %vm657, %v577, -1e+30
        %v674 = vsel %vm658, %v578, -1e+30
        %v675 = vsel %vm659, %v579, -1e+30
        %v676 = vsel %vm660, %v580, -1e+30
        %v677 = vsel %vm661, %v581, -1e+30
        %v678 = vsel %vm662, %v582, -1e+30
        %v679 = vld [vmem:[#allocation2] sm:$0xff]
        %v680 = vld [vmem:[#allocation2 + $0x8] sm:$0xff]
        %v681 = vld [vmem:[#allocation2 + $0x10] sm:$0xff]
        %v682 = vld [vmem:[#allocation2 + $0x18] sm:$0xff]
        %v683 = vld [vmem:[#allocation2 + $0x20] sm:$0xff]
        %v684 = vld [vmem:[#allocation2 + $0x28] sm:$0xff]
        %v685 = vld [vmem:[#allocation2 + $0x30] sm:$0xff]
        %v686 = vld [vmem:[#allocation2 + $0x38] sm:$0xff]
        %v687 = vld [vmem:[#allocation2 + $0x40] sm:$0xff]
        %v688 = vld [vmem:[#allocation2 + $0x48] sm:$0xff]
        %v689 = vld [vmem:[#allocation2 + $0x50] sm:$0xff]
        %v690 = vld [vmem:[#allocation2 + $0x58] sm:$0xff]
        %v691 = vld [vmem:[#allocation2 + $0x60] sm:$0xff]
        %v692 = vld [vmem:[#allocation2 + $0x68] sm:$0xff]
        %v693 = vld [vmem:[#allocation2 + $0x70] sm:$0xff]
        %v694 = vld [vmem:[#allocation2 + $0x78] sm:$0xff]
        %695 = vmax.xlane.f32.xlu0 %v663
        %v696 = vpop.xlane.xlu0 %695
        %697 = vmax.xlane.f32.xlu0 %v664
        %v698 = vpop.xlane.xlu0 %697
        %699 = vmax.xlane.f32.xlu0 %v665
        %v700 = vpop.xlane.xlu0 %699
        %701 = vmax.xlane.f32.xlu0 %v666
        %v702 = vpop.xlane.xlu0 %701
        %703 = vmax.xlane.f32.xlu0 %v667
        %v704 = vpop.xlane.xlu0 %703
        %705 = vmax.xlane.f32.xlu0 %v668
        %v706 = vpop.xlane.xlu0 %705
        %707 = vmax.xlane.f32.xlu0 %v669
        %v708 = vpop.xlane.xlu0 %707
        %709 = vmax.xlane.f32.xlu0 %v670
        %v710 = vpop.xlane.xlu0 %709
        %711 = vmax.xlane.f32.xlu0 %v671
        %v712 = vpop.xlane.xlu0 %711
        %713 = vmax.xlane.f32.xlu0 %v672
        %v714 = vpop.xlane.xlu0 %713
        %715 = vmax.xlane.f32.xlu0 %v673
        %v716 = vpop.xlane.xlu0 %715
        %717 = vmax.xlane.f32.xlu0 %v674
        %v718 = vpop.xlane.xlu0 %717
        %719 = vmax.xlane.f32.xlu0 %v675
        %v720 = vpop.xlane.xlu0 %719
        %721 = vmax.xlane.f32.xlu0 %v676
        %v722 = vpop.xlane.xlu0 %721
        %723 = vmax.xlane.f32.xlu0 %v677
        %v724 = vpop.xlane.xlu0 %723
        %725 = vmax.xlane.f32.xlu0 %v678
        %v726 = vpop.xlane.xlu0 %725
        %v727 = vmax.f32 %v679, %v696
        %v728 = vmax.f32 %v680, %v698
        %v729 = vmax.f32 %v681, %v700
        %v730 = vmax.f32 %v682, %v702
        %v731 = vmax.f32 %v683, %v704
        %v732 = vmax.f32 %v684, %v706
        %v733 = vmax.f32 %v685, %v708
        %v734 = vmax.f32 %v686, %v710
        %v735 = vmax.f32 %v687, %v712
        %v736 = vmax.f32 %v688, %v714
        %v737 = vmax.f32 %v689, %v716
        %v738 = vmax.f32 %v690, %v718
        %v739 = vmax.f32 %v691, %v720
        %v740 = vmax.f32 %v692, %v722
        %v741 = vmax.f32 %v693, %v724
        %v742 = vmax.f32 %v694, %v726
        %v743 = vsub.f32 %v679, %v727
        %v744 = vsub.f32 %v680, %v728
        %v745 = vsub.f32 %v681, %v729
        %v746 = vsub.f32 %v682, %v730
        %v747 = vsub.f32 %v683, %v731
        %v748 = vsub.f32 %v684, %v732
        %v749 = vsub.f32 %v685, %v733
        %v750 = vsub.f32 %v686, %v734
        %v751 = vsub.f32 %v687, %v735
        %v752 = vsub.f32 %v688, %v736
        %v753 = vsub.f32 %v689, %v737
        %v754 = vsub.f32 %v690, %v738
        %v755 = vsub.f32 %v691, %v739
        %v756 = vsub.f32 %v692, %v740
        %v757 = vsub.f32 %v693, %v741
        %v758 = vsub.f32 %v694, %v742
        %v759 = vmul.f32 %v743, 1.442695
        %v760 = vpow.pop %v759
        %v761 = vmul.f32 %v744, 1.442695
        %v762 = vpow.pop %v761
        %v763 = vmul.f32 %v745, 1.442695
        %v764 = vpow.pop %v763
        %v765 = vmul.f32 %v746, 1.442695
        %v766 = vpow.pop %v765
        %v767 = vmul.f32 %v747, 1.442695
        %v768 = vpow.pop %v767
        %v769 = vmul.f32 %v748, 1.442695
        %v770 = vpow.pop %v769
        %v771 = vmul.f32 %v749, 1.442695
        %v772 = vpow.pop %v771
        %v773 = vmul.f32 %v750, 1.442695
        %v774 = vpow.pop %v773
        %v775 = vmul.f32 %v751, 1.442695
        %v776 = vpow.pop %v775
        %v777 = vmul.f32 %v752, 1.442695
        %v778 = vpow.pop %v777
        %v779 = vmul.f32 %v753, 1.442695
        %v780 = vpow.pop %v779
        %v781 = vmul.f32 %v754, 1.442695
        %v782 = vpow.pop %v781
        %v783 = vmul.f32 %v755, 1.442695
        %v784 = vpow.pop %v783
        %v785 = vmul.f32 %v756, 1.442695
        %v786 = vpow.pop %v785
        %v787 = vmul.f32 %v757, 1.442695
        %v788 = vpow.pop %v787
        %v789 = vmul.f32 %v758, 1.442695
        %v790 = vpow.pop %v789
        %792 = vset.pattern.permute.xlu0 0
        %793 = vperm.xlu0 %792, %v727
        %v794 = vpop.permute.xlu0 %793
        %797 = vset.pattern.permute.xlu0 0
        %798 = vperm.xlu0 %797, %v728
        %v799 = vpop.permute.xlu0 %798
        %802 = vset.pattern.permute.xlu0 0
        %803 = vperm.xlu0 %802, %v729
        %v804 = vpop.permute.xlu0 %803
        %807 = vset.pattern.permute.xlu0 0
        %808 = vperm.xlu0 %807, %v730
        %v809 = vpop.permute.xlu0 %808
        %812 = vset.pattern.permute.xlu0 0
        %813 = vperm.xlu0 %812, %v731
        %v814 = vpop.permute.xlu0 %813
        %817 = vset.pattern.permute.xlu0 0
        %818 = vperm.xlu0 %817, %v732
        %v819 = vpop.permute.xlu0 %818
        %822 = vset.pattern.permute.xlu0 0
        %823 = vperm.xlu0 %822, %v733
        %v824 = vpop.permute.xlu0 %823
        %827 = vset.pattern.permute.xlu0 0
        %828 = vperm.xlu0 %827, %v734
        %v829 = vpop.permute.xlu0 %828
        %832 = vset.pattern.permute.xlu0 0
        %833 = vperm.xlu0 %832, %v735
        %v834 = vpop.permute.xlu0 %833
        %837 = vset.pattern.permute.xlu0 0
        %838 = vperm.xlu0 %837, %v736
        %v839 = vpop.permute.xlu0 %838
        %842 = vset.pattern.permute.xlu0 0
        %843 = vperm.xlu0 %842, %v737
        %v844 = vpop.permute.xlu0 %843
        %847 = vset.pattern.permute.xlu0 0
        %848 = vperm.xlu0 %847, %v738
        %v849 = vpop.permute.xlu0 %848
        %852 = vset.pattern.permute.xlu0 0
        %853 = vperm.xlu0 %852, %v739
        %v854 = vpop.permute.xlu0 %853
        %857 = vset.pattern.permute.xlu0 0
        %858 = vperm.xlu0 %857, %v740
        %v859 = vpop.permute.xlu0 %858
        %862 = vset.pattern.permute.xlu0 0
        %863 = vperm.xlu0 %862, %v741
        %v864 = vpop.permute.xlu0 %863
        %867 = vset.pattern.permute.xlu0 0
        %868 = vperm.xlu0 %867, %v742
        %v869 = vpop.permute.xlu0 %868
        %v871 = vsub.f32 %v663, %v794
        %v872 = vsub.f32 %v664, %v799
        %v873 = vsub.f32 %v665, %v804
        %v874 = vsub.f32 %v666, %v809
        %v875 = vsub.f32 %v667, %v814
        %v876 = vsub.f32 %v668, %v819
        %v877 = vsub.f32 %v669, %v824
        %v878 = vsub.f32 %v670, %v829
        %v879 = vsub.f32 %v671, %v834
        %v880 = vsub.f32 %v672, %v839
        %v881 = vsub.f32 %v673, %v844
        %v882 = vsub.f32 %v674, %v849
        %v883 = vsub.f32 %v675, %v854
        %v884 = vsub.f32 %v676, %v859
        %v885 = vsub.f32 %v677, %v864
        %v886 = vsub.f32 %v678, %v869
        %v887 = vmul.f32 %v871, 1.442695
        %v888 = vpow.pop %v887
        %v889 = vmul.f32 %v872, 1.442695
        %v890 = vpow.pop %v889
        %v891 = vmul.f32 %v873, 1.442695
        %v892 = vpow.pop %v891
        %v893 = vmul.f32 %v874, 1.442695
        %v894 = vpow.pop %v893
        %v895 = vmul.f32 %v875, 1.442695
        %v896 = vpow.pop %v895
        %v897 = vmul.f32 %v876, 1.442695
        %v898 = vpow.pop %v897
        %v899 = vmul.f32 %v877, 1.442695
        %v900 = vpow.pop %v899
        %v901 = vmul.f32 %v878, 1.442695
        %v902 = vpow.pop %v901
        %v903 = vmul.f32 %v879, 1.442695
        %v904 = vpow.pop %v903
        %v905 = vmul.f32 %v880, 1.442695
        %v906 = vpow.pop %v905
        %v907 = vmul.f32 %v881, 1.442695
        %v908 = vpow.pop %v907
        %v909 = vmul.f32 %v882, 1.442695
        %v910 = vpow.pop %v909
        %v911 = vmul.f32 %v883, 1.442695
        %v912 = vpow.pop %v911
        %v913 = vmul.f32 %v884, 1.442695
        %v914 = vpow.pop %v913
        %v915 = vmul.f32 %v885, 1.442695
        %v916 = vpow.pop %v915
        %v917 = vmul.f32 %v886, 1.442695
        %v918 = vpow.pop %v917
        %v919 = vld [vmem:[#allocation3] sm:$0xff]
        %v920 = vld [vmem:[#allocation3 + $0x8] sm:$0xff]
        %v921 = vld [vmem:[#allocation3 + $0x10] sm:$0xff]
        %v922 = vld [vmem:[#allocation3 + $0x18] sm:$0xff]
        %v923 = vld [vmem:[#allocation3 + $0x20] sm:$0xff]
        %v924 = vld [vmem:[#allocation3 + $0x28] sm:$0xff]
        %v925 = vld [vmem:[#allocation3 + $0x30] sm:$0xff]
        %v926 = vld [vmem:[#allocation3 + $0x38] sm:$0xff]
        %v927 = vld [vmem:[#allocation3 + $0x40] sm:$0xff]
        %v928 = vld [vmem:[#allocation3 + $0x48] sm:$0xff]
        %v929 = vld [vmem:[#allocation3 + $0x50] sm:$0xff]
        %v930 = vld [vmem:[#allocation3 + $0x58] sm:$0xff]
        %v931 = vld [vmem:[#allocation3 + $0x60] sm:$0xff]
        %v932 = vld [vmem:[#allocation3 + $0x68] sm:$0xff]
        %v933 = vld [vmem:[#allocation3 + $0x70] sm:$0xff]
        %v934 = vld [vmem:[#allocation3 + $0x78] sm:$0xff]
        %v935 = vmul.f32 %v760, %v919
        %v936 = vmul.f32 %v762, %v920
        %v937 = vmul.f32 %v764, %v921
        %v938 = vmul.f32 %v766, %v922
        %v939 = vmul.f32 %v768, %v923
        %v940 = vmul.f32 %v770, %v924
        %v941 = vmul.f32 %v772, %v925
        %v942 = vmul.f32 %v774, %v926
        %v943 = vmul.f32 %v776, %v927
        %v944 = vmul.f32 %v778, %v928
        %v945 = vmul.f32 %v780, %v929
        %v946 = vmul.f32 %v782, %v930
        %v947 = vmul.f32 %v784, %v931
        %v948 = vmul.f32 %v786, %v932
        %v949 = vmul.f32 %v788, %v933
        %v950 = vmul.f32 %v790, %v934
        %951 = vadd.xlane.f32.xlu0 %v888
        %v952 = vpop.xlane.xlu0 %951
        %953 = vadd.xlane.f32.xlu0 %v890
        %v954 = vpop.xlane.xlu0 %953
        %955 = vadd.xlane.f32.xlu0 %v892
        %v956 = vpop.xlane.xlu0 %955
        %957 = vadd.xlane.f32.xlu0 %v894
        %v958 = vpop.xlane.xlu0 %957
        %959 = vadd.xlane.f32.xlu0 %v896
        %v960 = vpop.xlane.xlu0 %959
        %961 = vadd.xlane.f32.xlu0 %v898
        %v962 = vpop.xlane.xlu0 %961
        %963 = vadd.xlane.f32.xlu0 %v900
        %v964 = vpop.xlane.xlu0 %963
        %965 = vadd.xlane.f32.xlu0 %v902
        %v966 = vpop.xlane.xlu0 %965
        %967 = vadd.xlane.f32.xlu0 %v904
        %v968 = vpop.xlane.xlu0 %967
        %969 = vadd.xlane.f32.xlu0 %v906
        %v970 = vpop.xlane.xlu0 %969
        %971 = vadd.xlane.f32.xlu0 %v908
        %v972 = vpop.xlane.xlu0 %971
        %973 = vadd.xlane.f32.xlu0 %v910
        %v974 = vpop.xlane.xlu0 %973
        %975 = vadd.xlane.f32.xlu0 %v912
        %v976 = vpop.xlane.xlu0 %975
        %977 = vadd.xlane.f32.xlu0 %v914
        %v978 = vpop.xlane.xlu0 %977
        %979 = vadd.xlane.f32.xlu0 %v916
        %v980 = vpop.xlane.xlu0 %979
        %981 = vadd.xlane.f32.xlu0 %v918
        %v982 = vpop.xlane.xlu0 %981
        %v983 = vadd.f32 %v935, %v952
        %v984 = vadd.f32 %v936, %v954
        %v985 = vadd.f32 %v937, %v956
        %v986 = vadd.f32 %v938, %v958
        %v987 = vadd.f32 %v939, %v960
        %v988 = vadd.f32 %v940, %v962
        %v989 = vadd.f32 %v941, %v964
        %v990 = vadd.f32 %v942, %v966
        %v991 = vadd.f32 %v943, %v968
        %v992 = vadd.f32 %v944, %v970
        %v993 = vadd.f32 %v945, %v972
        %v994 = vadd.f32 %v946, %v974
        %v995 = vadd.f32 %v947, %v976
        %v996 = vadd.f32 %v948, %v978
        %v997 = vadd.f32 %v949, %v980
        %v998 = vadd.f32 %v950, %v982
        %vm999 = vcmask 7168
        %1000 = vst.msk [vmem:[#allocation3] sm:$0xff] %vm999, %v983
        %1001 = vst.msk [vmem:[#allocation3 + $0x8] sm:$0xff] %vm999, %v984
        %1002 = vst.msk [vmem:[#allocation3 + $0x10] sm:$0xff] %vm999, %v985
        %1003 = vst.msk [vmem:[#allocation3 + $0x18] sm:$0xff] %vm999, %v986
        %1004 = vst.msk [vmem:[#allocation3 + $0x20] sm:$0xff] %vm999, %v987
        %1005 = vst.msk [vmem:[#allocation3 + $0x28] sm:$0xff] %vm999, %v988
        %1006 = vst.msk [vmem:[#allocation3 + $0x30] sm:$0xff] %vm999, %v989
        %1007 = vst.msk [vmem:[#allocation3 + $0x38] sm:$0xff] %vm999, %v990
        %1008 = vst.msk [vmem:[#allocation3 + $0x40] sm:$0xff] %vm999, %v991
        %1009 = vst.msk [vmem:[#allocation3 + $0x48] sm:$0xff] %vm999, %v992
        %1010 = vst.msk [vmem:[#allocation3 + $0x50] sm:$0xff] %vm999, %v993
        %1011 = vst.msk [vmem:[#allocation3 + $0x58] sm:$0xff] %vm999, %v994
        %1012 = vst.msk [vmem:[#allocation3 + $0x60] sm:$0xff] %vm999, %v995
        %1013 = vst.msk [vmem:[#allocation3 + $0x68] sm:$0xff] %vm999, %v996
        %1014 = vst.msk [vmem:[#allocation3 + $0x70] sm:$0xff] %vm999, %v997
        %1015 = vst.msk [vmem:[#allocation3 + $0x78] sm:$0xff] %vm999, %v998
        %v1016 = vld [vmem:[#allocation4] sm:$0xff]
        %v1017 = vld [vmem:[#allocation4 + $0x8] sm:$0xff]
        %v1018 = vld [vmem:[#allocation4 + $0x10] sm:$0xff]
        %v1019 = vld [vmem:[#allocation4 + $0x18] sm:$0xff]
        %v1020 = vld [vmem:[#allocation4 + $0x20] sm:$0xff]
        %v1021 = vld [vmem:[#allocation4 + $0x28] sm:$0xff]
        %v1022 = vld [vmem:[#allocation4 + $0x30] sm:$0xff]
        %v1023 = vld [vmem:[#allocation4 + $0x38] sm:$0xff]
        %v1024 = vld [vmem:[#allocation4 + $0x40] sm:$0xff]
        %v1025 = vld [vmem:[#allocation4 + $0x48] sm:$0xff]
        %v1026 = vld [vmem:[#allocation4 + $0x50] sm:$0xff]
        %v1027 = vld [vmem:[#allocation4 + $0x58] sm:$0xff]
        %v1028 = vld [vmem:[#allocation4 + $0x60] sm:$0xff]
        %v1029 = vld [vmem:[#allocation4 + $0x68] sm:$0xff]
        %v1030 = vld [vmem:[#allocation4 + $0x70] sm:$0xff]
        %v1031 = vld [vmem:[#allocation4 + $0x78] sm:$0xff]
        %1033 = vset.pattern.permute.xlu0 0
        %1034 = vperm.xlu0 %1033, %v760
        %v1035 = vpop.permute.xlu0 %1034
        %1038 = vset.pattern.permute.xlu0 0
        %1039 = vperm.xlu0 %1038, %v762
        %v1040 = vpop.permute.xlu0 %1039
        %1043 = vset.pattern.permute.xlu0 0
        %1044 = vperm.xlu0 %1043, %v764
        %v1045 = vpop.permute.xlu0 %1044
        %1048 = vset.pattern.permute.xlu0 0
        %1049 = vperm.xlu0 %1048, %v766
        %v1050 = vpop.permute.xlu0 %1049
        %1053 = vset.pattern.permute.xlu0 0
        %1054 = vperm.xlu0 %1053, %v768
        %v1055 = vpop.permute.xlu0 %1054
        %1058 = vset.pattern.permute.xlu0 0
        %1059 = vperm.xlu0 %1058, %v770
        %v1060 = vpop.permute.xlu0 %1059
        %1063 = vset.pattern.permute.xlu0 0
        %1064 = vperm.xlu0 %1063, %v772
        %v1065 = vpop.permute.xlu0 %1064
        %1068 = vset.pattern.permute.xlu0 0
        %1069 = vperm.xlu0 %1068, %v774
        %v1070 = vpop.permute.xlu0 %1069
        %1073 = vset.pattern.permute.xlu0 0
        %1074 = vperm.xlu0 %1073, %v776
        %v1075 = vpop.permute.xlu0 %1074
        %1078 = vset.pattern.permute.xlu0 0
        %1079 = vperm.xlu0 %1078, %v778
        %v1080 = vpop.permute.xlu0 %1079
        %1083 = vset.pattern.permute.xlu0 0
        %1084 = vperm.xlu0 %1083, %v780
        %v1085 = vpop.permute.xlu0 %1084
        %1088 = vset.pattern.permute.xlu0 0
        %1089 = vperm.xlu0 %1088, %v782
        %v1090 = vpop.permute.xlu0 %1089
        %1093 = vset.pattern.permute.xlu0 0
        %1094 = vperm.xlu0 %1093, %v784
        %v1095 = vpop.permute.xlu0 %1094
        %1098 = vset.pattern.permute.xlu0 0
        %1099 = vperm.xlu0 %1098, %v786
        %v1100 = vpop.permute.xlu0 %1099
        %1103 = vset.pattern.permute.xlu0 0
        %1104 = vperm.xlu0 %1103, %v788
        %v1105 = vpop.permute.xlu0 %1104
        %1108 = vset.pattern.permute.xlu0 0
        %1109 = vperm.xlu0 %1108, %v790
        %v1110 = vpop.permute.xlu0 %1109
        %v1112 = vmul.f32 %v1035, %v1016
        %v1113 = vmul.f32 %v1040, %v1017
        %v1114 = vmul.f32 %v1045, %v1018
        %v1115 = vmul.f32 %v1050, %v1019
        %v1116 = vmul.f32 %v1055, %v1020
        %v1117 = vmul.f32 %v1060, %v1021
        %v1118 = vmul.f32 %v1065, %v1022
        %v1119 = vmul.f32 %v1070, %v1023
        %v1120 = vmul.f32 %v1075, %v1024
        %v1121 = vmul.f32 %v1080, %v1025
        %v1122 = vmul.f32 %v1085, %v1026
        %v1123 = vmul.f32 %v1090, %v1027
        %v1124 = vmul.f32 %v1095, %v1028
        %v1125 = vmul.f32 %v1100, %v1029
        %v1126 = vmul.f32 %v1105, %v1030
        %v1127 = vmul.f32 %v1110, %v1031
        %v1128 = vpack.c.bf16 %v890, %v888
        %v1129 = vpack.c.bf16 %v894, %v892
        %v1130 = vpack.c.bf16 %v898, %v896
        %v1131 = vpack.c.bf16 %v902, %v900
        %v1132 = vpack.c.bf16 %v906, %v904
        %v1133 = vpack.c.bf16 %v910, %v908
        %v1134 = vpack.c.bf16 %v914, %v912
        %v1135 = vpack.c.bf16 %v918, %v916
        %v1136 = vld [vmem:[%s368] sm:$0xf]
        %v1137 = vld [vmem:[%s368 + $0x4] sm:$0xf]
        %v1138 = vld [vmem:[%s368 + $0x8] sm:$0xf]
        %v1139 = vld [vmem:[%s368 + $0xc] sm:$0xf]
        %v1140 = vld [vmem:[%s368 + $0x10] sm:$0xf]
        %v1141 = vld [vmem:[%s368 + $0x14] sm:$0xf]
        %v1142 = vld [vmem:[%s368 + $0x18] sm:$0xf]
        %v1143 = vld [vmem:[%s368 + $0x1c] sm:$0xf]
        %v1144 = vld [vmem:[%s368 + $0x20] sm:$0xf]
        %v1145 = vld [vmem:[%s368 + $0x24] sm:$0xf]
        %v1146 = vld [vmem:[%s368 + $0x28] sm:$0xf]
        %v1147 = vld [vmem:[%s368 + $0x2c] sm:$0xf]
        %v1148 = vld [vmem:[%s368 + $0x30] sm:$0xf]
        %v1149 = vld [vmem:[%s368 + $0x34] sm:$0xf]
        %v1150 = vld [vmem:[%s368 + $0x38] sm:$0xf]
        %v1151 = vld [vmem:[%s368 + $0x3c] sm:$0xf]
        %v1168 = vunpack.c.l.b16 %v1136
        %v1169 = vunpack.c.l.b16 %v1137
        %v1170 = vunpack.c.l.b16 %v1138
        %v1171 = vunpack.c.l.b16 %v1139
        %v1172 = vunpack.c.l.b16 %v1140
        %v1173 = vunpack.c.l.b16 %v1141
        %v1174 = vunpack.c.l.b16 %v1142
        %v1175 = vunpack.c.l.b16 %v1143
        %v1176 = vunpack.c.l.b16 %v1144
        %v1177 = vunpack.c.l.b16 %v1145
        %v1178 = vunpack.c.l.b16 %v1146
        %v1179 = vunpack.c.l.b16 %v1147
        %v1180 = vunpack.c.l.b16 %v1148
        %v1181 = vunpack.c.l.b16 %v1149
        %v1182 = vunpack.c.l.b16 %v1150
        %v1183 = vunpack.c.l.b16 %v1151
        %v1184 = vpack.c.b16 %v1169, %v1168
        %v1185 = vpack.c.b16 %v1171, %v1170
        %v1186 = vpack.c.b16 %v1173, %v1172
        %v1187 = vpack.c.b16 %v1175, %v1174
        %v1188 = vpack.c.b16 %v1177, %v1176
        %v1189 = vpack.c.b16 %v1179, %v1178
        %v1190 = vpack.c.b16 %v1181, %v1180
        %v1191 = vpack.c.b16 %v1183, %v1182
        %1200 = vmatprep.subr.bf16.mxu0 0
        %1201 = vmatpush1.bf16.msra.mxu0 %v1184
        %1202 = vmatprep.subr.bf16.mxu0 0
        %1203 = vmatpush1.bf16.msra.mxu0 %v1185
        %1204 = vmatprep.subr.bf16.mxu0 0
        %1205 = vmatpush1.bf16.msra.mxu0 %v1186
        %1206 = vmatprep.subr.bf16.mxu0 0
        %1207 = vmatpush1.bf16.msra.mxu0 %v1187
        %1208 = vmatprep.subr.bf16.mxu0 0
        %1209 = vmatpush1.bf16.msra.mxu0 %v1188
        %1210 = vmatprep.subr.bf16.mxu0 0
        %1211 = vmatpush1.bf16.msra.mxu0 %v1189
        %1212 = vmatprep.subr.bf16.mxu0 0
        %1213 = vmatpush1.bf16.msra.mxu0 %v1190
        %1214 = vmatprep.subr.bf16.mxu0 0
        %1215 = vmatpush1.bf16.msra.mxu0 %v1191
        %1216 = vmatprep.subr.bf16.mxu0 0
        %1217 = vmatpush1.bf16.msra.mxu0 0
        %1218 = vmatprep.subr.bf16.mxu0 0
        %1219 = vmatpush1.bf16.msra.mxu0 0
        %1220 = vmatprep.subr.bf16.mxu0 0
        %1221 = vmatpush1.bf16.msra.mxu0 0
        %1222 = vmatprep.subr.bf16.mxu0 0
        %1223 = vmatpush1.bf16.msra.mxu0 0
        %1224 = vmatprep.subr.bf16.mxu0 0
        %1225 = vmatpush1.bf16.msra.mxu0 0
        %1226 = vmatprep.subr.bf16.mxu0 0
        %1227 = vmatpush1.bf16.msra.mxu0 0
        %1228 = vmatprep.subr.bf16.mxu0 0
        %1229 = vmatpush1.bf16.msra.mxu0 0
        %1230 = vmatprep.subr.bf16.mxu0 0
        %1231 = vmatpush1.bf16.msra.mxu0 0
        %1232 = vmatprep.mubr.bf16.mxu0 0
        %1233 = vmatmul.mubr.bf16.gmra.mrb[0].mxu0 %v1128
        %v1234 = vpop.f32.mrb[0].mxu0
        %v1235 = vadd.f32 0.0, %v1234
        %v1236 = vpop.f32.mrb[0].mxu0
        %v1237 = vpop.f32.mrb[0].mxu0
        %v1238 = vadd.f32 0.0, %v1237
        %v1239 = vpop.f32.mrb[0].mxu0
        %1240 = vmatprep.mubr.bf16.mxu0 0
        %1241 = vmatmul.mubr.bf16.gmra.mrb[0].mxu0 %v1129
        %v1242 = vpop.f32.mrb[0].mxu0
        %v1243 = vadd.f32 0.0, %v1242
        %v1244 = vpop.f32.mrb[0].mxu0
        %v1245 = vpop.f32.mrb[0].mxu0
        %v1246 = vadd.f32 0.0, %v1245
        %v1247 = vpop.f32.mrb[0].mxu0
        %1248 = vmatprep.mubr.bf16.mxu0 0
        %1249 = vmatmul.mubr.bf16.gmra.mrb[0].mxu0 %v1130
        %v1250 = vpop.f32.mrb[0].mxu0
        %v1251 = vadd.f32 0.0, %v1250
        %v1252 = vpop.f32.mrb[0].mxu0
        %v1253 = vpop.f32.mrb[0].mxu0
        %v1254 = vadd.f32 0.0, %v1253
        %v1255 = vpop.f32.mrb[0].mxu0
        %1256 = vmatprep.mubr.bf16.mxu0 0
        %1257 = vmatmul.mubr.bf16.gmra.mrb[0].mxu0 %v1131
        %v1258 = vpop.f32.mrb[0].mxu0
        %v1259 = vadd.f32 0.0, %v1258
        %v1260 = vpop.f32.mrb[0].mxu0
        %v1261 = vpop.f32.mrb[0].mxu0
        %v1262 = vadd.f32 0.0, %v1261
        %v1263 = vpop.f32.mrb[0].mxu0
        %1264 = vmatprep.mubr.bf16.mxu0 0
        %1265 = vmatmul.mubr.bf16.gmra.mrb[0].mxu0 %v1132
        %v1266 = vpop.f32.mrb[0].mxu0
        %v1267 = vadd.f32 0.0, %v1266
        %v1268 = vpop.f32.mrb[0].mxu0
        %v1269 = vpop.f32.mrb[0].mxu0
        %v1270 = vadd.f32 0.0, %v1269
        %v1271 = vpop.f32.mrb[0].mxu0
        %1272 = vmatprep.mubr.bf16.mxu0 0
        %1273 = vmatmul.mubr.bf16.gmra.mrb[0].mxu0 %v1133
        %v1274 = vpop.f32.mrb[0].mxu0
        %v1275 = vadd.f32 0.0, %v1274
        %v1276 = vpop.f32.mrb[0].mxu0
        %v1277 = vpop.f32.mrb[0].mxu0
        %v1278 = vadd.f32 0.0, %v1277
        %v1279 = vpop.f32.mrb[0].mxu0
        %1280 = vmatprep.mubr.bf16.mxu0 0
        %1281 = vmatmul.mubr.bf16.gmra.mrb[0].mxu0 %v1134
        %v1282 = vpop.f32.mrb[0].mxu0
        %v1283 = vadd.f32 0.0, %v1282
        %v1284 = vpop.f32.mrb[0].mxu0
        %v1285 = vpop.f32.mrb[0].mxu0
        %v1286 = vadd.f32 0.0, %v1285
        %v1287 = vpop.f32.mrb[0].mxu0
        %1288 = vmatprep.mubr.bf16.mxu0 0
        %1289 = vmatmul.mubr.bf16.gmra.mrb[0].mxu0 %v1135
        %v1290 = vpop.f32.mrb[0].mxu0
        %v1291 = vadd.f32 0.0, %v1290
        %v1292 = vpop.f32.mrb[0].mxu0
        %v1293 = vpop.f32.mrb[0].mxu0
        %v1294 = vadd.f32 0.0, %v1293
        %v1295 = vpop.f32.mrb[0].mxu0
        %1296 = vdwg.mxu0
        %v1297 = vadd.f32 %v1112, %v1235
        %v1298 = vadd.f32 %v1113, %v1238
        %v1299 = vadd.f32 %v1114, %v1243
        %v1300 = vadd.f32 %v1115, %v1246
        %v1301 = vadd.f32 %v1116, %v1251
        %v1302 = vadd.f32 %v1117, %v1254
        %v1303 = vadd.f32 %v1118, %v1259
        %v1304 = vadd.f32 %v1119, %v1262
        %v1305 = vadd.f32 %v1120, %v1267
        %v1306 = vadd.f32 %v1121, %v1270
        %v1307 = vadd.f32 %v1122, %v1275
        %v1308 = vadd.f32 %v1123, %v1278
        %v1309 = vadd.f32 %v1124, %v1283
        %v1310 = vadd.f32 %v1125, %v1286
        %v1311 = vadd.f32 %v1126, %v1291
        %v1312 = vadd.f32 %v1127, %v1294
        %1313 = vst [vmem:[#allocation4] sm:$0xff] %v1297
        %1314 = vst [vmem:[#allocation4 + $0x8] sm:$0xff] %v1298
        %1315 = vst [vmem:[#allocation4 + $0x10] sm:$0xff] %v1299
        %1316 = vst [vmem:[#allocation4 + $0x18] sm:$0xff] %v1300
        %1317 = vst [vmem:[#allocation4 + $0x20] sm:$0xff] %v1301
        %1318 = vst [vmem:[#allocation4 + $0x28] sm:$0xff] %v1302
        %1319 = vst [vmem:[#allocation4 + $0x30] sm:$0xff] %v1303
        %1320 = vst [vmem:[#allocation4 + $0x38] sm:$0xff] %v1304
        %1321 = vst [vmem:[#allocation4 + $0x40] sm:$0xff] %v1305
        %1322 = vst [vmem:[#allocation4 + $0x48] sm:$0xff] %v1306
        %1323 = vst [vmem:[#allocation4 + $0x50] sm:$0xff] %v1307
        %1324 = vst [vmem:[#allocation4 + $0x58] sm:$0xff] %v1308
        %1325 = vst [vmem:[#allocation4 + $0x60] sm:$0xff] %v1309
        %1326 = vst [vmem:[#allocation4 + $0x68] sm:$0xff] %v1310
        %1327 = vst [vmem:[#allocation4 + $0x70] sm:$0xff] %v1311
        %1328 = vst [vmem:[#allocation4 + $0x78] sm:$0xff] %v1312
        %1329 = vst.msk [vmem:[#allocation2] sm:$0xff] %vm999, %v727
        %1330 = vst.msk [vmem:[#allocation2 + $0x8] sm:$0xff] %vm999, %v728
        %1331 = vst.msk [vmem:[#allocation2 + $0x10] sm:$0xff] %vm999, %v729
        %1332 = vst.msk [vmem:[#allocation2 + $0x18] sm:$0xff] %vm999, %v730
        %1333 = vst.msk [vmem:[#allocation2 + $0x20] sm:$0xff] %vm999, %v731
        %1334 = vst.msk [vmem:[#allocation2 + $0x28] sm:$0xff] %vm999, %v732
        %1335 = vst.msk [vmem:[#allocation2 + $0x30] sm:$0xff] %vm999, %v733
        %1336 = vst.msk [vmem:[#allocation2 + $0x38] sm:$0xff] %vm999, %v734
        %1337 = vst.msk [vmem:[#allocation2 + $0x40] sm:$0xff] %vm999, %v735
        %1338 = vst.msk [vmem:[#allocation2 + $0x48] sm:$0xff] %vm999, %v736
        %1339 = vst.msk [vmem:[#allocation2 + $0x50] sm:$0xff] %vm999, %v737
        %1340 = vst.msk [vmem:[#allocation2 + $0x58] sm:$0xff] %vm999, %v738
        %1341 = vst.msk [vmem:[#allocation2 + $0x60] sm:$0xff] %vm999, %v739
        %1342 = vst.msk [vmem:[#allocation2 + $0x68] sm:$0xff] %vm999, %v740
        %1343 = vst.msk [vmem:[#allocation2 + $0x70] sm:$0xff] %vm999, %v741
        %1344 = vst.msk [vmem:[#allocation2 + $0x78] sm:$0xff] %vm999, %v742
        %p1345 = scmp.eq.s32.totalorder %s20, 1
        // Predicated region
        $region82: #{gat_forward.5} parent=72 // pred_check
          %p1346 = pneg %p1345
        $region83: #{gat_forward.5} parent=72 // pred_check_branch
          %1348 = sbr.rel (%p1346) target = $region85
        $region84: #{gat_forward.5} parent=72 // pred_region
          %v1349 = vld [vmem:[#allocation4] sm:$0xff]
          %v1350 = vld [vmem:[#allocation4 + $0x8] sm:$0xff]
          %v1351 = vld [vmem:[#allocation4 + $0x10] sm:$0xff]
          %v1352 = vld [vmem:[#allocation4 + $0x18] sm:$0xff]
          %v1353 = vld [vmem:[#allocation4 + $0x20] sm:$0xff]
          %v1354 = vld [vmem:[#allocation4 + $0x28] sm:$0xff]
          %v1355 = vld [vmem:[#allocation4 + $0x30] sm:$0xff]
          %v1356 = vld [vmem:[#allocation4 + $0x38] sm:$0xff]
          %v1357 = vld [vmem:[#allocation4 + $0x40] sm:$0xff]
          %v1358 = vld [vmem:[#allocation4 + $0x48] sm:$0xff]
          %v1359 = vld [vmem:[#allocation4 + $0x50] sm:$0xff]
          %v1360 = vld [vmem:[#allocation4 + $0x58] sm:$0xff]
          %v1361 = vld [vmem:[#allocation4 + $0x60] sm:$0xff]
          %v1362 = vld [vmem:[#allocation4 + $0x68] sm:$0xff]
          %v1363 = vld [vmem:[#allocation4 + $0x70] sm:$0xff]
          %v1364 = vld [vmem:[#allocation4 + $0x78] sm:$0xff]
          %v1365 = vld [vmem:[#allocation3] sm:$0xff]
          %v1366 = vld [vmem:[#allocation3 + $0x8] sm:$0xff]
          %v1367 = vld [vmem:[#allocation3 + $0x10] sm:$0xff]
          %v1368 = vld [vmem:[#allocation3 + $0x18] sm:$0xff]
          %v1369 = vld [vmem:[#allocation3 + $0x20] sm:$0xff]
          %v1370 = vld [vmem:[#allocation3 + $0x28] sm:$0xff]
          %v1371 = vld [vmem:[#allocation3 + $0x30] sm:$0xff]
          %v1372 = vld [vmem:[#allocation3 + $0x38] sm:$0xff]
          %v1373 = vld [vmem:[#allocation3 + $0x40] sm:$0xff]
          %v1374 = vld [vmem:[#allocation3 + $0x48] sm:$0xff]
          %v1375 = vld [vmem:[#allocation3 + $0x50] sm:$0xff]
          %v1376 = vld [vmem:[#allocation3 + $0x58] sm:$0xff]
          %v1377 = vld [vmem:[#allocation3 + $0x60] sm:$0xff]
          %v1378 = vld [vmem:[#allocation3 + $0x68] sm:$0xff]
          %v1379 = vld [vmem:[#allocation3 + $0x70] sm:$0xff]
          %v1380 = vld [vmem:[#allocation3 + $0x78] sm:$0xff]
          %v1381 = vrcp.pop %v1365
          %v1382 = vrcp.pop %v1366
          %v1383 = vrcp.pop %v1367
          %v1384 = vrcp.pop %v1368
          %v1385 = vrcp.pop %v1369
          %v1386 = vrcp.pop %v1370
          %v1387 = vrcp.pop %v1371
          %v1388 = vrcp.pop %v1372
          %v1389 = vrcp.pop %v1373
          %v1390 = vrcp.pop %v1374
          %v1391 = vrcp.pop %v1375
          %v1392 = vrcp.pop %v1376
          %v1393 = vrcp.pop %v1377
          %v1394 = vrcp.pop %v1378
          %v1395 = vrcp.pop %v1379
          %v1396 = vrcp.pop %v1380
          %1398 = vset.pattern.permute.xlu0 0
          %1399 = vperm.xlu0 %1398, %v1381
          %v1400 = vpop.permute.xlu0 %1399
          %1403 = vset.pattern.permute.xlu0 0
          %1404 = vperm.xlu0 %1403, %v1382
          %v1405 = vpop.permute.xlu0 %1404
          %1408 = vset.pattern.permute.xlu0 0
          %1409 = vperm.xlu0 %1408, %v1383
          %v1410 = vpop.permute.xlu0 %1409
          %1413 = vset.pattern.permute.xlu0 0
          %1414 = vperm.xlu0 %1413, %v1384
          %v1415 = vpop.permute.xlu0 %1414
          %1418 = vset.pattern.permute.xlu0 0
          %1419 = vperm.xlu0 %1418, %v1385
          %v1420 = vpop.permute.xlu0 %1419
          %1423 = vset.pattern.permute.xlu0 0
          %1424 = vperm.xlu0 %1423, %v1386
          %v1425 = vpop.permute.xlu0 %1424
          %1428 = vset.pattern.permute.xlu0 0
          %1429 = vperm.xlu0 %1428, %v1387
          %v1430 = vpop.permute.xlu0 %1429
          %1433 = vset.pattern.permute.xlu0 0
          %1434 = vperm.xlu0 %1433, %v1388
          %v1435 = vpop.permute.xlu0 %1434
          %1438 = vset.pattern.permute.xlu0 0
          %1439 = vperm.xlu0 %1438, %v1389
          %v1440 = vpop.permute.xlu0 %1439
          %1443 = vset.pattern.permute.xlu0 0
          %1444 = vperm.xlu0 %1443, %v1390
          %v1445 = vpop.permute.xlu0 %1444
          %1448 = vset.pattern.permute.xlu0 0
          %1449 = vperm.xlu0 %1448, %v1391
          %v1450 = vpop.permute.xlu0 %1449
          %1453 = vset.pattern.permute.xlu0 0
          %1454 = vperm.xlu0 %1453, %v1392
          %v1455 = vpop.permute.xlu0 %1454
          %1458 = vset.pattern.permute.xlu0 0
          %1459 = vperm.xlu0 %1458, %v1393
          %v1460 = vpop.permute.xlu0 %1459
          %1463 = vset.pattern.permute.xlu0 0
          %1464 = vperm.xlu0 %1463, %v1394
          %v1465 = vpop.permute.xlu0 %1464
          %1468 = vset.pattern.permute.xlu0 0
          %1469 = vperm.xlu0 %1468, %v1395
          %v1470 = vpop.permute.xlu0 %1469
          %1473 = vset.pattern.permute.xlu0 0
          %1474 = vperm.xlu0 %1473, %v1396
          %v1475 = vpop.permute.xlu0 %1474
          %v1477 = vmul.f32 %v1349, %v1400
          %v1478 = vmul.f32 %v1350, %v1405
          %v1479 = vmul.f32 %v1351, %v1410
          %v1480 = vmul.f32 %v1352, %v1415
          %v1481 = vmul.f32 %v1353, %v1420
          %v1482 = vmul.f32 %v1354, %v1425
          %v1483 = vmul.f32 %v1355, %v1430
          %v1484 = vmul.f32 %v1356, %v1435
          %v1485 = vmul.f32 %v1357, %v1440
          %v1486 = vmul.f32 %v1358, %v1445
          %v1487 = vmul.f32 %v1359, %v1450
          %v1488 = vmul.f32 %v1360, %v1455
          %v1489 = vmul.f32 %v1361, %v1460
          %v1490 = vmul.f32 %v1362, %v1465
          %v1491 = vmul.f32 %v1363, %v1470
          %v1492 = vmul.f32 %v1364, %v1475
          %v1493 = vmax.f32 %v1477, 0.0
          %v1494 = vmax.f32 %v1478, 0.0
          %v1495 = vmax.f32 %v1479, 0.0
          %v1496 = vmax.f32 %v1480, 0.0
          %v1497 = vmax.f32 %v1481, 0.0
          %v1498 = vmax.f32 %v1482, 0.0
          %v1499 = vmax.f32 %v1483, 0.0
          %v1500 = vmax.f32 %v1484, 0.0
          %v1501 = vmax.f32 %v1485, 0.0
          %v1502 = vmax.f32 %v1486, 0.0
          %v1503 = vmax.f32 %v1487, 0.0
          %v1504 = vmax.f32 %v1488, 0.0
          %v1505 = vmax.f32 %v1489, 0.0
          %v1506 = vmax.f32 %v1490, 0.0
          %v1507 = vmax.f32 %v1491, 0.0
          %v1508 = vmax.f32 %v1492, 0.0
          %1509 = vst [vmem:[%s374] sm:$0xff] %v1493
          %1510 = vst [vmem:[%s374 + $0x8] sm:$0xff] %v1494
          %1511 = vst [vmem:[%s374 + $0x10] sm:$0xff] %v1495
          %1512 = vst [vmem:[%s374 + $0x18] sm:$0xff] %v1496
          %1513 = vst [vmem:[%s374 + $0x20] sm:$0xff] %v1497
          %1514 = vst [vmem:[%s374 + $0x28] sm:$0xff] %v1498
          %1515 = vst [vmem:[%s374 + $0x30] sm:$0xff] %v1499
          %1516 = vst [vmem:[%s374 + $0x38] sm:$0xff] %v1500
          %1517 = vst [vmem:[%s374 + $0x40] sm:$0xff] %v1501
          %1518 = vst [vmem:[%s374 + $0x48] sm:$0xff] %v1502
          %1519 = vst [vmem:[%s374 + $0x50] sm:$0xff] %v1503
          %1520 = vst [vmem:[%s374 + $0x58] sm:$0xff] %v1504
          %1521 = vst [vmem:[%s374 + $0x60] sm:$0xff] %v1505
          %1522 = vst [vmem:[%s374 + $0x68] sm:$0xff] %v1506
          %1523 = vst [vmem:[%s374 + $0x70] sm:$0xff] %v1507
          %1524 = vst [vmem:[%s374 + $0x78] sm:$0xff] %v1508
        $region85: #{gat_forward.5} parent=72 // pred_fallthru
          _
        %s1525 = smul.u32 16, %s19
        %p1526 = scmp.lt.s32.totalorder %s1525, 31
        %s1527 = scalar_select %p1526, %s1525, 31
        %s1528 = smul.addr %s1527, 8
        %s1529 = scalar_lea.vmem %s4, %s1528
        // Predicated region
        $region86: #{gat_forward.5} parent=72 // pred_check
          %p1530 = pneg %p151
        $region87: #{gat_forward.5} parent=72 // pred_check_branch
          %1532 = sbr.rel (%p1530) target = $region89
        $region88: #{gat_forward.5} parent=72 // pred_region
          %s1533 = smul.u32 16, %s19
        $region89: #{gat_forward.5} parent=72 // pred_fallthru
          _
      $region73: #{gat_forward.5} parent=5 // pred_fallthru
        _
      %p1534 = scmp.le.s32.totalorder 2, %s10
      // Predicated region
      $region90: #{gat_forward.5} parent=5 // pred_check
        %p1535 = pneg %p1534
      $region91: #{gat_forward.5} parent=5 // pred_check_branch
        %1537 = sbr.rel (%p1535) target = $region93
      $region92: #{gat_forward.5} parent=5 // pred_region
        %s1538 = ssub.s32 %s10, 2
        // Predicated region
        $region94: #{gat_forward.5} parent=92 // pred_check
          %p1539 = pneg %p157
        $region95: #{gat_forward.5} parent=92 // pred_check_branch
          %1541 = sbr.rel (%p1539) target = $region97
        $region96: #{gat_forward.5} parent=92 // pred_region
          %s1542 = smul.u32 16, %s21
          %p1543 = scmp.lt.s32.totalorder %s1542, 31
          %s1544 = scalar_select %p1543, %s1542, 31
          %s1545 = smul.addr %s1544, 8
          %s1546 = scalar_lea.vmem %s4, %s1545
        $region97: #{gat_forward.5} parent=92 // pred_fallthru
          _
      $region93: #{gat_forward.5} parent=5 // pred_fallthru
        _
    $region6: #{gat_forward.5} parent=1 // loop_footer
      %s14 = sadd.s32 1, %s10
    $region7: #{gat_forward.5} parent=1 // loop_footer_branch
      %9 = sbr.rel target = $region3
    $region8: #{gat_forward.5} parent=1 // loop_exit
      _

// kernel: gat_forward.7
$region0: #{gat_forward.7}
  #allocation0 [shape = 'u32[]', space=smem, size = 0x4, offset = 0x4, fixed_abs, tag = 'smem constant byte address 0x4 - core index']
  #allocation1 [shape = 'u32[144,128]{1,0:T(1,128)}', space=vmem, size = 0x12000, scoped, tag = 'internal scratch']
  #allocation2 [shape = 'f32[128,1]{1,0:T(8,128)}', space=vmem, size = 0x10000, scoped, tag = 'scratch operand']
  #allocation3 [shape = 'f32[128,1]{1,0:T(8,128)}', space=vmem, size = 0x10000, scoped, tag = 'scratch operand']
  #allocation4 [shape = 'f32[128,128]{1,0:T(8,128)}', space=vmem, size = 0x10000, scoped, tag = 'scratch operand']
  %s0 = inlined_call_operand.vmem [shape: s8[256,256], index: 0, kind: input, shape index: {}]
  %s1 = inlined_call_operand.vmem [shape: f32[256,1], index: 1, kind: input, shape index: {}]
  %s2 = inlined_call_operand.vmem [shape: f32[1,256], index: 2, kind: input, shape index: {}]
  %s3 = inlined_call_operand.vmem [shape: bf16[256,128], index: 3, kind: input, shape index: {}]
  %s4 = inlined_call_operand.vmem [shape: f32[256,128], index: 4, kind: output, shape index: {}]
  %s5 = sld [smem:[#allocation0]]
  $region98: #{gat_forward.7} parent=0
    _
  %s7 = ssub.s32 1, %s5
  %s8 = scalar_select 0, %s7, %s5
  $region1: #{gat_forward.7} parent=0
    #allocation5 [shape = 'u8[32768]{0}', space=vmem, size = 0x8000, scoped, tag = 'input window, operand 0']
    loop: start=0, step=1, limit=6
    $region2: #{gat_forward.7} parent=1 // loop_pre_header
      _
    $region3: #{gat_forward.7} parent=1 // loop_header
      %s10 = sphi 0, %s14
      %p11 = scmp.ge.s32.totalorder %s10, 6
      %s17 = sphi 0, %s29
      %s18 = sphi 0, %s25
      %s19 = sphi 0, %s17
      %s20 = sphi 0, %s18
      %s21 = sphi 0, %s19
      %s22 = sphi 0, %s20
      %s34 = sphi 0, %s36
      %s37 = sphi 0, %s34
      %s38 = sphi 0, %s37
      %s54 = sphi 0, %s38
      %s60 = sphi 0, %s62
      %s63 = sphi 0, %s60
      %s64 = sphi 0, %s63
      %s80 = sphi 0, %s64
      %s86 = sphi 0, %s88
      %s89 = sphi 0, %s86
      %s90 = sphi 0, %s89
      %s106 = sphi 0, %s90
      %s112 = sphi 0, %s114
      %s115 = sphi 0, %s112
      %s116 = sphi 0, %s115
      %s132 = sphi 0, %s116
      %s138 = sphi 0, %s140
      %s141 = sphi 0, %s138
      %s142 = sphi 0, %s141
      %s158 = sphi 0, %s142
    $region4: #{gat_forward.7} parent=1 // loop_header_branch
      %13 = sbr.rel (%p11) target = $region8
    $region5: #{gat_forward.7} parent=1 // loop_body
      %s15 = ssub.s32 %s10, 1
      %s16 = ssub.s32 %s10, 2
      %s23 = sadd.s32 1, %s18
      %p24 = scmp.ge.s32.totalorder %s23, 2
      %s25 = scalar_select %p24, 0, %s23
      %s26 = sadd.s32 1, %s17
      %s27 = scalar_select %p24, %s26, %s17
      %p28 = scmp.ge.s32.totalorder %s27, 2
      %s29 = scalar_select %p28, 0, %s27
      %s30 = ssub.s32 %s17, %s29
      %s31 = ssub.s32 %s18, %s25
      %s32 = sor.u32 %s30, %s31
      %p33 = scmp.eq.s32.totalorder %s32, 0
      %s35 = sadd.s32 %s34, 1
      %s36 = scalar_select %p33, %s34, %s35
      %p39 = pneg %p33
      %p40 = scmp.eq.s32.totalorder %s10, 3
      %p41 = por %p39, %p40
      %p42 = scmp.ne.s32.totalorder %s34, %s37
      %p43 = scmp.eq.s32.totalorder %s10, 0
      %p44 = por %p42, %p43
      %p45 = scmp.ne.s32.totalorder %s34, %s37
      %p46 = scmp.eq.s32.totalorder %s15, 3
      %p47 = por %p45, %p46
      %p48 = scmp.ne.s32.totalorder %s37, %s38
      %p49 = scmp.eq.s32.totalorder %s15, 0
      %p50 = por %p48, %p49
      %p51 = scmp.ne.s32.totalorder %s37, %s38
      %p52 = scmp.eq.s32.totalorder %s16, 3
      %p53 = por %p51, %p52
      %p55 = scmp.ne.s32.totalorder %s38, %s54
      %p56 = scmp.eq.s32.totalorder %s16, 0
      %p57 = por %p55, %p56
      %s58 = ssub.s32 %s17, %s29
      %p59 = scmp.eq.s32.totalorder %s58, 0
      %s61 = sadd.s32 %s60, 1
      %s62 = scalar_select %p59, %s60, %s61
      %p65 = pneg %p59
      %p66 = scmp.eq.s32.totalorder %s10, 3
      %p67 = por %p65, %p66
      %p68 = scmp.ne.s32.totalorder %s60, %s63
      %p69 = scmp.eq.s32.totalorder %s10, 0
      %p70 = por %p68, %p69
      %p71 = scmp.ne.s32.totalorder %s60, %s63
      %p72 = scmp.eq.s32.totalorder %s15, 3
      %p73 = por %p71, %p72
      %p74 = scmp.ne.s32.totalorder %s63, %s64
      %p75 = scmp.eq.s32.totalorder %s15, 0
      %p76 = por %p74, %p75
      %p77 = scmp.ne.s32.totalorder %s63, %s64
      %p78 = scmp.eq.s32.totalorder %s16, 3
      %p79 = por %p77, %p78
      %p81 = scmp.ne.s32.totalorder %s64, %s80
      %p82 = scmp.eq.s32.totalorder %s16, 0
      %p83 = por %p81, %p82
      %s84 = ssub.s32 %s18, %s25
      %p85 = scmp.eq.s32.totalorder %s84, 0
      %s87 = sadd.s32 %s86, 1
      %s88 = scalar_select %p85, %s86, %s87
      %p91 = pneg %p85
      %p92 = scmp.eq.s32.totalorder %s10, 3
      %p93 = por %p91, %p92
      %p94 = scmp.ne.s32.totalorder %s86, %s89
      %p95 = scmp.eq.s32.totalorder %s10, 0
      %p96 = por %p94, %p95
      %p97 = scmp.ne.s32.totalorder %s86, %s89
      %p98 = scmp.eq.s32.totalorder %s15, 3
      %p99 = por %p97, %p98
      %p100 = scmp.ne.s32.totalorder %s89, %s90
      %p101 = scmp.eq.s32.totalorder %s15, 0
      %p102 = por %p100, %p101
      %p103 = scmp.ne.s32.totalorder %s89, %s90
      %p104 = scmp.eq.s32.totalorder %s16, 3
      %p105 = por %p103, %p104
      %p107 = scmp.ne.s32.totalorder %s90, %s106
      %p108 = scmp.eq.s32.totalorder %s16, 0
      %p109 = por %p107, %p108
      %s110 = ssub.s32 %s18, %s25
      %p111 = scmp.eq.s32.totalorder %s110, 0
      %s113 = sadd.s32 %s112, 1
      %s114 = scalar_select %p111, %s112, %s113
      %p117 = pneg %p111
      %p118 = scmp.eq.s32.totalorder %s10, 3
      %p119 = por %p117, %p118
      %p120 = scmp.ne.s32.totalorder %s112, %s115
      %p121 = scmp.eq.s32.totalorder %s10, 0
      %p122 = por %p120, %p121
      %p123 = scmp.ne.s32.totalorder %s112, %s115
      %p124 = scmp.eq.s32.totalorder %s15, 3
      %p125 = por %p123, %p124
      %p126 = scmp.ne.s32.totalorder %s115, %s116
      %p127 = scmp.eq.s32.totalorder %s15, 0
      %p128 = por %p126, %p127
      %p129 = scmp.ne.s32.totalorder %s115, %s116
      %p130 = scmp.eq.s32.totalorder %s16, 3
      %p131 = por %p129, %p130
      %p133 = scmp.ne.s32.totalorder %s116, %s132
      %p134 = scmp.eq.s32.totalorder %s16, 0
      %p135 = por %p133, %p134
      %s136 = ssub.s32 %s17, %s29
      %p137 = scmp.eq.s32.totalorder %s136, 0
      %s139 = sadd.s32 %s138, 1
      %s140 = scalar_select %p137, %s138, %s139
      %p143 = pneg %p137
      %p144 = scmp.eq.s32.totalorder %s10, 3
      %p145 = por %p143, %p144
      %p146 = scmp.ne.s32.totalorder %s138, %s141
      %p147 = scmp.eq.s32.totalorder %s10, 0
      %p148 = por %p146, %p147
      %p149 = scmp.ne.s32.totalorder %s138, %s141
      %p150 = scmp.eq.s32.totalorder %s15, 3
      %p151 = por %p149, %p150
      %p152 = scmp.ne.s32.totalorder %s141, %s142
      %p153 = scmp.eq.s32.totalorder %s15, 0
      %p154 = por %p152, %p153
      %p155 = scmp.ne.s32.totalorder %s141, %s142
      %p156 = scmp.eq.s32.totalorder %s16, 3
      %p157 = por %p155, %p156
      %p159 = scmp.ne.s32.totalorder %s142, %s158
      %p160 = scmp.eq.s32.totalorder %s16, 0
      %p161 = por %p159, %p160
      %p162 = scmp.le.s32.totalorder 1, %s10
      %p163 = scmp.lt.s32.totalorder %s10, 5
      %p164 = pnand %p162, %p163
      %p165 = pneg %p164
      // Predicated region
      $region9: #{gat_forward.7} parent=5 // pred_check
        _
      $region10: #{gat_forward.7} parent=5 // pred_check_branch
        %167 = sbr.rel (%p164) target = $region12
      $region11: #{gat_forward.7} parent=5 // pred_region
        %s168 = ssub.s32 %s10, 1
      $region12: #{gat_forward.7} parent=5 // pred_fallthru
        _
      %p169 = scmp.lt.s32.totalorder %s10, 4
      // Predicated region
      $region13: #{gat_forward.7} parent=5 // pred_check
        %p170 = pneg %p169
      $region14: #{gat_forward.7} parent=5 // pred_check_branch
        %172 = sbr.rel (%p170) target = $region16
      $region15: #{gat_forward.7} parent=5 // pred_region
        // Predicated region
        $region17: #{gat_forward.7} parent=15 // pred_check
          %p173 = pneg %p44
        $region18: #{gat_forward.7} parent=15 // pred_check_branch
          %175 = sbr.rel (%p173) target = $region20
        $region19: #{gat_forward.7} parent=15 // pred_region
          %s176 = sand.u32 %s34, 1
          %s177 = sand.u32 %s34, 1
          %s178 = smul.addr %s177, 32
          %s179 = scalar_lea.vmem [#allocation5], %s178
          %s180 = smul.u32 16, %s17
          %s181 = smul.addr %s180, 2
          %s182 = sadd.s32 %s18, %s181
          %s183 = smul.addr %s182, 2
          %s184 = scalar_lea.vmem %s0, %s183
          // Predicated region
          $region21: #{gat_forward.7} parent=19 // pred_check
            _
          $region22: #{gat_forward.7} parent=19 // pred_check_branch
            %186 = sbr.rel (0) target = $region24
          $region23: #{gat_forward.7} parent=19 // pred_region
            // Predicated region
            $region25: #{gat_forward.7} parent=23 // pred_check
              _
            $region26: #{gat_forward.7} parent=23 // pred_check_branch
              %188 = sbr.rel target = $region28
            $region27: #{gat_forward.7} parent=23 // pred_region
              // Predicated region
              $region40: #{gat_forward.7} parent=27 // pred_check
                _
              $region41: #{gat_forward.7} parent=27 // pred_check_branch
                %233 = sbr.rel (0) target = $region43
              $region42: #{gat_forward.7} parent=27 // pred_region
                loop: start=0, step=1, limit=1
                $region44: #{gat_forward.7} parent=42 // loop_pre_header
                  _
                $region45: #{gat_forward.7} parent=42 // loop_header
                  %s235 = sphi 0, %s239
                  %p236 = scmp.ge.s32.totalorder %s235, 1
                  %s240 = sphi %s184, %s184
                  %s241 = sphi %s179, %s179
                $region46: #{gat_forward.7} parent=42 // loop_header_branch
                  %238 = sbr.rel (%p236) target = $region50
                $region47: #{gat_forward.7} parent=42 // loop_body
                  _
                $region48: #{gat_forward.7} parent=42 // loop_footer
                  %s239 = sadd.s32 1, %s235
                $region49: #{gat_forward.7} parent=42 // loop_footer_branch
                  %234 = sbr.rel target = $region45
                $region50: #{gat_forward.7} parent=42 // loop_exit
                  _
                loop: start=0, step=1, limit=1
                $region51: #{gat_forward.7} parent=42 // loop_pre_header
                  _
                $region52: #{gat_forward.7} parent=42 // loop_header
                  %s244 = sphi 0, %s248
                  %p245 = scmp.ge.s32.totalorder %s244, 1
                  %s249 = sphi %s184, %s184
                  %s250 = sphi %s179, %s179
                $region53: #{gat_forward.7} parent=42 // loop_header_branch
                  %247 = sbr.rel (%p245) target = $region57
                $region54: #{gat_forward.7} parent=42 // loop_body
                  %v251 = vld [vmem:[%s249] sm:$0x3]
                  %252 = vst [vmem:[%s250] sm:$0x3] %v251
                  %v253 = vld [vmem:[%s249 + $0x4] sm:$0x3]
                  %254 = vst [vmem:[%s250 + $0x2] sm:$0x3] %v253
                  %v255 = vld [vmem:[%s249 + $0x8] sm:$0x3]
                  %256 = vst [vmem:[%s250 + $0x4] sm:$0x3] %v255
                  %v257 = vld [vmem:[%s249 + $0xc] sm:$0x3]
                  %258 = vst [vmem:[%s250 + $0x6] sm:$0x3] %v257
                  %v259 = vld [vmem:[%s249 + $0x10] sm:$0x3]
                  %260 = vst [vmem:[%s250 + $0x8] sm:$0x3] %v259
                  %v261 = vld [vmem:[%s249 + $0x14] sm:$0x3]
                  %262 = vst [vmem:[%s250 + $0xa] sm:$0x3] %v261
                  %v263 = vld [vmem:[%s249 + $0x18] sm:$0x3]
                  %264 = vst [vmem:[%s250 + $0xc] sm:$0x3] %v263
                  %v265 = vld [vmem:[%s249 + $0x1c] sm:$0x3]
                  %266 = vst [vmem:[%s250 + $0xe] sm:$0x3] %v265
                  %v267 = vld [vmem:[%s249 + $0x20] sm:$0x3]
                  %268 = vst [vmem:[%s250 + $0x10] sm:$0x3] %v267
                  %v269 = vld [vmem:[%s249 + $0x24] sm:$0x3]
                  %270 = vst [vmem:[%s250 + $0x12] sm:$0x3] %v269
                  %v271 = vld [vmem:[%s249 + $0x28] sm:$0x3]
                  %272 = vst [vmem:[%s250 + $0x14] sm:$0x3] %v271
                  %v273 = vld [vmem:[%s249 + $0x2c] sm:$0x3]
                  %274 = vst [vmem:[%s250 + $0x16] sm:$0x3] %v273
                  %v275 = vld [vmem:[%s249 + $0x30] sm:$0x3]
                  %276 = vst [vmem:[%s250 + $0x18] sm:$0x3] %v275
                  %v277 = vld [vmem:[%s249 + $0x34] sm:$0x3]
                  %278 = vst [vmem:[%s250 + $0x1a] sm:$0x3] %v277
                  %v279 = vld [vmem:[%s249 + $0x38] sm:$0x3]
                  %280 = vst [vmem:[%s250 + $0x1c] sm:$0x3] %v279
                  %v281 = vld [vmem:[%s249 + $0x3c] sm:$0x3]
                  %282 = vst [vmem:[%s250 + $0x1e] sm:$0x3] %v281
                $region55: #{gat_forward.7} parent=42 // loop_footer
                  %s248 = sadd.s32 1, %s244
                $region56: #{gat_forward.7} parent=42 // loop_footer_branch
                  %243 = sbr.rel target = $region52
                $region57: #{gat_forward.7} parent=42 // loop_exit
                  _
              $region43: #{gat_forward.7} parent=27 // pred_fallthru
                _
            $region28: #{gat_forward.7} parent=23 // pred_fallthru
              _
            // Predicated region
            $region29: #{gat_forward.7} parent=23 // pred_check
              _
            $region30: #{gat_forward.7} parent=23 // pred_check_branch
              %190 = sbr.rel (0) target = $region32
            $region31: #{gat_forward.7} parent=23 // pred_region
              loop: start=0, step=1, limit=1
              $region33: #{gat_forward.7} parent=31 // loop_pre_header
                _
              $region34: #{gat_forward.7} parent=31 // loop_header
                %s193 = sphi 0, %s197
                %p194 = scmp.ge.s32.totalorder %s193, 1
                %s198 = sphi %s184, %s184
                %s199 = sphi %s179, %s179
              $region35: #{gat_forward.7} parent=31 // loop_header_branch
                %196 = sbr.rel (%p194) target = $region39
              $region36: #{gat_forward.7} parent=31 // loop_body
                %v200 = vld [vmem:[%s198] sm:$0x3]
                %201 = vst [vmem:[%s199] sm:$0x3] %v200
                %v202 = vld [vmem:[%s198 + $0x4] sm:$0x3]
                %203 = vst [vmem:[%s199 + $0x2] sm:$0x3] %v202
                %v204 = vld [vmem:[%s198 + $0x8] sm:$0x3]
                %205 = vst [vmem:[%s199 + $0x4] sm:$0x3] %v204
                %v206 = vld [vmem:[%s198 + $0xc] sm:$0x3]
                %207 = vst [vmem:[%s199 + $0x6] sm:$0x3] %v206
                %v208 = vld [vmem:[%s198 + $0x10] sm:$0x3]
                %209 = vst [vmem:[%s199 + $0x8] sm:$0x3] %v208
                %v210 = vld [vmem:[%s198 + $0x14] sm:$0x3]
                %211 = vst [vmem:[%s199 + $0xa] sm:$0x3] %v210
                %v212 = vld [vmem:[%s198 + $0x18] sm:$0x3]
                %213 = vst [vmem:[%s199 + $0xc] sm:$0x3] %v212
                %v214 = vld [vmem:[%s198 + $0x1c] sm:$0x3]
                %215 = vst [vmem:[%s199 + $0xe] sm:$0x3] %v214
                %v216 = vld [vmem:[%s198 + $0x20] sm:$0x3]
                %217 = vst [vmem:[%s199 + $0x10] sm:$0x3] %v216
                %v218 = vld [vmem:[%s198 + $0x24] sm:$0x3]
                %219 = vst [vmem:[%s199 + $0x12] sm:$0x3] %v218
                %v220 = vld [vmem:[%s198 + $0x28] sm:$0x3]
                %221 = vst [vmem:[%s199 + $0x14] sm:$0x3] %v220
                %v222 = vld [vmem:[%s198 + $0x2c] sm:$0x3]
                %223 = vst [vmem:[%s199 + $0x16] sm:$0x3] %v222
                %v224 = vld [vmem:[%s198 + $0x30] sm:$0x3]
                %225 = vst [vmem:[%s199 + $0x18] sm:$0x3] %v224
                %v226 = vld [vmem:[%s198 + $0x34] sm:$0x3]
                %227 = vst [vmem:[%s199 + $0x1a] sm:$0x3] %v226
                %v228 = vld [vmem:[%s198 + $0x38] sm:$0x3]
                %229 = vst [vmem:[%s199 + $0x1c] sm:$0x3] %v228
                %v230 = vld [vmem:[%s198 + $0x3c] sm:$0x3]
                %231 = vst [vmem:[%s199 + $0x1e] sm:$0x3] %v230
              $region37: #{gat_forward.7} parent=31 // loop_footer
                %s197 = sadd.s32 1, %s193
              $region38: #{gat_forward.7} parent=31 // loop_footer_branch
                %192 = sbr.rel target = $region34
              $region39: #{gat_forward.7} parent=31 // loop_exit
                _
            $region32: #{gat_forward.7} parent=23 // pred_fallthru
              _
          $region24: #{gat_forward.7} parent=19 // pred_fallthru
            _
          %283 = vnop
        $region20: #{gat_forward.7} parent=15 // pred_fallthru
          _
        // Predicated region
        $region58: #{gat_forward.7} parent=15 // pred_check
          %p284 = pneg %p70
        $region59: #{gat_forward.7} parent=15 // pred_check_branch
          %286 = sbr.rel (%p284) target = $region61
        $region60: #{gat_forward.7} parent=15 // pred_region
          %s287 = smul.u32 16, %s17
          %p288 = scmp.lt.s32.totalorder %s287, 31
          %s289 = scalar_select %p288, %s287, 31
          %s290 = smul.addr %s289, 8
          %s291 = scalar_lea.vmem %s1, %s290
          %s292 = smul.u32 16, %s17
        $region61: #{gat_forward.7} parent=15 // pred_fallthru
          _
        // Predicated region
        $region62: #{gat_forward.7} parent=15 // pred_check
          %p293 = pneg %p96
        $region63: #{gat_forward.7} parent=15 // pred_check_branch
          %295 = sbr.rel (%p293) target = $region65
        $region64: #{gat_forward.7} parent=15 // pred_region
          %p296 = scmp.lt.s32.totalorder %s18, 1
          %s297 = scalar_select %p296, %s18, 1
          %s298 = scalar_lea.vmem %s2, %s297
        $region65: #{gat_forward.7} parent=15 // pred_fallthru
          _
        // Predicated region
        $region66: #{gat_forward.7} parent=15 // pred_check
          %p299 = pneg %p122
        $region67: #{gat_forward.7} parent=15 // pred_check_branch
          %301 = sbr.rel (%p299) target = $region69
        $region68: #{gat_forward.7} parent=15 // pred_region
          %s302 = smul.u32 16, %s18
          %p303 = scmp.lt.s32.totalorder %s302, 31
          %s304 = scalar_select %p303, %s302, 31
          %s305 = smul.addr %s304, 4
          %s306 = scalar_lea.vmem %s3, %s305
          %s307 = smul.u32 16, %s18
        $region69: #{gat_forward.7} parent=15 // pred_fallthru
          _
      $region16: #{gat_forward.7} parent=5 // pred_fallthru
        _
      %p308 = scmp.le.s32.totalorder 1, %s10
      %p309 = scmp.lt.s32.totalorder %s10, 5
      %p310 = pnand %p308, %p309
      %p311 = pneg %p310
      // Predicated region
      $region70: #{gat_forward.7} parent=5 // pred_check
        _
      $region71: #{gat_forward.7} parent=5 // pred_check_branch
        %313 = sbr.rel (%p310) target = $region73
      $region72: #{gat_forward.7} parent=5 // pred_region
        %s314 = ssub.s32 %s10, 1
        %s315 = sand.u32 %s37, 1
        %s316 = sand.u32 %s37, 1
        %s317 = smul.addr %s316, 32
        %s318 = scalar_lea.vmem [#allocation5], %s317
        // Predicated region
        $region74: #{gat_forward.7} parent=72 // pred_check
          %p319 = pneg %p50
        $region75: #{gat_forward.7} parent=72 // pred_check_branch
          %321 = sbr.rel (%p319) target = $region77
        $region76: #{gat_forward.7} parent=72 // pred_region
          _
        $region77: #{gat_forward.7} parent=72 // pred_fallthru
          _
        %s322 = sand.u32 %s37, 1
        %s323 = sand.u32 %s37, 1
        %s324 = smul.addr %s323, 32
        %s325 = scalar_lea.vmem [#allocation5], %s324
        %p326 = pneg %p50
        %p327 = pneg %p47
        %s328 = smul.u32 16, %s19
        %p329 = scmp.lt.s32.totalorder %s328, 31
        %s330 = scalar_select %p329, %s328, 31
        %s331 = smul.addr %s330, 8
        %s332 = scalar_lea.vmem %s1, %s331
        %p333 = pneg %p76
        %p334 = pneg %p73
        %p335 = scmp.lt.s32.totalorder %s20, 1
        %s336 = scalar_select %p335, %s20, 1
        %s337 = scalar_lea.vmem %s2, %s336
        %p338 = pneg %p102
        %p339 = pneg %p99
        %s340 = smul.u32 16, %s20
        %p341 = scmp.lt.s32.totalorder %s340, 31
        %s342 = scalar_select %p341, %s340, 31
        %s343 = smul.addr %s342, 4
        %s344 = scalar_lea.vmem %s3, %s343
        %p345 = pneg %p128
        %p346 = pneg %p125
        %p347 = pneg %p154
        %p348 = pneg %p151
        %s349 = smul.u32 16, %s19
        %p350 = scmp.lt.s32.totalorder %s349, 31
        %s351 = scalar_select %p350, %s349, 31
        %s352 = smul.addr %s351, 8
        %s353 = scalar_lea.vmem %s4, %s352
        %s354 = smul.u32 16, %s19
        %s355 = smul.u32 16, %s19
        %p356 = scmp.lt.s32.totalorder %s355, 31
        %s357 = scalar_select %p356, %s355, 31
        %s358 = smul.addr %s357, 8
        %s359 = scalar_lea.vmem %s1, %s358
        %s360 = smul.u32 16, %s19
        %p361 = scmp.lt.s32.totalorder %s20, 1
        %s362 = scalar_select %p361, %s20, 1
        %s363 = scalar_lea.vmem %s2, %s362
        %s364 = smul.u32 16, %s20
        %p365 = scmp.lt.s32.totalorder %s364, 31
        %s366 = scalar_select %p365, %s364, 31
        %s367 = smul.addr %s366, 4
        %s368 = scalar_lea.vmem %s3, %s367
        %s369 = smul.u32 16, %s20
        %s370 = smul.u32 16, %s19
        %p371 = scmp.lt.s32.totalorder %s370, 31
        %s372 = scalar_select %p371, %s370, 31
        %s373 = smul.addr %s372, 8
        %s374 = scalar_lea.vmem %s4, %s373
        %s375 = smul.u32 16, %s19
        %p379 = scmp.eq.s32.totalorder %s20, 0
        // Predicated region
        $region78: #{gat_forward.7} parent=72 // pred_check
          %p380 = pneg %p379
        $region79: #{gat_forward.7} parent=72 // pred_check_branch
          %382 = sbr.rel (%p380) target = $region81
        $region80: #{gat_forward.7} parent=72 // pred_region
          %vm383 = vcmask 7168
          %384 = vst.msk [vmem:[#allocation2] sm:$0xff] %vm383, -1e+30
          %385 = vst.msk [vmem:[#allocation2 + $0x8] sm:$0xff] %vm383, -1e+30
          %386 = vst.msk [vmem:[#allocation2 + $0x10] sm:$0xff] %vm383, -1e+30
          %387 = vst.msk [vmem:[#allocation2 + $0x18] sm:$0xff] %vm383, -1e+30
          %388 = vst.msk [vmem:[#allocation2 + $0x20] sm:$0xff] %vm383, -1e+30
          %389 = vst.msk [vmem:[#allocation2 + $0x28] sm:$0xff] %vm383, -1e+30
          %390 = vst.msk [vmem:[#allocation2 + $0x30] sm:$0xff] %vm383, -1e+30
          %391 = vst.msk [vmem:[#allocation2 + $0x38] sm:$0xff] %vm383, -1e+30
          %392 = vst.msk [vmem:[#allocation2 + $0x40] sm:$0xff] %vm383, -1e+30
          %393 = vst.msk [vmem:[#allocation2 + $0x48] sm:$0xff] %vm383, -1e+30
          %394 = vst.msk [vmem:[#allocation2 + $0x50] sm:$0xff] %vm383, -1e+30
          %395 = vst.msk [vmem:[#allocation2 + $0x58] sm:$0xff] %vm383, -1e+30
          %396 = vst.msk [vmem:[#allocation2 + $0x60] sm:$0xff] %vm383, -1e+30
          %397 = vst.msk [vmem:[#allocation2 + $0x68] sm:$0xff] %vm383, -1e+30
          %398 = vst.msk [vmem:[#allocation2 + $0x70] sm:$0xff] %vm383, -1e+30
          %399 = vst.msk [vmem:[#allocation2 + $0x78] sm:$0xff] %vm383, -1e+30
          %400 = vst.msk [vmem:[#allocation3] sm:$0xff] %vm383, 0.0
          %401 = vst.msk [vmem:[#allocation3 + $0x8] sm:$0xff] %vm383, 0.0
          %402 = vst.msk [vmem:[#allocation3 + $0x10] sm:$0xff] %vm383, 0.0
          %403 = vst.msk [vmem:[#allocation3 + $0x18] sm:$0xff] %vm383, 0.0
          %404 = vst.msk [vmem:[#allocation3 + $0x20] sm:$0xff] %vm383, 0.0
          %405 = vst.msk [vmem:[#allocation3 + $0x28] sm:$0xff] %vm383, 0.0
          %406 = vst.msk [vmem:[#allocation3 + $0x30] sm:$0xff] %vm383, 0.0
          %407 = vst.msk [vmem:[#allocation3 + $0x38] sm:$0xff] %vm383, 0.0
          %408 = vst.msk [vmem:[#allocation3 + $0x40] sm:$0xff] %vm383, 0.0
          %409 = vst.msk [vmem:[#allocation3 + $0x48] sm:$0xff] %vm383, 0.0
          %410 = vst.msk [vmem:[#allocation3 + $0x50] sm:$0xff] %vm383, 0.0
          %411 = vst.msk [vmem:[#allocation3 + $0x58] sm:$0xff] %vm383, 0.0
          %412 = vst.msk [vmem:[#allocation3 + $0x60] sm:$0xff] %vm383, 0.0
          %413 = vst.msk [vmem:[#allocation3 + $0x68] sm:$0xff] %vm383, 0.0
          %414 = vst.msk [vmem:[#allocation3 + $0x70] sm:$0xff] %vm383, 0.0
          %415 = vst.msk [vmem:[#allocation3 + $0x78] sm:$0xff] %vm383, 0.0
          %416 = vst [vmem:[#allocation4] sm:$0xff] 0.0
          %417 = vst [vmem:[#allocation4 + $0x8] sm:$0xff] 0.0
          %418 = vst [vmem:[#allocation4 + $0x10] sm:$0xff] 0.0
          %419 = vst [vmem:[#allocation4 + $0x18] sm:$0xff] 0.0
          %420 = vst [vmem:[#allocation4 + $0x20] sm:$0xff] 0.0
          %421 = vst [vmem:[#allocation4 + $0x28] sm:$0xff] 0.0
          %422 = vst [vmem:[#allocation4 + $0x30] sm:$0xff] 0.0
          %423 = vst [vmem:[#allocation4 + $0x38] sm:$0xff] 0.0
          %424 = vst [vmem:[#allocation4 + $0x40] sm:$0xff] 0.0
          %425 = vst [vmem:[#allocation4 + $0x48] sm:$0xff] 0.0
          %426 = vst [vmem:[#allocation4 + $0x50] sm:$0xff] 0.0
          %427 = vst [vmem:[#allocation4 + $0x58] sm:$0xff] 0.0
          %428 = vst [vmem:[#allocation4 + $0x60] sm:$0xff] 0.0
          %429 = vst [vmem:[#allocation4 + $0x68] sm:$0xff] 0.0
          %430 = vst [vmem:[#allocation4 + $0x70] sm:$0xff] 0.0
          %431 = vst [vmem:[#allocation4 + $0x78] sm:$0xff] 0.0
        $region81: #{gat_forward.7} parent=72 // pred_fallthru
          _
        %v432 = vld [vmem:[%s359] sm:$0xff]
        %v433 = vld [vmem:[%s359 + $0x8] sm:$0xff]
        %v434 = vld [vmem:[%s359 + $0x10] sm:$0xff]
        %v435 = vld [vmem:[%s359 + $0x18] sm:$0xff]
        %v436 = vld [vmem:[%s359 + $0x20] sm:$0xff]
        %v437 = vld [vmem:[%s359 + $0x28] sm:$0xff]
        %v438 = vld [vmem:[%s359 + $0x30] sm:$0xff]
        %v439 = vld [vmem:[%s359 + $0x38] sm:$0xff]
        %v440 = vld [vmem:[%s359 + $0x40] sm:$0xff]
        %v441 = vld [vmem:[%s359 + $0x48] sm:$0xff]
        %v442 = vld [vmem:[%s359 + $0x50] sm:$0xff]
        %v443 = vld [vmem:[%s359 + $0x58] sm:$0xff]
        %v444 = vld [vmem:[%s359 + $0x60] sm:$0xff]
        %v445 = vld [vmem:[%s359 + $0x68] sm:$0xff]
        %v446 = vld [vmem:[%s359 + $0x70] sm:$0xff]
        %v447 = vld [vmem:[%s359 + $0x78] sm:$0xff]
        %v448 = vld [vmem:[%s363] sm:$0x1]
        %450 = vset.pattern.permute.xlu0 0
        %451 = vperm.xlu0 %450, %v432
        %v452 = vpop.permute.xlu0 %451
        %455 = vset.pattern.permute.xlu0 0
        %456 = vperm.xlu0 %455, %v433
        %v457 = vpop.permute.xlu0 %456
        %460 = vset.pattern.permute.xlu0 0
        %461 = vperm.xlu0 %460, %v434
        %v462 = vpop.permute.xlu0 %461
        %465 = vset.pattern.permute.xlu0 0
        %466 = vperm.xlu0 %465, %v435
        %v467 = vpop.permute.xlu0 %466
        %470 = vset.pattern.permute.xlu0 0
        %471 = vperm.xlu0 %470, %v436
        %v472 = vpop.permute.xlu0 %471
        %475 = vset.pattern.permute.xlu0 0
        %476 = vperm.xlu0 %475, %v437
        %v477 = vpop.permute.xlu0 %476
        %480 = vset.pattern.permute.xlu0 0
        %481 = vperm.xlu0 %480, %v438
        %v482 = vpop.permute.xlu0 %481
        %485 = vset.pattern.permute.xlu0 0
        %486 = vperm.xlu0 %485, %v439
        %v487 = vpop.permute.xlu0 %486
        %490 = vset.pattern.permute.xlu0 0
        %491 = vperm.xlu0 %490, %v440
        %v492 = vpop.permute.xlu0 %491
        %495 = vset.pattern.permute.xlu0 0
        %496 = vperm.xlu0 %495, %v441
        %v497 = vpop.permute.xlu0 %496
        %500 = vset.pattern.permute.xlu0 0
        %501 = vperm.xlu0 %500, %v442
        %v502 = vpop.permute.xlu0 %501
        %505 = vset.pattern.permute.xlu0 0
        %506 = vperm.xlu0 %505, %v443
        %v507 = vpop.permute.xlu0 %506
        %510 = vset.pattern.permute.xlu0 0
        %511 = vperm.xlu0 %510, %v444
        %v512 = vpop.permute.xlu0 %511
        %515 = vset.pattern.permute.xlu0 0
        %516 = vperm.xlu0 %515, %v445
        %v517 = vpop.permute.xlu0 %516
        %520 = vset.pattern.permute.xlu0 0
        %521 = vperm.xlu0 %520, %v446
        %v522 = vpop.permute.xlu0 %521
        %525 = vset.pattern.permute.xlu0 0
        %526 = vperm.xlu0 %525, %v447
        %v527 = vpop.permute.xlu0 %526
        %v530 = vlaneseq
        %v531 = vshrl.u32 %v530, 7
        %v532 = vsub.s32 0, %v531
        %v533 = vrot.slane %v448, %v532
        %v535 = vadd.f32 %v452, %v533
        %v536 = vadd.f32 %v457, %v533
        %v537 = vadd.f32 %v462, %v533
        %v538 = vadd.f32 %v467, %v533
        %v539 = vadd.f32 %v472, %v533
        %v540 = vadd.f32 %v477, %v533
        %v541 = vadd.f32 %v482, %v533
        %v542 = vadd.f32 %v487, %v533
        %v543 = vadd.f32 %v492, %v533
        %v544 = vadd.f32 %v497, %v533
        %v545 = vadd.f32 %v502, %v533
        %v546 = vadd.f32 %v507, %v533
        %v547 = vadd.f32 %v512, %v533
        %v548 = vadd.f32 %v517, %v533
        %v549 = vadd.f32 %v522, %v533
        %v550 = vadd.f32 %v527, %v533
        %v551 = vmul.f32 %v535, 0.01
        %v552 = vmul.f32 %v536, 0.01
        %v553 = vmul.f32 %v537, 0.01
        %v554 = vmul.f32 %v538, 0.01
        %v555 = vmul.f32 %v539, 0.01
        %v556 = vmul.f32 %v540, 0.01
        %v557 = vmul.f32 %v541, 0.01
        %v558 = vmul.f32 %v542, 0.01
        %v559 = vmul.f32 %v543, 0.01
        %v560 = vmul.f32 %v544, 0.01
        %v561 = vmul.f32 %v545, 0.01
        %v562 = vmul.f32 %v546, 0.01
        %v563 = vmul.f32 %v547, 0.01
        %v564 = vmul.f32 %v548, 0.01
        %v565 = vmul.f32 %v549, 0.01
        %v566 = vmul.f32 %v550, 0.01
        %v567 = vmax.f32 %v535, %v551
        %v568 = vmax.f32 %v536, %v552
        %v569 = vmax.f32 %v537, %v553
        %v570 = vmax.f32 %v538, %v554
        %v571 = vmax.f32 %v539, %v555
        %v572 = vmax.f32 %v540, %v556
        %v573 = vmax.f32 %v541, %v557
        %v574 = vmax.f32 %v542, %v558
        %v575 = vmax.f32 %v543, %v559
        %v576 = vmax.f32 %v544, %v560
        %v577 = vmax.f32 %v545, %v561
        %v578 = vmax.f32 %v546, %v562
        %v579 = vmax.f32 %v547, %v563
        %v580 = vmax.f32 %v548, %v564
        %v581 = vmax.f32 %v549, %v565
        %v582 = vmax.f32 %v550, %v566
        %v583 = vld [vmem:[%s318] sm:$0x3]
        %v584 = vld [vmem:[%s318 + $0x2] sm:$0x3]
        %v585 = vld [vmem:[%s318 + $0x4] sm:$0x3]
        %v586 = vld [vmem:[%s318 + $0x6] sm:$0x3]
        %v587 = vld [vmem:[%s318 + $0x8] sm:$0x3]
        %v588 = vld [vmem:[%s318 + $0xa] sm:$0x3]
        %v589 = vld [vmem:[%s318 + $0xc] sm:$0x3]
        %v590 = vld [vmem:[%s318 + $0xe] sm:$0x3]
        %v591 = vld [vmem:[%s318 + $0x10] sm:$0x3]
        %v592 = vld [vmem:[%s318 + $0x12] sm:$0x3]
        %v593 = vld [vmem:[%s318 + $0x14] sm:$0x3]
        %v594 = vld [vmem:[%s318 + $0x16] sm:$0x3]
        %v595 = vld [vmem:[%s318 + $0x18] sm:$0x3]
        %v596 = vld [vmem:[%s318 + $0x1a] sm:$0x3]
        %v597 = vld [vmem:[%s318 + $0x1c] sm:$0x3]
        %v598 = vld [vmem:[%s318 + $0x1e] sm:$0x3]
        %vm599 = vnez %v583
        %vm600 = vnez %v584
        %vm601 = vnez %v585
        %vm602 = vnez %v586
        %vm603 = vnez %v587
        %vm604 = vnez %v588
        %vm605 = vnez %v589
        %vm606 = vnez %v590
        %vm607 = vnez %v591
        %vm608 = vnez %v592
        %vm609 = vnez %v593
        %vm610 = vnez %v594
        %vm611 = vnez %v595
        %vm612 = vnez %v596
        %vm613 = vnez %v597
        %vm614 = vnez %v598
        %v615 = vsel %vm599, 16843009, 0
        %v616 = vsel %vm600, 16843009, 0
        %v617 = vsel %vm601, 16843009, 0
        %v618 = vsel %vm602, 16843009, 0
        %v619 = vsel %vm603, 16843009, 0
        %v620 = vsel %vm604, 16843009, 0
        %v621 = vsel %vm605, 16843009, 0
        %v622 = vsel %vm606, 16843009, 0
        %v623 = vsel %vm607, 16843009, 0
        %v624 = vsel %vm608, 16843009, 0
        %v625 = vsel %vm609, 16843009, 0
        %v626 = vsel %vm610, 16843009, 0
        %v627 = vsel %vm611, 16843009, 0
        %v628 = vsel %vm612, 16843009, 0
        %v629 = vsel %vm613, 16843009, 0
        %v630 = vsel %vm614, 16843009, 0
        %v631 = vunpack.c.0.s8 %v615
        %v632 = vunpack.c.0.s8 %v616
        %v633 = vunpack.c.0.s8 %v617
        %v634 = vunpack.c.0.s8 %v618
        %v635 = vunpack.c.0.s8 %v619
        %v636 = vunpack.c.0.s8 %v620
        %v637 = vunpack.c.0.s8 %v621
        %v638 = vunpack.c.0.s8 %v622
        %v639 = vunpack.c.0.s8 %v623
        %v640 = vunpack.c.0.s8 %v624
        %v641 = vunpack.c.0.s8 %v625
        %v642 = vunpack.c.0.s8 %v626
        %v643 = vunpack.c.0.s8 %v627
        %v644 = vunpack.c.0.s8 %v628
        %v645 = vunpack.c.0.s8 %v629
        %v646 = vunpack.c.0.s8 %v630
        %vm647 = vcmp.ne.s32.totalorder %v631, 0
        %vm648 = vcmp.ne.s32.totalorder %v632, 0
        %vm649 = vcmp.ne.s32.totalorder %v633, 0
        %vm650 = vcmp.ne.s32.totalorder %v634, 0
        %vm651 = vcmp.ne.s32.totalorder %v635, 0
        %vm652 = vcmp.ne.s32.totalorder %v636, 0
        %vm653 = vcmp.ne.s32.totalorder %v637, 0
        %vm654 = vcmp.ne.s32.totalorder %v638, 0
        %vm655 = vcmp.ne.s32.totalorder %v639, 0
        %vm656 = vcmp.ne.s32.totalorder %v640, 0
        %vm657 = vcmp.ne.s32.totalorder %v641, 0
        %vm658 = vcmp.ne.s32.totalorder %v642, 0
        %vm659 = vcmp.ne.s32.totalorder %v643, 0
        %vm660 = vcmp.ne.s32.totalorder %v644, 0
        %vm661 = vcmp.ne.s32.totalorder %v645, 0
        %vm662 = vcmp.ne.s32.totalorder %v646, 0
        %v663 = vsel %vm647, %v567, -1e+30
        %v664 = vsel %vm648, %v568, -1e+30
        %v665 = vsel %vm649, %v569, -1e+30
        %v666 = vsel %vm650, %v570, -1e+30
        %v667 = vsel %vm651, %v571, -1e+30
        %v668 = vsel %vm652, %v572, -1e+30
        %v669 = vsel %vm653, %v573, -1e+30
        %v670 = vsel %vm654, %v574, -1e+30
        %v671 = vsel %vm655, %v575, -1e+30
        %v672 = vsel %vm656, %v576, -1e+30
        %v673 = vsel %vm657, %v577, -1e+30
        %v674 = vsel %vm658, %v578, -1e+30
        %v675 = vsel %vm659, %v579, -1e+30
        %v676 = vsel %vm660, %v580, -1e+30
        %v677 = vsel %vm661, %v581, -1e+30
        %v678 = vsel %vm662, %v582, -1e+30
        %v679 = vld [vmem:[#allocation2] sm:$0xff]
        %v680 = vld [vmem:[#allocation2 + $0x8] sm:$0xff]
        %v681 = vld [vmem:[#allocation2 + $0x10] sm:$0xff]
        %v682 = vld [vmem:[#allocation2 + $0x18] sm:$0xff]
        %v683 = vld [vmem:[#allocation2 + $0x20] sm:$0xff]
        %v684 = vld [vmem:[#allocation2 + $0x28] sm:$0xff]
        %v685 = vld [vmem:[#allocation2 + $0x30] sm:$0xff]
        %v686 = vld [vmem:[#allocation2 + $0x38] sm:$0xff]
        %v687 = vld [vmem:[#allocation2 + $0x40] sm:$0xff]
        %v688 = vld [vmem:[#allocation2 + $0x48] sm:$0xff]
        %v689 = vld [vmem:[#allocation2 + $0x50] sm:$0xff]
        %v690 = vld [vmem:[#allocation2 + $0x58] sm:$0xff]
        %v691 = vld [vmem:[#allocation2 + $0x60] sm:$0xff]
        %v692 = vld [vmem:[#allocation2 + $0x68] sm:$0xff]
        %v693 = vld [vmem:[#allocation2 + $0x70] sm:$0xff]
        %v694 = vld [vmem:[#allocation2 + $0x78] sm:$0xff]
        %695 = vmax.xlane.f32.xlu0 %v663
        %v696 = vpop.xlane.xlu0 %695
        %697 = vmax.xlane.f32.xlu0 %v664
        %v698 = vpop.xlane.xlu0 %697
        %699 = vmax.xlane.f32.xlu0 %v665
        %v700 = vpop.xlane.xlu0 %699
        %701 = vmax.xlane.f32.xlu0 %v666
        %v702 = vpop.xlane.xlu0 %701
        %703 = vmax.xlane.f32.xlu0 %v667
        %v704 = vpop.xlane.xlu0 %703
        %705 = vmax.xlane.f32.xlu0 %v668
        %v706 = vpop.xlane.xlu0 %705
        %707 = vmax.xlane.f32.xlu0 %v669
        %v708 = vpop.xlane.xlu0 %707
        %709 = vmax.xlane.f32.xlu0 %v670
        %v710 = vpop.xlane.xlu0 %709
        %711 = vmax.xlane.f32.xlu0 %v671
        %v712 = vpop.xlane.xlu0 %711
        %713 = vmax.xlane.f32.xlu0 %v672
        %v714 = vpop.xlane.xlu0 %713
        %715 = vmax.xlane.f32.xlu0 %v673
        %v716 = vpop.xlane.xlu0 %715
        %717 = vmax.xlane.f32.xlu0 %v674
        %v718 = vpop.xlane.xlu0 %717
        %719 = vmax.xlane.f32.xlu0 %v675
        %v720 = vpop.xlane.xlu0 %719
        %721 = vmax.xlane.f32.xlu0 %v676
        %v722 = vpop.xlane.xlu0 %721
        %723 = vmax.xlane.f32.xlu0 %v677
        %v724 = vpop.xlane.xlu0 %723
        %725 = vmax.xlane.f32.xlu0 %v678
        %v726 = vpop.xlane.xlu0 %725
        %v727 = vmax.f32 %v679, %v696
        %v728 = vmax.f32 %v680, %v698
        %v729 = vmax.f32 %v681, %v700
        %v730 = vmax.f32 %v682, %v702
        %v731 = vmax.f32 %v683, %v704
        %v732 = vmax.f32 %v684, %v706
        %v733 = vmax.f32 %v685, %v708
        %v734 = vmax.f32 %v686, %v710
        %v735 = vmax.f32 %v687, %v712
        %v736 = vmax.f32 %v688, %v714
        %v737 = vmax.f32 %v689, %v716
        %v738 = vmax.f32 %v690, %v718
        %v739 = vmax.f32 %v691, %v720
        %v740 = vmax.f32 %v692, %v722
        %v741 = vmax.f32 %v693, %v724
        %v742 = vmax.f32 %v694, %v726
        %v743 = vsub.f32 %v679, %v727
        %v744 = vsub.f32 %v680, %v728
        %v745 = vsub.f32 %v681, %v729
        %v746 = vsub.f32 %v682, %v730
        %v747 = vsub.f32 %v683, %v731
        %v748 = vsub.f32 %v684, %v732
        %v749 = vsub.f32 %v685, %v733
        %v750 = vsub.f32 %v686, %v734
        %v751 = vsub.f32 %v687, %v735
        %v752 = vsub.f32 %v688, %v736
        %v753 = vsub.f32 %v689, %v737
        %v754 = vsub.f32 %v690, %v738
        %v755 = vsub.f32 %v691, %v739
        %v756 = vsub.f32 %v692, %v740
        %v757 = vsub.f32 %v693, %v741
        %v758 = vsub.f32 %v694, %v742
        %v759 = vmul.f32 %v743, 1.442695
        %v760 = vpow.pop %v759
        %v761 = vmul.f32 %v744, 1.442695
        %v762 = vpow.pop %v761
        %v763 = vmul.f32 %v745, 1.442695
        %v764 = vpow.pop %v763
        %v765 = vmul.f32 %v746, 1.442695
        %v766 = vpow.pop %v765
        %v767 = vmul.f32 %v747, 1.442695
        %v768 = vpow.pop %v767
        %v769 = vmul.f32 %v748, 1.442695
        %v770 = vpow.pop %v769
        %v771 = vmul.f32 %v749, 1.442695
        %v772 = vpow.pop %v771
        %v773 = vmul.f32 %v750, 1.442695
        %v774 = vpow.pop %v773
        %v775 = vmul.f32 %v751, 1.442695
        %v776 = vpow.pop %v775
        %v777 = vmul.f32 %v752, 1.442695
        %v778 = vpow.pop %v777
        %v779 = vmul.f32 %v753, 1.442695
        %v780 = vpow.pop %v779
        %v781 = vmul.f32 %v754, 1.442695
        %v782 = vpow.pop %v781
        %v783 = vmul.f32 %v755, 1.442695
        %v784 = vpow.pop %v783
        %v785 = vmul.f32 %v756, 1.442695
        %v786 = vpow.pop %v785
        %v787 = vmul.f32 %v757, 1.442695
        %v788 = vpow.pop %v787
        %v789 = vmul.f32 %v758, 1.442695
        %v790 = vpow.pop %v789
        %792 = vset.pattern.permute.xlu0 0
        %793 = vperm.xlu0 %792, %v727
        %v794 = vpop.permute.xlu0 %793
        %797 = vset.pattern.permute.xlu0 0
        %798 = vperm.xlu0 %797, %v728
        %v799 = vpop.permute.xlu0 %798
        %802 = vset.pattern.permute.xlu0 0
        %803 = vperm.xlu0 %802, %v729
        %v804 = vpop.permute.xlu0 %803
        %807 = vset.pattern.permute.xlu0 0
        %808 = vperm.xlu0 %807, %v730
        %v809 = vpop.permute.xlu0 %808
        %812 = vset.pattern.permute.xlu0 0
        %813 = vperm.xlu0 %812, %v731
        %v814 = vpop.permute.xlu0 %813
        %817 = vset.pattern.permute.xlu0 0
        %818 = vperm.xlu0 %817, %v732
        %v819 = vpop.permute.xlu0 %818
        %822 = vset.pattern.permute.xlu0 0
        %823 = vperm.xlu0 %822, %v733
        %v824 = vpop.permute.xlu0 %823
        %827 = vset.pattern.permute.xlu0 0
        %828 = vperm.xlu0 %827, %v734
        %v829 = vpop.permute.xlu0 %828
        %832 = vset.pattern.permute.xlu0 0
        %833 = vperm.xlu0 %832, %v735
        %v834 = vpop.permute.xlu0 %833
        %837 = vset.pattern.permute.xlu0 0
        %838 = vperm.xlu0 %837, %v736
        %v839 = vpop.permute.xlu0 %838
        %842 = vset.pattern.permute.xlu0 0
        %843 = vperm.xlu0 %842, %v737
        %v844 = vpop.permute.xlu0 %843
        %847 = vset.pattern.permute.xlu0 0
        %848 = vperm.xlu0 %847, %v738
        %v849 = vpop.permute.xlu0 %848
        %852 = vset.pattern.permute.xlu0 0
        %853 = vperm.xlu0 %852, %v739
        %v854 = vpop.permute.xlu0 %853
        %857 = vset.pattern.permute.xlu0 0
        %858 = vperm.xlu0 %857, %v740
        %v859 = vpop.permute.xlu0 %858
        %862 = vset.pattern.permute.xlu0 0
        %863 = vperm.xlu0 %862, %v741
        %v864 = vpop.permute.xlu0 %863
        %867 = vset.pattern.permute.xlu0 0
        %868 = vperm.xlu0 %867, %v742
        %v869 = vpop.permute.xlu0 %868
        %v871 = vsub.f32 %v663, %v794
        %v872 = vsub.f32 %v664, %v799
        %v873 = vsub.f32 %v665, %v804
        %v874 = vsub.f32 %v666, %v809
        %v875 = vsub.f32 %v667, %v814
        %v876 = vsub.f32 %v668, %v819
        %v877 = vsub.f32 %v669, %v824
        %v878 = vsub.f32 %v670, %v829
        %v879 = vsub.f32 %v671, %v834
        %v880 = vsub.f32 %v672, %v839
        %v881 = vsub.f32 %v673, %v844
        %v882 = vsub.f32 %v674, %v849
        %v883 = vsub.f32 %v675, %v854
        %v884 = vsub.f32 %v676, %v859
        %v885 = vsub.f32 %v677, %v864
        %v886 = vsub.f32 %v678, %v869
        %v887 = vmul.f32 %v871, 1.442695
        %v888 = vpow.pop %v887
        %v889 = vmul.f32 %v872, 1.442695
        %v890 = vpow.pop %v889
        %v891 = vmul.f32 %v873, 1.442695
        %v892 = vpow.pop %v891
        %v893 = vmul.f32 %v874, 1.442695
        %v894 = vpow.pop %v893
        %v895 = vmul.f32 %v875, 1.442695
        %v896 = vpow.pop %v895
        %v897 = vmul.f32 %v876, 1.442695
        %v898 = vpow.pop %v897
        %v899 = vmul.f32 %v877, 1.442695
        %v900 = vpow.pop %v899
        %v901 = vmul.f32 %v878, 1.442695
        %v902 = vpow.pop %v901
        %v903 = vmul.f32 %v879, 1.442695
        %v904 = vpow.pop %v903
        %v905 = vmul.f32 %v880, 1.442695
        %v906 = vpow.pop %v905
        %v907 = vmul.f32 %v881, 1.442695
        %v908 = vpow.pop %v907
        %v909 = vmul.f32 %v882, 1.442695
        %v910 = vpow.pop %v909
        %v911 = vmul.f32 %v883, 1.442695
        %v912 = vpow.pop %v911
        %v913 = vmul.f32 %v884, 1.442695
        %v914 = vpow.pop %v913
        %v915 = vmul.f32 %v885, 1.442695
        %v916 = vpow.pop %v915
        %v917 = vmul.f32 %v886, 1.442695
        %v918 = vpow.pop %v917
        %v919 = vld [vmem:[#allocation3] sm:$0xff]
        %v920 = vld [vmem:[#allocation3 + $0x8] sm:$0xff]
        %v921 = vld [vmem:[#allocation3 + $0x10] sm:$0xff]
        %v922 = vld [vmem:[#allocation3 + $0x18] sm:$0xff]
        %v923 = vld [vmem:[#allocation3 + $0x20] sm:$0xff]
        %v924 = vld [vmem:[#allocation3 + $0x28] sm:$0xff]
        %v925 = vld [vmem:[#allocation3 + $0x30] sm:$0xff]
        %v926 = vld [vmem:[#allocation3 + $0x38] sm:$0xff]
        %v927 = vld [vmem:[#allocation3 + $0x40] sm:$0xff]
        %v928 = vld [vmem:[#allocation3 + $0x48] sm:$0xff]
        %v929 = vld [vmem:[#allocation3 + $0x50] sm:$0xff]
        %v930 = vld [vmem:[#allocation3 + $0x58] sm:$0xff]
        %v931 = vld [vmem:[#allocation3 + $0x60] sm:$0xff]
        %v932 = vld [vmem:[#allocation3 + $0x68] sm:$0xff]
        %v933 = vld [vmem:[#allocation3 + $0x70] sm:$0xff]
        %v934 = vld [vmem:[#allocation3 + $0x78] sm:$0xff]
        %v935 = vmul.f32 %v760, %v919
        %v936 = vmul.f32 %v762, %v920
        %v937 = vmul.f32 %v764, %v921
        %v938 = vmul.f32 %v766, %v922
        %v939 = vmul.f32 %v768, %v923
        %v940 = vmul.f32 %v770, %v924
        %v941 = vmul.f32 %v772, %v925
        %v942 = vmul.f32 %v774, %v926
        %v943 = vmul.f32 %v776, %v927
        %v944 = vmul.f32 %v778, %v928
        %v945 = vmul.f32 %v780, %v929
        %v946 = vmul.f32 %v782, %v930
        %v947 = vmul.f32 %v784, %v931
        %v948 = vmul.f32 %v786, %v932
        %v949 = vmul.f32 %v788, %v933
        %v950 = vmul.f32 %v790, %v934
        %951 = vadd.xlane.f32.xlu0 %v888
        %v952 = vpop.xlane.xlu0 %951
        %953 = vadd.xlane.f32.xlu0 %v890
        %v954 = vpop.xlane.xlu0 %953
        %955 = vadd.xlane.f32.xlu0 %v892
        %v956 = vpop.xlane.xlu0 %955
        %957 = vadd.xlane.f32.xlu0 %v894
        %v958 = vpop.xlane.xlu0 %957
        %959 = vadd.xlane.f32.xlu0 %v896
        %v960 = vpop.xlane.xlu0 %959
        %961 = vadd.xlane.f32.xlu0 %v898
        %v962 = vpop.xlane.xlu0 %961
        %963 = vadd.xlane.f32.xlu0 %v900
        %v964 = vpop.xlane.xlu0 %963
        %965 = vadd.xlane.f32.xlu0 %v902
        %v966 = vpop.xlane.xlu0 %965
        %967 = vadd.xlane.f32.xlu0 %v904
        %v968 = vpop.xlane.xlu0 %967
        %969 = vadd.xlane.f32.xlu0 %v906
        %v970 = vpop.xlane.xlu0 %969
        %971 = vadd.xlane.f32.xlu0 %v908
        %v972 = vpop.xlane.xlu0 %971
        %973 = vadd.xlane.f32.xlu0 %v910
        %v974 = vpop.xlane.xlu0 %973
        %975 = vadd.xlane.f32.xlu0 %v912
        %v976 = vpop.xlane.xlu0 %975
        %977 = vadd.xlane.f32.xlu0 %v914
        %v978 = vpop.xlane.xlu0 %977
        %979 = vadd.xlane.f32.xlu0 %v916
        %v980 = vpop.xlane.xlu0 %979
        %981 = vadd.xlane.f32.xlu0 %v918
        %v982 = vpop.xlane.xlu0 %981
        %v983 = vadd.f32 %v935, %v952
        %v984 = vadd.f32 %v936, %v954
        %v985 = vadd.f32 %v937, %v956
        %v986 = vadd.f32 %v938, %v958
        %v987 = vadd.f32 %v939, %v960
        %v988 = vadd.f32 %v940, %v962
        %v989 = vadd.f32 %v941, %v964
        %v990 = vadd.f32 %v942, %v966
        %v991 = vadd.f32 %v943, %v968
        %v992 = vadd.f32 %v944, %v970
        %v993 = vadd.f32 %v945, %v972
        %v994 = vadd.f32 %v946, %v974
        %v995 = vadd.f32 %v947, %v976
        %v996 = vadd.f32 %v948, %v978
        %v997 = vadd.f32 %v949, %v980
        %v998 = vadd.f32 %v950, %v982
        %vm999 = vcmask 7168
        %1000 = vst.msk [vmem:[#allocation3] sm:$0xff] %vm999, %v983
        %1001 = vst.msk [vmem:[#allocation3 + $0x8] sm:$0xff] %vm999, %v984
        %1002 = vst.msk [vmem:[#allocation3 + $0x10] sm:$0xff] %vm999, %v985
        %1003 = vst.msk [vmem:[#allocation3 + $0x18] sm:$0xff] %vm999, %v986
        %1004 = vst.msk [vmem:[#allocation3 + $0x20] sm:$0xff] %vm999, %v987
        %1005 = vst.msk [vmem:[#allocation3 + $0x28] sm:$0xff] %vm999, %v988
        %1006 = vst.msk [vmem:[#allocation3 + $0x30] sm:$0xff] %vm999, %v989
        %1007 = vst.msk [vmem:[#allocation3 + $0x38] sm:$0xff] %vm999, %v990
        %1008 = vst.msk [vmem:[#allocation3 + $0x40] sm:$0xff] %vm999, %v991
        %1009 = vst.msk [vmem:[#allocation3 + $0x48] sm:$0xff] %vm999, %v992
        %1010 = vst.msk [vmem:[#allocation3 + $0x50] sm:$0xff] %vm999, %v993
        %1011 = vst.msk [vmem:[#allocation3 + $0x58] sm:$0xff] %vm999, %v994
        %1012 = vst.msk [vmem:[#allocation3 + $0x60] sm:$0xff] %vm999, %v995
        %1013 = vst.msk [vmem:[#allocation3 + $0x68] sm:$0xff] %vm999, %v996
        %1014 = vst.msk [vmem:[#allocation3 + $0x70] sm:$0xff] %vm999, %v997
        %1015 = vst.msk [vmem:[#allocation3 + $0x78] sm:$0xff] %vm999, %v998
        %v1016 = vld [vmem:[#allocation4] sm:$0xff]
        %v1017 = vld [vmem:[#allocation4 + $0x8] sm:$0xff]
        %v1018 = vld [vmem:[#allocation4 + $0x10] sm:$0xff]
        %v1019 = vld [vmem:[#allocation4 + $0x18] sm:$0xff]
        %v1020 = vld [vmem:[#allocation4 + $0x20] sm:$0xff]
        %v1021 = vld [vmem:[#allocation4 + $0x28] sm:$0xff]
        %v1022 = vld [vmem:[#allocation4 + $0x30] sm:$0xff]
        %v1023 = vld [vmem:[#allocation4 + $0x38] sm:$0xff]
        %v1024 = vld [vmem:[#allocation4 + $0x40] sm:$0xff]
        %v1025 = vld [vmem:[#allocation4 + $0x48] sm:$0xff]
        %v1026 = vld [vmem:[#allocation4 + $0x50] sm:$0xff]
        %v1027 = vld [vmem:[#allocation4 + $0x58] sm:$0xff]
        %v1028 = vld [vmem:[#allocation4 + $0x60] sm:$0xff]
        %v1029 = vld [vmem:[#allocation4 + $0x68] sm:$0xff]
        %v1030 = vld [vmem:[#allocation4 + $0x70] sm:$0xff]
        %v1031 = vld [vmem:[#allocation4 + $0x78] sm:$0xff]
        %1033 = vset.pattern.permute.xlu0 0
        %1034 = vperm.xlu0 %1033, %v760
        %v1035 = vpop.permute.xlu0 %1034
        %1038 = vset.pattern.permute.xlu0 0
        %1039 = vperm.xlu0 %1038, %v762
        %v1040 = vpop.permute.xlu0 %1039
        %1043 = vset.pattern.permute.xlu0 0
        %1044 = vperm.xlu0 %1043, %v764
        %v1045 = vpop.permute.xlu0 %1044
        %1048 = vset.pattern.permute.xlu0 0
        %1049 = vperm.xlu0 %1048, %v766
        %v1050 = vpop.permute.xlu0 %1049
        %1053 = vset.pattern.permute.xlu0 0
        %1054 = vperm.xlu0 %1053, %v768
        %v1055 = vpop.permute.xlu0 %1054
        %1058 = vset.pattern.permute.xlu0 0
        %1059 = vperm.xlu0 %1058, %v770
        %v1060 = vpop.permute.xlu0 %1059
        %1063 = vset.pattern.permute.xlu0 0
        %1064 = vperm.xlu0 %1063, %v772
        %v1065 = vpop.permute.xlu0 %1064
        %1068 = vset.pattern.permute.xlu0 0
        %1069 = vperm.xlu0 %1068, %v774
        %v1070 = vpop.permute.xlu0 %1069
        %1073 = vset.pattern.permute.xlu0 0
        %1074 = vperm.xlu0 %1073, %v776
        %v1075 = vpop.permute.xlu0 %1074
        %1078 = vset.pattern.permute.xlu0 0
        %1079 = vperm.xlu0 %1078, %v778
        %v1080 = vpop.permute.xlu0 %1079
        %1083 = vset.pattern.permute.xlu0 0
        %1084 = vperm.xlu0 %1083, %v780
        %v1085 = vpop.permute.xlu0 %1084
        %1088 = vset.pattern.permute.xlu0 0
        %1089 = vperm.xlu0 %1088, %v782
        %v1090 = vpop.permute.xlu0 %1089
        %1093 = vset.pattern.permute.xlu0 0
        %1094 = vperm.xlu0 %1093, %v784
        %v1095 = vpop.permute.xlu0 %1094
        %1098 = vset.pattern.permute.xlu0 0
        %1099 = vperm.xlu0 %1098, %v786
        %v1100 = vpop.permute.xlu0 %1099
        %1103 = vset.pattern.permute.xlu0 0
        %1104 = vperm.xlu0 %1103, %v788
        %v1105 = vpop.permute.xlu0 %1104
        %1108 = vset.pattern.permute.xlu0 0
        %1109 = vperm.xlu0 %1108, %v790
        %v1110 = vpop.permute.xlu0 %1109
        %v1112 = vmul.f32 %v1035, %v1016
        %v1113 = vmul.f32 %v1040, %v1017
        %v1114 = vmul.f32 %v1045, %v1018
        %v1115 = vmul.f32 %v1050, %v1019
        %v1116 = vmul.f32 %v1055, %v1020
        %v1117 = vmul.f32 %v1060, %v1021
        %v1118 = vmul.f32 %v1065, %v1022
        %v1119 = vmul.f32 %v1070, %v1023
        %v1120 = vmul.f32 %v1075, %v1024
        %v1121 = vmul.f32 %v1080, %v1025
        %v1122 = vmul.f32 %v1085, %v1026
        %v1123 = vmul.f32 %v1090, %v1027
        %v1124 = vmul.f32 %v1095, %v1028
        %v1125 = vmul.f32 %v1100, %v1029
        %v1126 = vmul.f32 %v1105, %v1030
        %v1127 = vmul.f32 %v1110, %v1031
        %v1128 = vpack.c.bf16 %v890, %v888
        %v1129 = vpack.c.bf16 %v894, %v892
        %v1130 = vpack.c.bf16 %v898, %v896
        %v1131 = vpack.c.bf16 %v902, %v900
        %v1132 = vpack.c.bf16 %v906, %v904
        %v1133 = vpack.c.bf16 %v910, %v908
        %v1134 = vpack.c.bf16 %v914, %v912
        %v1135 = vpack.c.bf16 %v918, %v916
        %v1136 = vld [vmem:[%s368] sm:$0xf]
        %v1137 = vld [vmem:[%s368 + $0x4] sm:$0xf]
        %v1138 = vld [vmem:[%s368 + $0x8] sm:$0xf]
        %v1139 = vld [vmem:[%s368 + $0xc] sm:$0xf]
        %v1140 = vld [vmem:[%s368 + $0x10] sm:$0xf]
        %v1141 = vld [vmem:[%s368 + $0x14] sm:$0xf]
        %v1142 = vld [vmem:[%s368 + $0x18] sm:$0xf]
        %v1143 = vld [vmem:[%s368 + $0x1c] sm:$0xf]
        %v1144 = vld [vmem:[%s368 + $0x20] sm:$0xf]
        %v1145 = vld [vmem:[%s368 + $0x24] sm:$0xf]
        %v1146 = vld [vmem:[%s368 + $0x28] sm:$0xf]
        %v1147 = vld [vmem:[%s368 + $0x2c] sm:$0xf]
        %v1148 = vld [vmem:[%s368 + $0x30] sm:$0xf]
        %v1149 = vld [vmem:[%s368 + $0x34] sm:$0xf]
        %v1150 = vld [vmem:[%s368 + $0x38] sm:$0xf]
        %v1151 = vld [vmem:[%s368 + $0x3c] sm:$0xf]
        %v1168 = vunpack.c.l.b16 %v1136
        %v1169 = vunpack.c.l.b16 %v1137
        %v1170 = vunpack.c.l.b16 %v1138
        %v1171 = vunpack.c.l.b16 %v1139
        %v1172 = vunpack.c.l.b16 %v1140
        %v1173 = vunpack.c.l.b16 %v1141
        %v1174 = vunpack.c.l.b16 %v1142
        %v1175 = vunpack.c.l.b16 %v1143
        %v1176 = vunpack.c.l.b16 %v1144
        %v1177 = vunpack.c.l.b16 %v1145
        %v1178 = vunpack.c.l.b16 %v1146
        %v1179 = vunpack.c.l.b16 %v1147
        %v1180 = vunpack.c.l.b16 %v1148
        %v1181 = vunpack.c.l.b16 %v1149
        %v1182 = vunpack.c.l.b16 %v1150
        %v1183 = vunpack.c.l.b16 %v1151
        %v1184 = vpack.c.b16 %v1169, %v1168
        %v1185 = vpack.c.b16 %v1171, %v1170
        %v1186 = vpack.c.b16 %v1173, %v1172
        %v1187 = vpack.c.b16 %v1175, %v1174
        %v1188 = vpack.c.b16 %v1177, %v1176
        %v1189 = vpack.c.b16 %v1179, %v1178
        %v1190 = vpack.c.b16 %v1181, %v1180
        %v1191 = vpack.c.b16 %v1183, %v1182
        %1200 = vmatprep.subr.bf16.mxu0 0
        %1201 = vmatpush1.bf16.msra.mxu0 %v1184
        %1202 = vmatprep.subr.bf16.mxu0 0
        %1203 = vmatpush1.bf16.msra.mxu0 %v1185
        %1204 = vmatprep.subr.bf16.mxu0 0
        %1205 = vmatpush1.bf16.msra.mxu0 %v1186
        %1206 = vmatprep.subr.bf16.mxu0 0
        %1207 = vmatpush1.bf16.msra.mxu0 %v1187
        %1208 = vmatprep.subr.bf16.mxu0 0
        %1209 = vmatpush1.bf16.msra.mxu0 %v1188
        %1210 = vmatprep.subr.bf16.mxu0 0
        %1211 = vmatpush1.bf16.msra.mxu0 %v1189
        %1212 = vmatprep.subr.bf16.mxu0 0
        %1213 = vmatpush1.bf16.msra.mxu0 %v1190
        %1214 = vmatprep.subr.bf16.mxu0 0
        %1215 = vmatpush1.bf16.msra.mxu0 %v1191
        %1216 = vmatprep.subr.bf16.mxu0 0
        %1217 = vmatpush1.bf16.msra.mxu0 0
        %1218 = vmatprep.subr.bf16.mxu0 0
        %1219 = vmatpush1.bf16.msra.mxu0 0
        %1220 = vmatprep.subr.bf16.mxu0 0
        %1221 = vmatpush1.bf16.msra.mxu0 0
        %1222 = vmatprep.subr.bf16.mxu0 0
        %1223 = vmatpush1.bf16.msra.mxu0 0
        %1224 = vmatprep.subr.bf16.mxu0 0
        %1225 = vmatpush1.bf16.msra.mxu0 0
        %1226 = vmatprep.subr.bf16.mxu0 0
        %1227 = vmatpush1.bf16.msra.mxu0 0
        %1228 = vmatprep.subr.bf16.mxu0 0
        %1229 = vmatpush1.bf16.msra.mxu0 0
        %1230 = vmatprep.subr.bf16.mxu0 0
        %1231 = vmatpush1.bf16.msra.mxu0 0
        %1232 = vmatprep.mubr.bf16.mxu0 0
        %1233 = vmatmul.mubr.bf16.gmra.mrb[0].mxu0 %v1128
        %v1234 = vpop.f32.mrb[0].mxu0
        %v1235 = vadd.f32 0.0, %v1234
        %v1236 = vpop.f32.mrb[0].mxu0
        %v1237 = vpop.f32.mrb[0].mxu0
        %v1238 = vadd.f32 0.0, %v1237
        %v1239 = vpop.f32.mrb[0].mxu0
        %1240 = vmatprep.mubr.bf16.mxu0 0
        %1241 = vmatmul.mubr.bf16.gmra.mrb[0].mxu0 %v1129
        %v1242 = vpop.f32.mrb[0].mxu0
        %v1243 = vadd.f32 0.0, %v1242
        %v1244 = vpop.f32.mrb[0].mxu0
        %v1245 = vpop.f32.mrb[0].mxu0
        %v1246 = vadd.f32 0.0, %v1245
        %v1247 = vpop.f32.mrb[0].mxu0
        %1248 = vmatprep.mubr.bf16.mxu0 0
        %1249 = vmatmul.mubr.bf16.gmra.mrb[0].mxu0 %v1130
        %v1250 = vpop.f32.mrb[0].mxu0
        %v1251 = vadd.f32 0.0, %v1250
        %v1252 = vpop.f32.mrb[0].mxu0
        %v1253 = vpop.f32.mrb[0].mxu0
        %v1254 = vadd.f32 0.0, %v1253
        %v1255 = vpop.f32.mrb[0].mxu0
        %1256 = vmatprep.mubr.bf16.mxu0 0
        %1257 = vmatmul.mubr.bf16.gmra.mrb[0].mxu0 %v1131
        %v1258 = vpop.f32.mrb[0].mxu0
        %v1259 = vadd.f32 0.0, %v1258
        %v1260 = vpop.f32.mrb[0].mxu0
        %v1261 = vpop.f32.mrb[0].mxu0
        %v1262 = vadd.f32 0.0, %v1261
        %v1263 = vpop.f32.mrb[0].mxu0
        %1264 = vmatprep.mubr.bf16.mxu0 0
        %1265 = vmatmul.mubr.bf16.gmra.mrb[0].mxu0 %v1132
        %v1266 = vpop.f32.mrb[0].mxu0
        %v1267 = vadd.f32 0.0, %v1266
        %v1268 = vpop.f32.mrb[0].mxu0
        %v1269 = vpop.f32.mrb[0].mxu0
        %v1270 = vadd.f32 0.0, %v1269
        %v1271 = vpop.f32.mrb[0].mxu0
        %1272 = vmatprep.mubr.bf16.mxu0 0
        %1273 = vmatmul.mubr.bf16.gmra.mrb[0].mxu0 %v1133
        %v1274 = vpop.f32.mrb[0].mxu0
        %v1275 = vadd.f32 0.0, %v1274
        %v1276 = vpop.f32.mrb[0].mxu0
        %v1277 = vpop.f32.mrb[0].mxu0
        %v1278 = vadd.f32 0.0, %v1277
        %v1279 = vpop.f32.mrb[0].mxu0
        %1280 = vmatprep.mubr.bf16.mxu0 0
        %1281 = vmatmul.mubr.bf16.gmra.mrb[0].mxu0 %v1134
        %v1282 = vpop.f32.mrb[0].mxu0
        %v1283 = vadd.f32 0.0, %v1282
        %v1284 = vpop.f32.mrb[0].mxu0
        %v1285 = vpop.f32.mrb[0].mxu0
        %v1286 = vadd.f32 0.0, %v1285
        %v1287 = vpop.f32.mrb[0].mxu0
        %1288 = vmatprep.mubr.bf16.mxu0 0
        %1289 = vmatmul.mubr.bf16.gmra.mrb[0].mxu0 %v1135
        %v1290 = vpop.f32.mrb[0].mxu0
        %v1291 = vadd.f32 0.0, %v1290
        %v1292 = vpop.f32.mrb[0].mxu0
        %v1293 = vpop.f32.mrb[0].mxu0
        %v1294 = vadd.f32 0.0, %v1293
        %v1295 = vpop.f32.mrb[0].mxu0
        %1296 = vdwg.mxu0
        %v1297 = vadd.f32 %v1112, %v1235
        %v1298 = vadd.f32 %v1113, %v1238
        %v1299 = vadd.f32 %v1114, %v1243
        %v1300 = vadd.f32 %v1115, %v1246
        %v1301 = vadd.f32 %v1116, %v1251
        %v1302 = vadd.f32 %v1117, %v1254
        %v1303 = vadd.f32 %v1118, %v1259
        %v1304 = vadd.f32 %v1119, %v1262
        %v1305 = vadd.f32 %v1120, %v1267
        %v1306 = vadd.f32 %v1121, %v1270
        %v1307 = vadd.f32 %v1122, %v1275
        %v1308 = vadd.f32 %v1123, %v1278
        %v1309 = vadd.f32 %v1124, %v1283
        %v1310 = vadd.f32 %v1125, %v1286
        %v1311 = vadd.f32 %v1126, %v1291
        %v1312 = vadd.f32 %v1127, %v1294
        %1313 = vst [vmem:[#allocation4] sm:$0xff] %v1297
        %1314 = vst [vmem:[#allocation4 + $0x8] sm:$0xff] %v1298
        %1315 = vst [vmem:[#allocation4 + $0x10] sm:$0xff] %v1299
        %1316 = vst [vmem:[#allocation4 + $0x18] sm:$0xff] %v1300
        %1317 = vst [vmem:[#allocation4 + $0x20] sm:$0xff] %v1301
        %1318 = vst [vmem:[#allocation4 + $0x28] sm:$0xff] %v1302
        %1319 = vst [vmem:[#allocation4 + $0x30] sm:$0xff] %v1303
        %1320 = vst [vmem:[#allocation4 + $0x38] sm:$0xff] %v1304
        %1321 = vst [vmem:[#allocation4 + $0x40] sm:$0xff] %v1305
        %1322 = vst [vmem:[#allocation4 + $0x48] sm:$0xff] %v1306
        %1323 = vst [vmem:[#allocation4 + $0x50] sm:$0xff] %v1307
        %1324 = vst [vmem:[#allocation4 + $0x58] sm:$0xff] %v1308
        %1325 = vst [vmem:[#allocation4 + $0x60] sm:$0xff] %v1309
        %1326 = vst [vmem:[#allocation4 + $0x68] sm:$0xff] %v1310
        %1327 = vst [vmem:[#allocation4 + $0x70] sm:$0xff] %v1311
        %1328 = vst [vmem:[#allocation4 + $0x78] sm:$0xff] %v1312
        %1329 = vst.msk [vmem:[#allocation2] sm:$0xff] %vm999, %v727
        %1330 = vst.msk [vmem:[#allocation2 + $0x8] sm:$0xff] %vm999, %v728
        %1331 = vst.msk [vmem:[#allocation2 + $0x10] sm:$0xff] %vm999, %v729
        %1332 = vst.msk [vmem:[#allocation2 + $0x18] sm:$0xff] %vm999, %v730
        %1333 = vst.msk [vmem:[#allocation2 + $0x20] sm:$0xff] %vm999, %v731
        %1334 = vst.msk [vmem:[#allocation2 + $0x28] sm:$0xff] %vm999, %v732
        %1335 = vst.msk [vmem:[#allocation2 + $0x30] sm:$0xff] %vm999, %v733
        %1336 = vst.msk [vmem:[#allocation2 + $0x38] sm:$0xff] %vm999, %v734
        %1337 = vst.msk [vmem:[#allocation2 + $0x40] sm:$0xff] %vm999, %v735
        %1338 = vst.msk [vmem:[#allocation2 + $0x48] sm:$0xff] %vm999, %v736
        %1339 = vst.msk [vmem:[#allocation2 + $0x50] sm:$0xff] %vm999, %v737
        %1340 = vst.msk [vmem:[#allocation2 + $0x58] sm:$0xff] %vm999, %v738
        %1341 = vst.msk [vmem:[#allocation2 + $0x60] sm:$0xff] %vm999, %v739
        %1342 = vst.msk [vmem:[#allocation2 + $0x68] sm:$0xff] %vm999, %v740
        %1343 = vst.msk [vmem:[#allocation2 + $0x70] sm:$0xff] %vm999, %v741
        %1344 = vst.msk [vmem:[#allocation2 + $0x78] sm:$0xff] %vm999, %v742
        %p1345 = scmp.eq.s32.totalorder %s20, 1
        // Predicated region
        $region82: #{gat_forward.7} parent=72 // pred_check
          %p1346 = pneg %p1345
        $region83: #{gat_forward.7} parent=72 // pred_check_branch
          %1348 = sbr.rel (%p1346) target = $region85
        $region84: #{gat_forward.7} parent=72 // pred_region
          %v1349 = vld [vmem:[#allocation4] sm:$0xff]
          %v1350 = vld [vmem:[#allocation4 + $0x8] sm:$0xff]
          %v1351 = vld [vmem:[#allocation4 + $0x10] sm:$0xff]
          %v1352 = vld [vmem:[#allocation4 + $0x18] sm:$0xff]
          %v1353 = vld [vmem:[#allocation4 + $0x20] sm:$0xff]
          %v1354 = vld [vmem:[#allocation4 + $0x28] sm:$0xff]
          %v1355 = vld [vmem:[#allocation4 + $0x30] sm:$0xff]
          %v1356 = vld [vmem:[#allocation4 + $0x38] sm:$0xff]
          %v1357 = vld [vmem:[#allocation4 + $0x40] sm:$0xff]
          %v1358 = vld [vmem:[#allocation4 + $0x48] sm:$0xff]
          %v1359 = vld [vmem:[#allocation4 + $0x50] sm:$0xff]
          %v1360 = vld [vmem:[#allocation4 + $0x58] sm:$0xff]
          %v1361 = vld [vmem:[#allocation4 + $0x60] sm:$0xff]
          %v1362 = vld [vmem:[#allocation4 + $0x68] sm:$0xff]
          %v1363 = vld [vmem:[#allocation4 + $0x70] sm:$0xff]
          %v1364 = vld [vmem:[#allocation4 + $0x78] sm:$0xff]
          %v1365 = vld [vmem:[#allocation3] sm:$0xff]
          %v1366 = vld [vmem:[#allocation3 + $0x8] sm:$0xff]
          %v1367 = vld [vmem:[#allocation3 + $0x10] sm:$0xff]
          %v1368 = vld [vmem:[#allocation3 + $0x18] sm:$0xff]
          %v1369 = vld [vmem:[#allocation3 + $0x20] sm:$0xff]
          %v1370 = vld [vmem:[#allocation3 + $0x28] sm:$0xff]
          %v1371 = vld [vmem:[#allocation3 + $0x30] sm:$0xff]
          %v1372 = vld [vmem:[#allocation3 + $0x38] sm:$0xff]
          %v1373 = vld [vmem:[#allocation3 + $0x40] sm:$0xff]
          %v1374 = vld [vmem:[#allocation3 + $0x48] sm:$0xff]
          %v1375 = vld [vmem:[#allocation3 + $0x50] sm:$0xff]
          %v1376 = vld [vmem:[#allocation3 + $0x58] sm:$0xff]
          %v1377 = vld [vmem:[#allocation3 + $0x60] sm:$0xff]
          %v1378 = vld [vmem:[#allocation3 + $0x68] sm:$0xff]
          %v1379 = vld [vmem:[#allocation3 + $0x70] sm:$0xff]
          %v1380 = vld [vmem:[#allocation3 + $0x78] sm:$0xff]
          %v1381 = vrcp.pop %v1365
          %v1382 = vrcp.pop %v1366
          %v1383 = vrcp.pop %v1367
          %v1384 = vrcp.pop %v1368
          %v1385 = vrcp.pop %v1369
          %v1386 = vrcp.pop %v1370
          %v1387 = vrcp.pop %v1371
          %v1388 = vrcp.pop %v1372
          %v1389 = vrcp.pop %v1373
          %v1390 = vrcp.pop %v1374
          %v1391 = vrcp.pop %v1375
          %v1392 = vrcp.pop %v1376
          %v1393 = vrcp.pop %v1377
          %v1394 = vrcp.pop %v1378
          %v1395 = vrcp.pop %v1379
          %v1396 = vrcp.pop %v1380
          %1398 = vset.pattern.permute.xlu0 0
          %1399 = vperm.xlu0 %1398, %v1381
          %v1400 = vpop.permute.xlu0 %1399
          %1403 = vset.pattern.permute.xlu0 0
          %1404 = vperm.xlu0 %1403, %v1382
          %v1405 = vpop.permute.xlu0 %1404
          %1408 = vset.pattern.permute.xlu0 0
          %1409 = vperm.xlu0 %1408, %v1383
          %v1410 = vpop.permute.xlu0 %1409
          %1413 = vset.pattern.permute.xlu0 0
          %1414 = vperm.xlu0 %1413, %v1384
          %v1415 = vpop.permute.xlu0 %1414
          %1418 = vset.pattern.permute.xlu0 0
          %1419 = vperm.xlu0 %1418, %v1385
          %v1420 = vpop.permute.xlu0 %1419
          %1423 = vset.pattern.permute.xlu0 0
          %1424 = vperm.xlu0 %1423, %v1386
          %v1425 = vpop.permute.xlu0 %1424
          %1428 = vset.pattern.permute.xlu0 0
          %1429 = vperm.xlu0 %1428, %v1387
          %v1430 = vpop.permute.xlu0 %1429
          %1433 = vset.pattern.permute.xlu0 0
          %1434 = vperm.xlu0 %1433, %v1388
          %v1435 = vpop.permute.xlu0 %1434
          %1438 = vset.pattern.permute.xlu0 0
          %1439 = vperm.xlu0 %1438, %v1389
          %v1440 = vpop.permute.xlu0 %1439
          %1443 = vset.pattern.permute.xlu0 0
          %1444 = vperm.xlu0 %1443, %v1390
          %v1445 = vpop.permute.xlu0 %1444
          %1448 = vset.pattern.permute.xlu0 0
          %1449 = vperm.xlu0 %1448, %v1391
          %v1450 = vpop.permute.xlu0 %1449
          %1453 = vset.pattern.permute.xlu0 0
          %1454 = vperm.xlu0 %1453, %v1392
          %v1455 = vpop.permute.xlu0 %1454
          %1458 = vset.pattern.permute.xlu0 0
          %1459 = vperm.xlu0 %1458, %v1393
          %v1460 = vpop.permute.xlu0 %1459
          %1463 = vset.pattern.permute.xlu0 0
          %1464 = vperm.xlu0 %1463, %v1394
          %v1465 = vpop.permute.xlu0 %1464
          %1468 = vset.pattern.permute.xlu0 0
          %1469 = vperm.xlu0 %1468, %v1395
          %v1470 = vpop.permute.xlu0 %1469
          %1473 = vset.pattern.permute.xlu0 0
          %1474 = vperm.xlu0 %1473, %v1396
          %v1475 = vpop.permute.xlu0 %1474
          %v1477 = vmul.f32 %v1349, %v1400
          %v1478 = vmul.f32 %v1350, %v1405
          %v1479 = vmul.f32 %v1351, %v1410
          %v1480 = vmul.f32 %v1352, %v1415
          %v1481 = vmul.f32 %v1353, %v1420
          %v1482 = vmul.f32 %v1354, %v1425
          %v1483 = vmul.f32 %v1355, %v1430
          %v1484 = vmul.f32 %v1356, %v1435
          %v1485 = vmul.f32 %v1357, %v1440
          %v1486 = vmul.f32 %v1358, %v1445
          %v1487 = vmul.f32 %v1359, %v1450
          %v1488 = vmul.f32 %v1360, %v1455
          %v1489 = vmul.f32 %v1361, %v1460
          %v1490 = vmul.f32 %v1362, %v1465
          %v1491 = vmul.f32 %v1363, %v1470
          %v1492 = vmul.f32 %v1364, %v1475
          %1493 = vst [vmem:[%s374] sm:$0xff] %v1477
          %1494 = vst [vmem:[%s374 + $0x8] sm:$0xff] %v1478
          %1495 = vst [vmem:[%s374 + $0x10] sm:$0xff] %v1479
          %1496 = vst [vmem:[%s374 + $0x18] sm:$0xff] %v1480
          %1497 = vst [vmem:[%s374 + $0x20] sm:$0xff] %v1481
          %1498 = vst [vmem:[%s374 + $0x28] sm:$0xff] %v1482
          %1499 = vst [vmem:[%s374 + $0x30] sm:$0xff] %v1483
          %1500 = vst [vmem:[%s374 + $0x38] sm:$0xff] %v1484
          %1501 = vst [vmem:[%s374 + $0x40] sm:$0xff] %v1485
          %1502 = vst [vmem:[%s374 + $0x48] sm:$0xff] %v1486
          %1503 = vst [vmem:[%s374 + $0x50] sm:$0xff] %v1487
          %1504 = vst [vmem:[%s374 + $0x58] sm:$0xff] %v1488
          %1505 = vst [vmem:[%s374 + $0x60] sm:$0xff] %v1489
          %1506 = vst [vmem:[%s374 + $0x68] sm:$0xff] %v1490
          %1507 = vst [vmem:[%s374 + $0x70] sm:$0xff] %v1491
          %1508 = vst [vmem:[%s374 + $0x78] sm:$0xff] %v1492
        $region85: #{gat_forward.7} parent=72 // pred_fallthru
          _
        %s1509 = smul.u32 16, %s19
        %p1510 = scmp.lt.s32.totalorder %s1509, 31
        %s1511 = scalar_select %p1510, %s1509, 31
        %s1512 = smul.addr %s1511, 8
        %s1513 = scalar_lea.vmem %s4, %s1512
        // Predicated region
        $region86: #{gat_forward.7} parent=72 // pred_check
          %p1514 = pneg %p151
        $region87: #{gat_forward.7} parent=72 // pred_check_branch
          %1516 = sbr.rel (%p1514) target = $region89
        $region88: #{gat_forward.7} parent=72 // pred_region
          %s1517 = smul.u32 16, %s19
        $region89: #{gat_forward.7} parent=72 // pred_fallthru
          _
      $region73: #{gat_forward.7} parent=5 // pred_fallthru
        _
      %p1518 = scmp.le.s32.totalorder 2, %s10
      // Predicated region
      $region90: #{gat_forward.7} parent=5 // pred_check
        %p1519 = pneg %p1518
      $region91: #{gat_forward.7} parent=5 // pred_check_branch
        %1521 = sbr.rel (%p1519) target = $region93
      $region92: #{gat_forward.7} parent=5 // pred_region
        %s1522 = ssub.s32 %s10, 2
        // Predicated region
        $region94: #{gat_forward.7} parent=92 // pred_check
          %p1523 = pneg %p157
        $region95: #{gat_forward.7} parent=92 // pred_check_branch
          %1525 = sbr.rel (%p1523) target = $region97
        $region96: #{gat_forward.7} parent=92 // pred_region
          %s1526 = smul.u32 16, %s21
          %p1527 = scmp.lt.s32.totalorder %s1526, 31
          %s1528 = scalar_select %p1527, %s1526, 31
          %s1529 = smul.addr %s1528, 8
          %s1530 = scalar_lea.vmem %s4, %s1529
        $region97: #{gat_forward.7} parent=92 // pred_fallthru
          _
      $region93: #{gat_forward.7} parent=5 // pred_fallthru
        _
    $region6: #{gat_forward.7} parent=1 // loop_footer
      %s14 = sadd.s32 1, %s10
    $region7: #{gat_forward.7} parent=1 // loop_footer_branch
      %9 = sbr.rel target = $region3
    $region8: #{gat_forward.7} parent=1 // loop_exit
      _

</llo_original>
